<compile_context>
chip_gen: v7x
topology: tpu7x:2x2x1
jax: 0.10.0
libtpu: 0.0.40
codegen_flags: <defaults>
</compile_context>

<pallas_src>
import functools

import jax
import jax.numpy as jnp
from jax import lax
from jax.experimental import pallas as pl
from jax.experimental.pallas import tpu as pltpu


def _round_up(x, m):
    return (x + m - 1) // m * m


# ----------------------------- Pallas kernels ------------------------------

def _conv_pool_relu_kernel(pt_ref, wbd_ref, b_ref, o_ref, *, coutp):
    """out = relu(max_{2x2 pool}(conv) + b), lane-dense (coutp, tm) tile.

    pt_ref : (4*Kp, tm)      four pool-slot patch sets stacked on contraction
    wbd_ref: (4*coutp, 4*Kp) block-diagonal conv weight (one slot per block)
    b_ref  : (coutp, 1)
    """
    y = jnp.dot(wbd_ref[...], pt_ref[...],
                preferred_element_type=jnp.float32)          # (4*coutp, tm)
    m01 = jnp.maximum(y[0 * coutp:1 * coutp, :], y[1 * coutp:2 * coutp, :])
    m23 = jnp.maximum(y[2 * coutp:3 * coutp, :], y[3 * coutp:4 * coutp, :])
    pooled = jnp.maximum(m01, m23)                           # (coutp, tm)
    o_ref[...] = jnp.maximum(pooled + b_ref[...], 0.0).astype(o_ref.dtype)


def _conv3_linear_kernel(pt_ref, wbd_ref, b_ref, wf_ref, bf_ref, o_ref, *,
                         coutp, cout):
    """Fused conv3 + maxpool + relu + flatten + Linear for one sample."""
    y = jnp.dot(wbd_ref[...], pt_ref[0],
                preferred_element_type=jnp.float32)          # (4*coutp, S)
    m01 = jnp.maximum(y[0 * coutp:1 * coutp, :], y[1 * coutp:2 * coutp, :])
    m23 = jnp.maximum(y[2 * coutp:3 * coutp, :], y[3 * coutp:4 * coutp, :])
    act = jnp.maximum(jnp.maximum(m01, m23) + b_ref[...], 0.0)   # (coutp, S)
    logits = bf_ref[...]                                         # (1, 10)
    for c in range(cout):  # unrolled per-channel (1,S)@(S,10) accumulation
        logits = logits + jnp.dot(act[c:c + 1, :], wf_ref[c],
                                  preferred_element_type=jnp.float32)
    o_ref[0] = logits.astype(o_ref.dtype)


# --------------------------- patch / weight prep ----------------------------

def _patches4(x_nhwc, k, kp):
    """im2col for the four 2x2 pool slots, transposed & contraction-padded.

    Returns pt of shape (4, kp, N*Hp*Wp) with
      pt[2p+q, (ky*k+kx)*C + ci, (n*Hp+i)*Wp + j] = x[n, 2i+p+ky, 2j+q+kx, ci]
    """
    n, h, w, c = x_nhwc.shape
    hout, wout = h - k + 1, w - k + 1
    hp, wp = hout // 2, wout // 2
    m = n * hp * wp
    slabs = jnp.stack([x_nhwc[:, ky:ky + hout, kx:kx + wout, :]
                       for ky in range(k) for kx in range(k)], axis=0)
    mats = []
    for p in range(2):
        for q in range(2):
            sl = slabs[:, :, p::2, q::2, :][:, :, :hp, :wp, :]  # (kk,n,hp,wp,c)
            sl = jnp.moveaxis(sl, -1, 1)                        # (kk,c,n,hp,wp)
            mats.append(sl.reshape(k * k * c, m))
    pt = jnp.stack(mats, axis=0)                                # (4,k*k*c,m)
    return jnp.pad(pt, ((0, 0), (0, kp - k * k * c), (0, 0)))


def _block_diag_weight(w, kp, coutp):
    """PyTorch (Cout,Cin,K,K) -> block-diagonal (4*coutp, 4*kp) matrix."""
    cout, cin, k, _ = w.shape
    wcol = jnp.transpose(w, (2, 3, 1, 0)).reshape(k * k * cin, cout)
    wcol = jnp.pad(wcol, ((0, kp - k * k * cin), (0, coutp - cout)))
    return jnp.kron(jnp.eye(4, dtype=w.dtype), wcol.T)


# ------------------------------ Pallas wrappers -----------------------------

def _conv_pool_relu_call(pt, wbd, b2, coutp, tm):
    kt, m_pad = pt.shape
    return pl.pallas_call(
        functools.partial(_conv_pool_relu_kernel, coutp=coutp),
        out_shape=jax.ShapeDtypeStruct((coutp, m_pad), jnp.float32),
        grid=(m_pad // tm,),
        in_specs=[pl.BlockSpec((kt, tm), lambda i: (0, i)),
                  pl.BlockSpec((4 * coutp, kt), lambda i: (0, 0)),
                  pl.BlockSpec((coutp, 1), lambda i: (0, 0))],
        out_specs=pl.BlockSpec((coutp, tm), lambda i: (0, i)),
        compiler_params=pltpu.CompilerParams(
            dimension_semantics=("parallel",)),
    )(pt, wbd, b2)


def _conv_block(x_nhwc, w, b):
    """Conv2d(valid) -> MaxPool2d(2) -> ReLU, one Pallas call, M-tiled grid."""
    cout, cin, k, _ = w.shape
    n, h, wdim, _ = x_nhwc.shape
    hp, wp = (h - k + 1) // 2, (wdim - k + 1) // 2
    kp = _round_up(k * k * cin, 8)
    coutp = _round_up(cout, 8)
    m = n * hp * wp
    tm = min(512, _round_up(m, 128))
    m_pad = _round_up(m, tm)
    pt = _patches4(x_nhwc, k, kp)                              # (4, kp, m)
    pt = jnp.pad(pt.reshape(4 * kp, m), ((0, 0), (0, m_pad - m)))
    wbd = _block_diag_weight(w, kp, coutp)
    b2 = jnp.pad(b.astype(jnp.float32), (0, coutp - cout)).reshape(coutp, 1)
    out = _conv_pool_relu_call(pt, wbd, b2, coutp, tm)         # (coutp, m_pad)
    out = out[:cout, :m].reshape(cout, n, hp, wp)
    return jnp.transpose(out, (1, 2, 3, 0))                    # NHWC


def _conv3_linear(x_nhwc, w, b, wf, bf):
    """Block 3 (conv+pool+relu) fused with Flatten + Linear, grid over N."""
    cout, cin, k, _ = w.shape
    n, h, wdim, _ = x_nhwc.shape
    hp, wp = (h - k + 1) // 2, (wdim - k + 1) // 2
    s = hp * wp
    kp = _round_up(k * k * cin, 8)
    coutp = _round_up(cout, 8)
    nout = wf.shape[0]
    pt = _patches4(x_nhwc, k, kp)                              # (4, kp, n*s)
    pt3 = pt.reshape(4, kp, n, s).transpose(2, 0, 1, 3).reshape(n, 4 * kp, s)
    wbd = _block_diag_weight(w, kp, coutp)                     # (4*coutp,4*kp)
    b2 = jnp.pad(b.astype(jnp.float32), (0, coutp - cout)).reshape(coutp, 1)
    # Fold PyTorch's NCHW flatten order into the Linear weight at trace time:
    # wf[t, c*s + ij] -> wf3[c, ij, t]
    wf3 = wf.astype(jnp.float32).reshape(nout, cout, s).transpose(1, 2, 0)
    bf2 = bf.astype(jnp.float32).reshape(1, nout)
    out = pl.pallas_call(
        functools.partial(_conv3_linear_kernel, coutp=coutp, cout=cout),
        out_shape=jax.ShapeDtypeStruct((n, 1, nout), jnp.float32),
        grid=(n,),
        in_specs=[pl.BlockSpec((1, 4 * kp, s), lambda i: (i, 0, 0)),
                  pl.BlockSpec((4 * coutp, 4 * kp), lambda i: (0, 0)),
                  pl.BlockSpec((coutp, 1), lambda i: (0, 0)),
                  pl.BlockSpec((cout, s, nout), lambda i: (0, 0, 0)),
                  pl.BlockSpec((1, nout), lambda i: (0, 0))],
        out_specs=pl.BlockSpec((1, 1, nout), lambda i: (i, 0, 0)),
        compiler_params=pltpu.CompilerParams(
            dimension_semantics=("parallel",)),
    )(pt3, wbd, b2, wf3, bf2)
    return out.reshape(n, nout)


# ------------------------------- forward pass --------------------------------

def cnn_forward(x_nchw, params):
    """Equivalent of CNN.forward.  x_nchw: (N,1,64,64) float32 -> (N,10)."""
    x = jnp.transpose(x_nchw, (0, 2, 3, 1))                    # NCHW -> NHWC
    x = _conv_block(x, params["w1"], params["b1"])             # (N,30,30,4)
    x = _conv_block(x, params["w2"], params["b2"])             # (N,13,13,8)
    return _conv3_linear(x, params["w3"], params["b3"],
                         params["wf"], params["bf"])           # (N,10)


# -------------------------- pure-JAX reference ------------------------------

def _reference_forward(x_nchw, params):
    def conv(x, w, b):
        y = lax.conv_general_dilated(
            x, w, (1, 1), "VALID",
            dimension_numbers=("NCHW", "OIHW", "NCHW"))
        return y + b[None, :, None, None]

    def pool(x):
        return lax.reduce_window(x, -jnp.inf, lax.max,
                                 (1, 1, 2, 2), (1, 1, 2, 2), "VALID")

    x = jnp.maximum(pool(conv(x_nchw, params["w1"], params["b1"])), 0.0)
    x = jnp.maximum(pool(conv(x, params["w2"], params["b2"])), 0.0)
    x = jnp.maximum(pool(conv(x, params["w3"], params["b3"])), 0.0)
    x = x.reshape(x.shape[0], -1)
    return x @ params["wf"].T + params["bf"]


# --------------------------------- main --------------------------------------

if __name__ == "__main__":
    key = jax.random.PRNGKey(0)
    ks = jax.random.split(key, 9)
    params = {
        "w1": 0.1 * jax.random.normal(ks[0], (4, 1, 5, 5), jnp.float32),
        "b1": 0.1 * jax.random.normal(ks[1], (4,), jnp.float32),
        "w2": 0.1 * jax.random.normal(ks[2], (8, 4, 5, 5), jnp.float32),
        "b2": 0.1 * jax.random.normal(ks[3], (8,), jnp.float32),
        "w3": 0.1 * jax.random.normal(ks[4], (16, 8, 4, 4), jnp.float32),
        "b3": 0.1 * jax.random.normal(ks[5], (16,), jnp.float32),
        "wf": 0.1 * jax.random.normal(ks[6], (10, 400), jnp.float32),
        "bf": 0.1 * jax.random.normal(ks[7], (10,), jnp.float32),
    }
    # Input 64x64 is implied by Linear(5*5*16, 10): 64->60->30->26->13->10->5.
    x = jax.random.normal(ks[8], (2, 1, 64, 64), jnp.float32)

    fwd = jax.jit(cnn_forward)
    out = jax.block_until_ready(fwd(x, params))
    assert out.shape == (2, 10), out.shape

    ref = jax.block_until_ready(_reference_forward(x, params))
    if not jnp.allclose(out, ref, atol=2e-4, rtol=2e-4):
        err = float(jnp.max(jnp.abs(out - ref)))
        raise AssertionError(
            f"Pallas CNN output mismatch vs JAX reference (max abs err {err})")

    print("KERNEL_OK")
</pallas_src>

<mosaic_0001>
module attributes {stable_mosaic.version = 11 : i64} {
  func.func @_conv_pool_relu_kernel(%arg0: i32, %arg1: memref<128x512xf32, #tpu.memory_space<vmem>>, %arg2: memref<32x128xf32, #tpu.memory_space<vmem>>, %arg3: memref<8x1xf32, #tpu.memory_space<vmem>>, %arg4: memref<8x512xf32, #tpu.memory_space<vmem>>) attributes {dimension_semantics = [#tpu.dimension_semantics<parallel>], iteration_bounds = array<i64: 4>, scalar_prefetch = 0 : i64, scratch_operands = 0 : i64, tpu.core_type = #tpu.core_type<tc>, window_params = [{transform_indices = @transform_0, window_bounds = array<i64: 128, 512>}, {pipeline_mode = #tpu.pipeline_mode<synchronous>, transform_indices = @transform_1, window_bounds = array<i64: 32, 128>}, {pipeline_mode = #tpu.pipeline_mode<synchronous>, transform_indices = @transform_2, window_bounds = array<i64: 8, 1>}, {transform_indices = @transform_3, window_bounds = array<i64: 8, 512>}]} {
    %c0 = arith.constant 0 : index
    %c0_0 = arith.constant 0 : index
    %0 = vector.load %arg2[%c0, %c0_0] : memref<32x128xf32, #tpu.memory_space<vmem>>, vector<32x128xf32>
    %c0_1 = arith.constant 0 : index
    %c0_2 = arith.constant 0 : index
    %1 = vector.load %arg1[%c0_1, %c0_2] : memref<128x512xf32, #tpu.memory_space<vmem>>, vector<128x512xf32>
    %cst = arith.constant dense<0.000000e+00> : vector<32x512xf32>
    %2 = tpu.matmul %0, %1, %cst {dimension_numbers = #tpu.dot_dimension_numbers<[1], [0], [0], [1], [0, 0, 1, 1], [], []>} : vector<32x128xf32>, vector<128x512xf32>, vector<32x512xf32> -> vector<32x512xf32>
    %3 = vector.extract_strided_slice %2 {offsets = [0, 0], sizes = [8, 512], strides = [1, 1]} : vector<32x512xf32> to vector<8x512xf32>
    %4 = vector.extract_strided_slice %2 {offsets = [8, 0], sizes = [8, 512], strides = [1, 1]} : vector<32x512xf32> to vector<8x512xf32>
    %5 = arith.maximumf %3, %4 : vector<8x512xf32>
    %6 = vector.extract_strided_slice %2 {offsets = [16, 0], sizes = [8, 512], strides = [1, 1]} : vector<32x512xf32> to vector<8x512xf32>
    %7 = vector.extract_strided_slice %2 {offsets = [24, 0], sizes = [8, 512], strides = [1, 1]} : vector<32x512xf32> to vector<8x512xf32>
    %8 = arith.maximumf %6, %7 : vector<8x512xf32>
    %9 = arith.maximumf %5, %8 : vector<8x512xf32>
    %c0_3 = arith.constant 0 : index
    %c0_4 = arith.constant 0 : index
    %10 = vector.load %arg3[%c0_3, %c0_4] : memref<8x1xf32, #tpu.memory_space<vmem>>, vector<8x1xf32>
    %11 = vector.broadcast %10 : vector<8x1xf32> to vector<8x512xf32>
    %12 = arith.addf %9, %11 : vector<8x512xf32>
    %cst_5 = arith.constant 0.000000e+00 : f32
    %13 = vector.broadcast %cst_5 : f32 to vector<8x512xf32>
    %14 = arith.maximumf %12, %13 : vector<8x512xf32>
    %c0_6 = arith.constant 0 : index
    %c0_7 = arith.constant 0 : index
    %15 = vector.load %arg4[%c0_6, %c0_7] : memref<8x512xf32, #tpu.memory_space<vmem>>, vector<8x512xf32>
    tpu.vector_store %arg4[%c0_6, %c0_7], %14 {strides = array<i32>} : memref<8x512xf32, #tpu.memory_space<vmem>>, vector<8x512xf32>,
    return
  }
  func.func @transform_0(%arg0: i32) -> (i32, i32) {
    %c0_i32 = arith.constant 0 : i32
    %c0_i32_0 = arith.constant 0 : i32
    return %c0_i32, %arg0 : i32, i32
  }
  func.func @transform_1(%arg0: i32) -> (i32, i32) {
    %c0_i32 = arith.constant 0 : i32
    %c0_i32_0 = arith.constant 0 : i32
    %c0_i32_1 = arith.constant 0 : i32
    return %c0_i32, %c0_i32_0 : i32, i32
  }
  func.func @transform_2(%arg0: i32) -> (i32, i32) {
    %c0_i32 = arith.constant 0 : i32
    %c0_i32_0 = arith.constant 0 : i32
    %c0_i32_1 = arith.constant 0 : i32
    return %c0_i32, %c0_i32_0 : i32, i32
  }
  func.func @transform_3(%arg0: i32) -> (i32, i32) {
    %c0_i32 = arith.constant 0 : i32
    %c0_i32_0 = arith.constant 0 : i32
    return %c0_i32, %arg0 : i32, i32
  }
}

module attributes {stable_mosaic.version = 11 : i64} {
  func.func @_conv_pool_relu_kernel(%arg0: i32, %arg1: memref<416x384xf32, #tpu.memory_space<vmem>>, %arg2: memref<32x416xf32, #tpu.memory_space<vmem>>, %arg3: memref<8x1xf32, #tpu.memory_space<vmem>>, %arg4: memref<8x384xf32, #tpu.memory_space<vmem>>) attributes {dimension_semantics = [#tpu.dimension_semantics<parallel>], iteration_bounds = array<i64: 1>, scalar_prefetch = 0 : i64, scratch_operands = 0 : i64, tpu.core_type = #tpu.core_type<tc>, window_params = [{transform_indices = @transform_0, window_bounds = array<i64: 416, 384>}, {pipeline_mode = #tpu.pipeline_mode<synchronous>, transform_indices = @transform_1, window_bounds = array<i64: 32, 416>}, {pipeline_mode = #tpu.pipeline_mode<synchronous>, transform_indices = @transform_2, window_bounds = array<i64: 8, 1>}, {transform_indices = @transform_3, window_bounds = array<i64: 8, 384>}]} {
    %c0 = arith.constant 0 : index
    %c0_0 = arith.constant 0 : index
    %0 = vector.load %arg2[%c0, %c0_0] : memref<32x416xf32, #tpu.memory_space<vmem>>, vector<32x416xf32>
    %c0_1 = arith.constant 0 : index
    %c0_2 = arith.constant 0 : index
    %1 = vector.load %arg1[%c0_1, %c0_2] : memref<416x384xf32, #tpu.memory_space<vmem>>, vector<416x384xf32>
    %cst = arith.constant dense<0.000000e+00> : vector<32x384xf32>
    %2 = tpu.matmul %0, %1, %cst {dimension_numbers = #tpu.dot_dimension_numbers<[1], [0], [0], [1], [0, 0, 1, 1], [], []>} : vector<32x416xf32>, vector<416x384xf32>, vector<32x384xf32> -> vector<32x384xf32>
    %3 = vector.extract_strided_slice %2 {offsets = [0, 0], sizes = [8, 384], strides = [1, 1]} : vector<32x384xf32> to vector<8x384xf32>
    %4 = vector.extract_strided_slice %2 {offsets = [8, 0], sizes = [8, 384], strides = [1, 1]} : vector<32x384xf32> to vector<8x384xf32>
    %5 = arith.maximumf %3, %4 : vector<8x384xf32>
    %6 = vector.extract_strided_slice %2 {offsets = [16, 0], sizes = [8, 384], strides = [1, 1]} : vector<32x384xf32> to vector<8x384xf32>
    %7 = vector.extract_strided_slice %2 {offsets = [24, 0], sizes = [8, 384], strides = [1, 1]} : vector<32x384xf32> to vector<8x384xf32>
    %8 = arith.maximumf %6, %7 : vector<8x384xf32>
    %9 = arith.maximumf %5, %8 : vector<8x384xf32>
    %c0_3 = arith.constant 0 : index
    %c0_4 = arith.constant 0 : index
    %10 = vector.load %arg3[%c0_3, %c0_4] : memref<8x1xf32, #tpu.memory_space<vmem>>, vector<8x1xf32>
    %11 = vector.broadcast %10 : vector<8x1xf32> to vector<8x384xf32>
    %12 = arith.addf %9, %11 : vector<8x384xf32>
    %cst_5 = arith.constant 0.000000e+00 : f32
    %13 = vector.broadcast %cst_5 : f32 to vector<8x384xf32>
    %14 = arith.maximumf %12, %13 : vector<8x384xf32>
    %c0_6 = arith.constant 0 : index
    %c0_7 = arith.constant 0 : index
    %15 = vector.load %arg4[%c0_6, %c0_7] : memref<8x384xf32, #tpu.memory_space<vmem>>, vector<8x384xf32>
    tpu.vector_store %arg4[%c0_6, %c0_7], %14 {strides = array<i32>} : memref<8x384xf32, #tpu.memory_space<vmem>>, vector<8x384xf32>,
    return
  }
  func.func @transform_0(%arg0: i32) -> (i32, i32) {
    %c0_i32 = arith.constant 0 : i32
    %c0_i32_0 = arith.constant 0 : i32
    return %c0_i32, %arg0 : i32, i32
  }
  func.func @transform_1(%arg0: i32) -> (i32, i32) {
    %c0_i32 = arith.constant 0 : i32
    %c0_i32_0 = arith.constant 0 : i32
    %c0_i32_1 = arith.constant 0 : i32
    return %c0_i32, %c0_i32_0 : i32, i32
  }
  func.func @transform_2(%arg0: i32) -> (i32, i32) {
    %c0_i32 = arith.constant 0 : i32
    %c0_i32_0 = arith.constant 0 : i32
    %c0_i32_1 = arith.constant 0 : i32
    return %c0_i32, %c0_i32_0 : i32, i32
  }
  func.func @transform_3(%arg0: i32) -> (i32, i32) {
    %c0_i32 = arith.constant 0 : i32
    %c0_i32_0 = arith.constant 0 : i32
    return %c0_i32, %arg0 : i32, i32
  }
}

module attributes {stable_mosaic.version = 11 : i64} {
  func.func @_conv3_linear_kernel(%arg0: i32, %arg1: memref<1x512x25xf32, #tpu.memory_space<vmem>>, %arg2: memref<64x512xf32, #tpu.memory_space<vmem>>, %arg3: memref<16x1xf32, #tpu.memory_space<vmem>>, %arg4: memref<16x25x10xf32, #tpu.memory_space<vmem>>, %arg5: memref<1x10xf32, #tpu.memory_space<vmem>>, %arg6: memref<1x1x10xf32, #tpu.memory_space<vmem>>) attributes {dimension_semantics = [#tpu.dimension_semantics<parallel>], iteration_bounds = array<i64: 2>, scalar_prefetch = 0 : i64, scratch_operands = 0 : i64, tpu.core_type = #tpu.core_type<tc>, window_params = [{transform_indices = @transform_0, window_bounds = array<i64: 1, 512, 25>}, {pipeline_mode = #tpu.pipeline_mode<synchronous>, transform_indices = @transform_1, window_bounds = array<i64: 64, 512>}, {pipeline_mode = #tpu.pipeline_mode<synchronous>, transform_indices = @transform_2, window_bounds = array<i64: 16, 1>}, {pipeline_mode = #tpu.pipeline_mode<synchronous>, transform_indices = @transform_3, window_bounds = array<i64: 16, 25, 10>}, {pipeline_mode = #tpu.pipeline_mode<synchronous>, transform_indices = @transform_4, window_bounds = array<i64: 1, 10>}, {transform_indices = @transform_5, window_bounds = array<i64: 1, 1, 10>}]} {
    %c0 = arith.constant 0 : index
    %c0_0 = arith.constant 0 : index
    %0 = vector.load %arg2[%c0, %c0_0] : memref<64x512xf32, #tpu.memory_space<vmem>>, vector<64x512xf32>
    %c0_1 = arith.constant 0 : index
    %c0_2 = arith.constant 0 : index
    %c0_3 = arith.constant 0 : index
    %1 = vector.load %arg1[%c0_1, %c0_2, %c0_3] : memref<1x512x25xf32, #tpu.memory_space<vmem>>, vector<1x512x25xf32>
    %2 = vector.shape_cast %1 : vector<1x512x25xf32> to vector<512x25xf32>
    %cst = arith.constant dense<0.000000e+00> : vector<64x25xf32>
    %3 = tpu.matmul %0, %2, %cst {dimension_numbers = #tpu.dot_dimension_numbers<[1], [0], [0], [1], [0, 0, 1, 1], [], []>} : vector<64x512xf32>, vector<512x25xf32>, vector<64x25xf32> -> vector<64x25xf32>
    %4 = vector.extract_strided_slice %3 {offsets = [0, 0], sizes = [16, 25], strides = [1, 1]} : vector<64x25xf32> to vector<16x25xf32>
    %5 = vector.extract_strided_slice %3 {offsets = [16, 0], sizes = [16, 25], strides = [1, 1]} : vector<64x25xf32> to vector<16x25xf32>
    %6 = arith.maximumf %4, %5 : vector<16x25xf32>
    %7 = vector.extract_strided_slice %3 {offsets = [32, 0], sizes = [16, 25], strides = [1, 1]} : vector<64x25xf32> to vector<16x25xf32>
    %8 = vector.extract_strided_slice %3 {offsets = [48, 0], sizes = [16, 25], strides = [1, 1]} : vector<64x25xf32> to vector<16x25xf32>
    %9 = arith.maximumf %7, %8 : vector<16x25xf32>
    %10 = arith.maximumf %6, %9 : vector<16x25xf32>
    %c0_4 = arith.constant 0 : index
    %c0_5 = arith.constant 0 : index
    %11 = vector.load %arg3[%c0_4, %c0_5] : memref<16x1xf32, #tpu.memory_space<vmem>>, vector<16x1xf32>
    %12 = vector.broadcast %11 : vector<16x1xf32> to vector<16x25xf32>
    %13 = arith.addf %10, %12 : vector<16x25xf32>
    %cst_6 = arith.constant 0.000000e+00 : f32
    %14 = vector.broadcast %cst_6 : f32 to vector<16x25xf32>
    %15 = arith.maximumf %13, %14 : vector<16x25xf32>
    %c0_7 = arith.constant 0 : index
    %c0_8 = arith.constant 0 : index
    %16 = vector.load %arg5[%c0_7, %c0_8] : memref<1x10xf32, #tpu.memory_space<vmem>>, vector<1x10xf32>
    %17 = vector.extract_strided_slice %15 {offsets = [0, 0], sizes = [1, 25], strides = [1, 1]} : vector<16x25xf32> to vector<1x25xf32>
    %c0_9 = arith.constant 0 : index
    %c0_10 = arith.constant 0 : index
    %c0_11 = arith.constant 0 : index
    %18 = vector.load %arg4[%c0_9, %c0_10, %c0_11] : memref<16x25x10xf32, #tpu.memory_space<vmem>>, vector<1x25x10xf32>
    %19 = vector.shape_cast %18 : vector<1x25x10xf32> to vector<25x10xf32>
    %cst_12 = arith.constant dense<0.000000e+00> : vector<1x10xf32>
    %20 = tpu.matmul %17, %19, %cst_12 {dimension_numbers = #tpu.dot_dimension_numbers<[1], [0], [0], [1], [0, 0, 1, 1], [], []>} : vector<1x25xf32>, vector<25x10xf32>, vector<1x10xf32> -> vector<1x10xf32>
    %21 = arith.addf %16, %20 : vector<1x10xf32>
    %22 = vector.extract_strided_slice %15 {offsets = [1, 0], sizes = [1, 25], strides = [1, 1]} : vector<16x25xf32> to vector<1x25xf32>
    %c1 = arith.constant 1 : index
    %c0_13 = arith.constant 0 : index
    %c0_14 = arith.constant 0 : index
    %23 = vector.load %arg4[%c1, %c0_13, %c0_14] : memref<16x25x10xf32, #tpu.memory_space<vmem>>, vector<1x25x10xf32>
    %24 = vector.shape_cast %23 : vector<1x25x10xf32> to vector<25x10xf32>
    %cst_15 = arith.constant dense<0.000000e+00> : vector<1x10xf32>
    %25 = tpu.matmul %22, %24, %cst_15 {dimension_numbers = #tpu.dot_dimension_numbers<[1], [0], [0], [1], [0, 0, 1, 1], [], []>} : vector<1x25xf32>, vector<25x10xf32>, vector<1x10xf32> -> vector<1x10xf32>
    %26 = arith.addf %21, %25 : vector<1x10xf32>
    %27 = vector.extract_strided_slice %15 {offsets = [2, 0], sizes = [1, 25], strides = [1, 1]} : vector<16x25xf32> to vector<1x25xf32>
    %c2 = arith.constant 2 : index
    %c0_16 = arith.constant 0 : index
    %c0_17 = arith.constant 0 : index
    %28 = vector.load %arg4[%c2, %c0_16, %c0_17] : memref<16x25x10xf32, #tpu.memory_space<vmem>>, vector<1x25x10xf32>
    %29 = vector.shape_cast %28 : vector<1x25x10xf32> to vector<25x10xf32>
    %cst_18 = arith.constant dense<0.000000e+00> : vector<1x10xf32>
    %30 = tpu.matmul %27, %29, %cst_18 {dimension_numbers = #tpu.dot_dimension_numbers<[1], [0], [0], [1], [0, 0, 1, 1], [], []>} : vector<1x25xf32>, vector<25x10xf32>, vector<1x10xf32> -> vector<1x10xf32>
    %31 = arith.addf %26, %30 : vector<1x10xf32>
    %32 = vector.extract_strided_slice %15 {offsets = [3, 0], sizes = [1, 25], strides = [1, 1]} : vector<16x25xf32> to vector<1x25xf32>
    %c3 = arith.constant 3 : index
    %c0_19 = arith.constant 0 : index
    %c0_20 = arith.constant 0 : index
    %33 = vector.load %arg4[%c3, %c0_19, %c0_20] : memref<16x25x10xf32, #tpu.memory_space<vmem>>, vector<1x25x10xf32>
    %34 = vector.shape_cast %33 : vector<1x25x10xf32> to vector<25x10xf32>
    %cst_21 = arith.constant dense<0.000000e+00> : vector<1x10xf32>
    %35 = tpu.matmul %32, %34, %cst_21 {dimension_numbers = #tpu.dot_dimension_numbers<[1], [0], [0], [1], [0, 0, 1, 1], [], []>} : vector<1x25xf32>, vector<25x10xf32>, vector<1x10xf32> -> vector<1x10xf32>
    %36 = arith.addf %31, %35 : vector<1x10xf32>
    %37 = vector.extract_strided_slice %15 {offsets = [4, 0], sizes = [1, 25], strides = [1, 1]} : vector<16x25xf32> to vector<1x25xf32>
    %c4 = arith.constant 4 : index
    %c0_22 = arith.constant 0 : index
    %c0_23 = arith.constant 0 : index
    %38 = vector.load %arg4[%c4, %c0_22, %c0_23] : memref<16x25x10xf32, #tpu.memory_space<vmem>>, vector<1x25x10xf32>
    %39 = vector.shape_cast %38 : vector<1x25x10xf32> to vector<25x10xf32>
    %cst_24 = arith.constant dense<0.000000e+00> : vector<1x10xf32>
    %40 = tpu.matmul %37, %39, %cst_24 {dimension_numbers = #tpu.dot_dimension_numbers<[1], [0], [0], [1], [0, 0, 1, 1], [], []>} : vector<1x25xf32>, vector<25x10xf32>, vector<1x10xf32> -> vector<1x10xf32>
    %41 = arith.addf %36, %40 : vector<1x10xf32>
    %42 = vector.extract_strided_slice %15 {offsets = [5, 0], sizes = [1, 25], strides = [1, 1]} : vector<16x25xf32> to vector<1x25xf32>
    %c5 = arith.constant 5 : index
    %c0_25 = arith.constant 0 : index
    %c0_26 = arith.constant 0 : index
    %43 = vector.load %arg4[%c5, %c0_25, %c0_26] : memref<16x25x10xf32, #tpu.memory_space<vmem>>, vector<1x25x10xf32>
    %44 = vector.shape_cast %43 : vector<1x25x10xf32> to vector<25x10xf32>
    %cst_27 = arith.constant dense<0.000000e+00> : vector<1x10xf32>
    %45 = tpu.matmul %42, %44, %cst_27 {dimension_numbers = #tpu.dot_dimension_numbers<[1], [0], [0], [1], [0, 0, 1, 1], [], []>} : vector<1x25xf32>, vector<25x10xf32>, vector<1x10xf32> -> vector<1x10xf32>
    %46 = arith.addf %41, %45 : vector<1x10xf32>
    %47 = vector.extract_strided_slice %15 {offsets = [6, 0], sizes = [1, 25], strides = [1, 1]} : vector<16x25xf32> to vector<1x25xf32>
    %c6 = arith.constant 6 : index
    %c0_28 = arith.constant 0 : index
    %c0_29 = arith.constant 0 : index
    %48 = vector.load %arg4[%c6, %c0_28, %c0_29] : memref<16x25x10xf32, #tpu.memory_space<vmem>>, vector<1x25x10xf32>
    %49 = vector.shape_cast %48 : vector<1x25x10xf32> to vector<25x10xf32>
    %cst_30 = arith.constant dense<0.000000e+00> : vector<1x10xf32>
    %50 = tpu.matmul %47, %49, %cst_30 {dimension_numbers = #tpu.dot_dimension_numbers<[1], [0], [0], [1], [0, 0, 1, 1], [], []>} : vector<1x25xf32>, vector<25x10xf32>, vector<1x10xf32> -> vector<1x10xf32>
    %51 = arith.addf %46, %50 : vector<1x10xf32>
    %52 = vector.extract_strided_slice %15 {offsets = [7, 0], sizes = [1, 25], strides = [1, 1]} : vector<16x25xf32> to vector<1x25xf32>
    %c7 = arith.constant 7 : index
    %c0_31 = arith.constant 0 : index
    %c0_32 = arith.constant 0 : index
    %53 = vector.load %arg4[%c7, %c0_31, %c0_32] : memref<16x25x10xf32, #tpu.memory_space<vmem>>, vector<1x25x10xf32>
    %54 = vector.shape_cast %53 : vector<1x25x10xf32> to vector<25x10xf32>
    %cst_33 = arith.constant dense<0.000000e+00> : vector<1x10xf32>
    %55 = tpu.matmul %52, %54, %cst_33 {dimension_numbers = #tpu.dot_dimension_numbers<[1], [0], [0], [1], [0, 0, 1, 1], [], []>} : vector<1x25xf32>, vector<25x10xf32>, vector<1x10xf32> -> vector<1x10xf32>
    %56 = arith.addf %51, %55 : vector<1x10xf32>
    %57 = vector.extract_strided_slice %15 {offsets = [8, 0], sizes = [1, 25], strides = [1, 1]} : vector<16x25xf32> to vector<1x25xf32>
    %c8 = arith.constant 8 : index
    %c0_34 = arith.constant 0 : index
    %c0_35 = arith.constant 0 : index
    %58 = vector.load %arg4[%c8, %c0_34, %c0_35] : memref<16x25x10xf32, #tpu.memory_space<vmem>>, vector<1x25x10xf32>
    %59 = vector.shape_cast %58 : vector<1x25x10xf32> to vector<25x10xf32>
    %cst_36 = arith.constant dense<0.000000e+00> : vector<1x10xf32>
    %60 = tpu.matmul %57, %59, %cst_36 {dimension_numbers = #tpu.dot_dimension_numbers<[1], [0], [0], [1], [0, 0, 1, 1], [], []>} : vector<1x25xf32>, vector<25x10xf32>, vector<1x10xf32> -> vector<1x10xf32>
    %61 = arith.addf %56, %60 : vector<1x10xf32>
    %62 = vector.extract_strided_slice %15 {offsets = [9, 0], sizes = [1, 25], strides = [1, 1]} : vector<16x25xf32> to vector<1x25xf32>
    %c9 = arith.constant 9 : index
    %c0_37 = arith.constant 0 : index
    %c0_38 = arith.constant 0 : index
    %63 = vector.load %arg4[%c9, %c0_37, %c0_38] : memref<16x25x10xf32, #tpu.memory_space<vmem>>, vector<1x25x10xf32>
    %64 = vector.shape_cast %63 : vector<1x25x10xf32> to vector<25x10xf32>
    %cst_39 = arith.constant dense<0.000000e+00> : vector<1x10xf32>
    %65 = tpu.matmul %62, %64, %cst_39 {dimension_numbers = #tpu.dot_dimension_numbers<[1], [0], [0], [1], [0, 0, 1, 1], [], []>} : vector<1x25xf32>, vector<25x10xf32>, vector<1x10xf32> -> vector<1x10xf32>
    %66 = arith.addf %61, %65 : vector<1x10xf32>
    %67 = vector.extract_strided_slice %15 {offsets = [10, 0], sizes = [1, 25], strides = [1, 1]} : vector<16x25xf32> to vector<1x25xf32>
    %c10 = arith.constant 10 : index
    %c0_40 = arith.constant 0 : index
    %c0_41 = arith.constant 0 : index
    %68 = vector.load %arg4[%c10, %c0_40, %c0_41] : memref<16x25x10xf32, #tpu.memory_space<vmem>>, vector<1x25x10xf32>
    %69 = vector.shape_cast %68 : vector<1x25x10xf32> to vector<25x10xf32>
    %cst_42 = arith.constant dense<0.000000e+00> : vector<1x10xf32>
    %70 = tpu.matmul %67, %69, %cst_42 {dimension_numbers = #tpu.dot_dimension_numbers<[1], [0], [0], [1], [0, 0, 1, 1], [], []>} : vector<1x25xf32>, vector<25x10xf32>, vector<1x10xf32> -> vector<1x10xf32>
    %71 = arith.addf %66, %70 : vector<1x10xf32>
    %72 = vector.extract_strided_slice %15 {offsets = [11, 0], sizes = [1, 25], strides = [1, 1]} : vector<16x25xf32> to vector<1x25xf32>
    %c11 = arith.constant 11 : index
    %c0_43 = arith.constant 0 : index
    %c0_44 = arith.constant 0 : index
    %73 = vector.load %arg4[%c11, %c0_43, %c0_44] : memref<16x25x10xf32, #tpu.memory_space<vmem>>, vector<1x25x10xf32>
    %74 = vector.shape_cast %73 : vector<1x25x10xf32> to vector<25x10xf32>
    %cst_45 = arith.constant dense<0.000000e+00> : vector<1x10xf32>
    %75 = tpu.matmul %72, %74, %cst_45 {dimension_numbers = #tpu.dot_dimension_numbers<[1], [0], [0], [1], [0, 0, 1, 1], [], []>} : vector<1x25xf32>, vector<25x10xf32>, vector<1x10xf32> -> vector<1x10xf32>
    %76 = arith.addf %71, %75 : vector<1x10xf32>
    %77 = vector.extract_strided_slice %15 {offsets = [12, 0], sizes = [1, 25], strides = [1, 1]} : vector<16x25xf32> to vector<1x25xf32>
    %c12 = arith.constant 12 : index
    %c0_46 = arith.constant 0 : index
    %c0_47 = arith.constant 0 : index
    %78 = vector.load %arg4[%c12, %c0_46, %c0_47] : memref<16x25x10xf32, #tpu.memory_space<vmem>>, vector<1x25x10xf32>
    %79 = vector.shape_cast %78 : vector<1x25x10xf32> to vector<25x10xf32>
    %cst_48 = arith.constant dense<0.000000e+00> : vector<1x10xf32>
    %80 = tpu.matmul %77, %79, %cst_48 {dimension_numbers = #tpu.dot_dimension_numbers<[1], [0], [0], [1], [0, 0, 1, 1], [], []>} : vector<1x25xf32>, vector<25x10xf32>, vector<1x10xf32> -> vector<1x10xf32>
    %81 = arith.addf %76, %80 : vector<1x10xf32>
    %82 = vector.extract_strided_slice %15 {offsets = [13, 0], sizes = [1, 25], strides = [1, 1]} : vector<16x25xf32> to vector<1x25xf32>
    %c13 = arith.constant 13 : index
    %c0_49 = arith.constant 0 : index
    %c0_50 = arith.constant 0 : index
    %83 = vector.load %arg4[%c13, %c0_49, %c0_50] : memref<16x25x10xf32, #tpu.memory_space<vmem>>, vector<1x25x10xf32>
    %84 = vector.shape_cast %83 : vector<1x25x10xf32> to vector<25x10xf32>
    %cst_51 = arith.constant dense<0.000000e+00> : vector<1x10xf32>
    %85 = tpu.matmul %82, %84, %cst_51 {dimension_numbers = #tpu.dot_dimension_numbers<[1], [0], [0], [1], [0, 0, 1, 1], [], []>} : vector<1x25xf32>, vector<25x10xf32>, vector<1x10xf32> -> vector<1x10xf32>
    %86 = arith.addf %81, %85 : vector<1x10xf32>
    %87 = vector.extract_strided_slice %15 {offsets = [14, 0], sizes = [1, 25], strides = [1, 1]} : vector<16x25xf32> to vector<1x25xf32>
    %c14 = arith.constant 14 : index
    %c0_52 = arith.constant 0 : index
    %c0_53 = arith.constant 0 : index
    %88 = vector.load %arg4[%c14, %c0_52, %c0_53] : memref<16x25x10xf32, #tpu.memory_space<vmem>>, vector<1x25x10xf32>
    %89 = vector.shape_cast %88 : vector<1x25x10xf32> to vector<25x10xf32>
    %cst_54 = arith.constant dense<0.000000e+00> : vector<1x10xf32>
    %90 = tpu.matmul %87, %89, %cst_54 {dimension_numbers = #tpu.dot_dimension_numbers<[1], [0], [0], [1], [0, 0, 1, 1], [], []>} : vector<1x25xf32>, vector<25x10xf32>, vector<1x10xf32> -> vector<1x10xf32>
    %91 = arith.addf %86, %90 : vector<1x10xf32>
    %92 = vector.extract_strided_slice %15 {offsets = [15, 0], sizes = [1, 25], strides = [1, 1]} : vector<16x25xf32> to vector<1x25xf32>
    %c15 = arith.constant 15 : index
    %c0_55 = arith.constant 0 : index
    %c0_56 = arith.constant 0 : index
    %93 = vector.load %arg4[%c15, %c0_55, %c0_56] : memref<16x25x10xf32, #tpu.memory_space<vmem>>, vector<1x25x10xf32>
    %94 = vector.shape_cast %93 : vector<1x25x10xf32> to vector<25x10xf32>
    %cst_57 = arith.constant dense<0.000000e+00> : vector<1x10xf32>
    %95 = tpu.matmul %92, %94, %cst_57 {dimension_numbers = #tpu.dot_dimension_numbers<[1], [0], [0], [1], [0, 0, 1, 1], [], []>} : vector<1x25xf32>, vector<25x10xf32>, vector<1x10xf32> -> vector<1x10xf32>
    %96 = arith.addf %91, %95 : vector<1x10xf32>
    %c0_58 = arith.constant 0 : index
    %c0_59 = arith.constant 0 : index
    %c0_60 = arith.constant 0 : index
    %97 = vector.load %arg6[%c0_58, %c0_59, %c0_60] : memref<1x1x10xf32, #tpu.memory_space<vmem>>, vector<1x1x10xf32>
    %98 = vector.shape_cast %97 : vector<1x1x10xf32> to vector<1x10xf32>
    %99 = vector.shape_cast %96 : vector<1x10xf32> to vector<1x1x10xf32>
    tpu.vector_store %arg6[%c0_58, %c0_59, %c0_60], %99 {strides = array<i32>} : memref<1x1x10xf32, #tpu.memory_space<vmem>>, vector<1x1x10xf32>,
    return
  }
  func.func @transform_0(%arg0: i32) -> (i32, i32, i32) {
    %c0_i32 = arith.constant 0 : i32
    %c0_i32_0 = arith.constant 0 : i32
    %c0_i32_1 = arith.constant 0 : i32
    return %arg0, %c0_i32, %c0_i32_0 : i32, i32, i32
  }
  func.func @transform_1(%arg0: i32) -> (i32, i32) {
    %c0_i32 = arith.constant 0 : i32
    %c0_i32_0 = arith.constant 0 : i32
    %c0_i32_1 = arith.constant 0 : i32
    return %c0_i32, %c0_i32_0 : i32, i32
  }
  func.func @transform_2(%arg0: i32) -> (i32, i32) {
    %c0_i32 = arith.constant 0 : i32
    %c0_i32_0 = arith.constant 0 : i32
    %c0_i32_1 = arith.constant 0 : i32
    return %c0_i32, %c0_i32_0 : i32, i32
  }
  func.func @transform_3(%arg0: i32) -> (i32, i32, i32) {
    %c0_i32 = arith.constant 0 : i32
    %c0_i32_0 = arith.constant 0 : i32
    %c0_i32_1 = arith.constant 0 : i32
    %c0_i32_2 = arith.constant 0 : i32
    return %c0_i32, %c0_i32_0, %c0_i32_1 : i32, i32, i32
  }
  func.func @transform_4(%arg0: i32) -> (i32, i32) {
    %c0_i32 = arith.constant 0 : i32
    %c0_i32_0 = arith.constant 0 : i32
    %c0_i32_1 = arith.constant 0 : i32
    return %c0_i32, %c0_i32_0 : i32, i32
  }
  func.func @transform_5(%arg0: i32) -> (i32, i32, i32) {
    %c0_i32 = arith.constant 0 : i32
    %c0_i32_0 = arith.constant 0 : i32
    %c0_i32_1 = arith.constant 0 : i32
    return %arg0, %c0_i32, %c0_i32_0 : i32, i32, i32
  }
}

</mosaic_0001>

<llo_original>
// kernel: cnn_forward.3
$region0: #{cnn_forward.3}
  #allocation0 [shape = 'u32[]', space=smem, size = 0x4, offset = 0x4, fixed_abs, tag = 'smem constant byte address 0x4 - core index']
  #allocation1 [shape = 'u32[144,128]{1,0:T(1,128)}', space=vmem, size = 0x12000, scoped, tag = 'internal scratch']
  %s0 = inlined_call_operand.vmem [shape: f32[128,2048], index: 0, kind: input, shape index: {}]
  %s1 = inlined_call_operand.vmem [shape: f32[32,128], index: 1, kind: input, shape index: {}]
  %s2 = inlined_call_operand.vmem [shape: f32[8,1], index: 2, kind: input, shape index: {}]
  %s3 = inlined_call_operand.vmem [shape: f32[8,2048], index: 3, kind: output, shape index: {}]
  %s4 = sld [smem:[#allocation0]]
  $region68: #{cnn_forward.3} parent=0
    _
  %s6 = ssub.s32 1, %s4
  %s7 = scalar_select 0, %s6, %s4
  $region1: #{cnn_forward.3} parent=0
    #allocation2 [shape = 'u8[524288]{0}', space=vmem, size = 0x80000, scoped, tag = 'input window, operand 0']
    loop: start=0, step=1, limit=6
    $region2: #{cnn_forward.3} parent=1 // loop_pre_header
      _
    $region3: #{cnn_forward.3} parent=1 // loop_header
      %s9 = sphi 0, %s13
      %p10 = scmp.ge.s32.totalorder %s9, 6
      %s19 = sphi 0, %s21
      %s22 = sphi 0, %s19
      %s23 = sphi 0, %s22
      %s39 = sphi 0, %s23
      %s43 = sphi 0, %s43
      %s45 = sphi 0, %s43
      %s46 = sphi 0, %s45
      %s60 = sphi 0, %s46
      %s64 = sphi 0, %s64
      %s66 = sphi 0, %s64
      %s67 = sphi 0, %s66
      %s81 = sphi 0, %s67
      %s87 = sphi 0, %s89
      %s90 = sphi 0, %s87
      %s91 = sphi 0, %s90
      %s107 = sphi 0, %s91
    $region4: #{cnn_forward.3} parent=1 // loop_header_branch
      %12 = sbr.rel (%p10) target = $region8
    $region5: #{cnn_forward.3} parent=1 // loop_body
      %s14 = ssub.s32 %s9, 1
      %s15 = ssub.s32 %s9, 2
      %s16 = sadd.s32 %s9, 1
      %s17 = ssub.s32 %s9, %s16
      %p18 = scmp.eq.s32.totalorder %s17, 0
      %s20 = sadd.s32 %s19, 1
      %s21 = scalar_select %p18, %s19, %s20
      %p24 = pneg %p18
      %p25 = scmp.eq.s32.totalorder %s9, 3
      %p26 = por %p24, %p25
      %p27 = scmp.ne.s32.totalorder %s19, %s22
      %p28 = scmp.eq.s32.totalorder %s9, 0
      %p29 = por %p27, %p28
      %p30 = scmp.ne.s32.totalorder %s19, %s22
      %p31 = scmp.eq.s32.totalorder %s14, 3
      %p32 = por %p30, %p31
      %p33 = scmp.ne.s32.totalorder %s22, %s23
      %p34 = scmp.eq.s32.totalorder %s14, 0
      %p35 = por %p33, %p34
      %p36 = scmp.ne.s32.totalorder %s22, %s23
      %p37 = scmp.eq.s32.totalorder %s15, 3
      %p38 = por %p36, %p37
      %p40 = scmp.ne.s32.totalorder %s23, %s39
      %p41 = scmp.eq.s32.totalorder %s15, 0
      %p42 = por %p40, %p41
      %s44 = sadd.s32 %s43, 1
      %p47 = scmp.eq.s32.totalorder %s9, 3
      %p48 = scmp.ne.s32.totalorder %s43, %s45
      %p49 = scmp.eq.s32.totalorder %s9, 0
      %p50 = por %p48, %p49
      %p51 = scmp.ne.s32.totalorder %s43, %s45
      %p52 = scmp.eq.s32.totalorder %s14, 3
      %p53 = por %p51, %p52
      %p54 = scmp.ne.s32.totalorder %s45, %s46
      %p55 = scmp.eq.s32.totalorder %s14, 0
      %p56 = por %p54, %p55
      %p57 = scmp.ne.s32.totalorder %s45, %s46
      %p58 = scmp.eq.s32.totalorder %s15, 3
      %p59 = por %p57, %p58
      %p61 = scmp.ne.s32.totalorder %s46, %s60
      %p62 = scmp.eq.s32.totalorder %s15, 0
      %p63 = por %p61, %p62
      %s65 = sadd.s32 %s64, 1
      %p68 = scmp.eq.s32.totalorder %s9, 3
      %p69 = scmp.ne.s32.totalorder %s64, %s66
      %p70 = scmp.eq.s32.totalorder %s9, 0
      %p71 = por %p69, %p70
      %p72 = scmp.ne.s32.totalorder %s64, %s66
      %p73 = scmp.eq.s32.totalorder %s14, 3
      %p74 = por %p72, %p73
      %p75 = scmp.ne.s32.totalorder %s66, %s67
      %p76 = scmp.eq.s32.totalorder %s14, 0
      %p77 = por %p75, %p76
      %p78 = scmp.ne.s32.totalorder %s66, %s67
      %p79 = scmp.eq.s32.totalorder %s15, 3
      %p80 = por %p78, %p79
      %p82 = scmp.ne.s32.totalorder %s67, %s81
      %p83 = scmp.eq.s32.totalorder %s15, 0
      %p84 = por %p82, %p83
      %s85 = ssub.s32 %s9, %s16
      %p86 = scmp.eq.s32.totalorder %s85, 0
      %s88 = sadd.s32 %s87, 1
      %s89 = scalar_select %p86, %s87, %s88
      %p92 = pneg %p86
      %p93 = scmp.eq.s32.totalorder %s9, 3
      %p94 = por %p92, %p93
      %p95 = scmp.ne.s32.totalorder %s87, %s90
      %p96 = scmp.eq.s32.totalorder %s9, 0
      %p97 = por %p95, %p96
      %p98 = scmp.ne.s32.totalorder %s87, %s90
      %p99 = scmp.eq.s32.totalorder %s14, 3
      %p100 = por %p98, %p99
      %p101 = scmp.ne.s32.totalorder %s90, %s91
      %p102 = scmp.eq.s32.totalorder %s14, 0
      %p103 = por %p101, %p102
      %p104 = scmp.ne.s32.totalorder %s90, %s91
      %p105 = scmp.eq.s32.totalorder %s15, 3
      %p106 = por %p104, %p105
      %p108 = scmp.ne.s32.totalorder %s91, %s107
      %p109 = scmp.eq.s32.totalorder %s15, 0
      %p110 = por %p108, %p109
      %p111 = scmp.le.s32.totalorder 1, %s9
      %p112 = scmp.lt.s32.totalorder %s9, 5
      %p113 = pnand %p111, %p112
      %p114 = pneg %p113
      // Predicated region
      $region9: #{cnn_forward.3} parent=5 // pred_check
        _
      $region10: #{cnn_forward.3} parent=5 // pred_check_branch
        %116 = sbr.rel (%p113) target = $region12
      $region11: #{cnn_forward.3} parent=5 // pred_region
        %s117 = ssub.s32 %s9, 1
        // Predicated region
        $region13: #{cnn_forward.3} parent=11 // pred_check
          %p118 = pneg %p56
        $region14: #{cnn_forward.3} parent=11 // pred_check_branch
          %120 = sbr.rel (%p118) target = $region16
        $region15: #{cnn_forward.3} parent=11 // pred_region
          _
        $region16: #{cnn_forward.3} parent=11 // pred_fallthru
          _
        // Predicated region
        $region17: #{cnn_forward.3} parent=11 // pred_check
          %p121 = pneg %p77
        $region18: #{cnn_forward.3} parent=11 // pred_check_branch
          %123 = sbr.rel (%p121) target = $region20
        $region19: #{cnn_forward.3} parent=11 // pred_region
          _
        $region20: #{cnn_forward.3} parent=11 // pred_fallthru
          _
      $region12: #{cnn_forward.3} parent=5 // pred_fallthru
        _
      %p124 = scmp.lt.s32.totalorder %s9, 4
      // Predicated region
      $region21: #{cnn_forward.3} parent=5 // pred_check
        %p125 = pneg %p124
      $region22: #{cnn_forward.3} parent=5 // pred_check_branch
        %127 = sbr.rel (%p125) target = $region24
      $region23: #{cnn_forward.3} parent=5 // pred_region
        // Predicated region
        $region25: #{cnn_forward.3} parent=23 // pred_check
          %p128 = pneg %p29
        $region26: #{cnn_forward.3} parent=23 // pred_check_branch
          %130 = sbr.rel (%p128) target = $region28
        $region27: #{cnn_forward.3} parent=23 // pred_region
          %s131 = sand.u32 %s19, 1
          %s132 = sand.u32 %s19, 1
          %s133 = smul.addr %s132, 512
          %s134 = scalar_lea.vmem [#allocation2], %s133
          %s135 = smul.u32 4, %s9
          %s136 = smul.addr %s135, 8
          %s137 = scalar_lea.vmem %s0, %s136
          // Predicated region
          $region29: #{cnn_forward.3} parent=27 // pred_check
            _
          $region30: #{cnn_forward.3} parent=27 // pred_check_branch
            %139 = sbr.rel (0) target = $region32
          $region31: #{cnn_forward.3} parent=27 // pred_region
            // Predicated region
            $region33: #{cnn_forward.3} parent=31 // pred_check
              _
            $region34: #{cnn_forward.3} parent=31 // pred_check_branch
              %141 = sbr.rel (0) target = $region36
            $region35: #{cnn_forward.3} parent=31 // pred_region
              loop: start=0, step=1, limit=1
              $region37: #{cnn_forward.3} parent=35 // loop_pre_header
                _
              $region38: #{cnn_forward.3} parent=35 // loop_header
                %s143 = sphi 0, %s147
                %p144 = scmp.ge.s32.totalorder %s143, 1
                %s148 = sphi %s137, %s137
                %s149 = sphi %s134, %s134
              $region39: #{cnn_forward.3} parent=35 // loop_header_branch
                %146 = sbr.rel (%p144) target = $region43
              $region40: #{cnn_forward.3} parent=35 // loop_body
                %v150 = vld [vmem:[%s148] sm:$0xff]
                %151 = vst [vmem:[%s149] sm:$0xff] %v150
                %v152 = vld [vmem:[%s148 + $0x8] sm:$0xff]
                %153 = vst [vmem:[%s149 + $0x8] sm:$0xff] %v152
                %v154 = vld [vmem:[%s148 + $0x10] sm:$0xff]
                %155 = vst [vmem:[%s149 + $0x10] sm:$0xff] %v154
                %v156 = vld [vmem:[%s148 + $0x18] sm:$0xff]
                %157 = vst [vmem:[%s149 + $0x18] sm:$0xff] %v156
                %v158 = vld [vmem:[%s148 + $0x80] sm:$0xff]
                %159 = vst [vmem:[%s149 + $0x20] sm:$0xff] %v158
                %v160 = vld [vmem:[%s148 + $0x88] sm:$0xff]
                %161 = vst [vmem:[%s149 + $0x28] sm:$0xff] %v160
                %v162 = vld [vmem:[%s148 + $0x90] sm:$0xff]
                %163 = vst [vmem:[%s149 + $0x30] sm:$0xff] %v162
                %v164 = vld [vmem:[%s148 + $0x98] sm:$0xff]
                %165 = vst [vmem:[%s149 + $0x38] sm:$0xff] %v164
                %v166 = vld [vmem:[%s148 + $0x100] sm:$0xff]
                %167 = vst [vmem:[%s149 + $0x40] sm:$0xff] %v166
                %v168 = vld [vmem:[%s148 + $0x108] sm:$0xff]
                %169 = vst [vmem:[%s149 + $0x48] sm:$0xff] %v168
                %v170 = vld [vmem:[%s148 + $0x110] sm:$0xff]
                %171 = vst [vmem:[%s149 + $0x50] sm:$0xff] %v170
                %v172 = vld [vmem:[%s148 + $0x118] sm:$0xff]
                %173 = vst [vmem:[%s149 + $0x58] sm:$0xff] %v172
                %v174 = vld [vmem:[%s148 + $0x180] sm:$0xff]
                %175 = vst [vmem:[%s149 + $0x60] sm:$0xff] %v174
                %v176 = vld [vmem:[%s148 + $0x188] sm:$0xff]
                %177 = vst [vmem:[%s149 + $0x68] sm:$0xff] %v176
                %v178 = vld [vmem:[%s148 + $0x190] sm:$0xff]
                %179 = vst [vmem:[%s149 + $0x70] sm:$0xff] %v178
                %v180 = vld [vmem:[%s148 + $0x198] sm:$0xff]
                %181 = vst [vmem:[%s149 + $0x78] sm:$0xff] %v180
                %v182 = vld [vmem:[%s148 + $0x200] sm:$0xff]
                %183 = vst [vmem:[%s149 + $0x80] sm:$0xff] %v182
                %v184 = vld [vmem:[%s148 + $0x208] sm:$0xff]
                %185 = vst [vmem:[%s149 + $0x88] sm:$0xff] %v184
                %v186 = vld [vmem:[%s148 + $0x210] sm:$0xff]
                %187 = vst [vmem:[%s149 + $0x90] sm:$0xff] %v186
                %v188 = vld [vmem:[%s148 + $0x218] sm:$0xff]
                %189 = vst [vmem:[%s149 + $0x98] sm:$0xff] %v188
                %v190 = vld [vmem:[%s148 + $0x280] sm:$0xff]
                %191 = vst [vmem:[%s149 + $0xa0] sm:$0xff] %v190
                %v192 = vld [vmem:[%s148 + $0x288] sm:$0xff]
                %193 = vst [vmem:[%s149 + $0xa8] sm:$0xff] %v192
                %v194 = vld [vmem:[%s148 + $0x290] sm:$0xff]
                %195 = vst [vmem:[%s149 + $0xb0] sm:$0xff] %v194
                %v196 = vld [vmem:[%s148 + $0x298] sm:$0xff]
                %197 = vst [vmem:[%s149 + $0xb8] sm:$0xff] %v196
                %v198 = vld [vmem:[%s148 + $0x300] sm:$0xff]
                %199 = vst [vmem:[%s149 + $0xc0] sm:$0xff] %v198
                %v200 = vld [vmem:[%s148 + $0x308] sm:$0xff]
                %201 = vst [vmem:[%s149 + $0xc8] sm:$0xff] %v200
                %v202 = vld [vmem:[%s148 + $0x310] sm:$0xff]
                %203 = vst [vmem:[%s149 + $0xd0] sm:$0xff] %v202
                %v204 = vld [vmem:[%s148 + $0x318] sm:$0xff]
                %205 = vst [vmem:[%s149 + $0xd8] sm:$0xff] %v204
                %v206 = vld [vmem:[%s148 + $0x380] sm:$0xff]
                %207 = vst [vmem:[%s149 + $0xe0] sm:$0xff] %v206
                %v208 = vld [vmem:[%s148 + $0x388] sm:$0xff]
                %209 = vst [vmem:[%s149 + $0xe8] sm:$0xff] %v208
                %v210 = vld [vmem:[%s148 + $0x390] sm:$0xff]
                %211 = vst [vmem:[%s149 + $0xf0] sm:$0xff] %v210
                %v212 = vld [vmem:[%s148 + $0x398] sm:$0xff]
                %213 = vst [vmem:[%s149 + $0xf8] sm:$0xff] %v212
                %v214 = vld [vmem:[%s148 + $0x400] sm:$0xff]
                %215 = vst [vmem:[%s149 + $0x100] sm:$0xff] %v214
                %v216 = vld [vmem:[%s148 + $0x408] sm:$0xff]
                %217 = vst [vmem:[%s149 + $0x108] sm:$0xff] %v216
                %v218 = vld [vmem:[%s148 + $0x410] sm:$0xff]
                %219 = vst [vmem:[%s149 + $0x110] sm:$0xff] %v218
                %v220 = vld [vmem:[%s148 + $0x418] sm:$0xff]
                %221 = vst [vmem:[%s149 + $0x118] sm:$0xff] %v220
                %v222 = vld [vmem:[%s148 + $0x480] sm:$0xff]
                %223 = vst [vmem:[%s149 + $0x120] sm:$0xff] %v222
                %v224 = vld [vmem:[%s148 + $0x488] sm:$0xff]
                %225 = vst [vmem:[%s149 + $0x128] sm:$0xff] %v224
                %v226 = vld [vmem:[%s148 + $0x490] sm:$0xff]
                %227 = vst [vmem:[%s149 + $0x130] sm:$0xff] %v226
                %v228 = vld [vmem:[%s148 + $0x498] sm:$0xff]
                %229 = vst [vmem:[%s149 + $0x138] sm:$0xff] %v228
                %v230 = vld [vmem:[%s148 + $0x500] sm:$0xff]
                %231 = vst [vmem:[%s149 + $0x140] sm:$0xff] %v230
                %v232 = vld [vmem:[%s148 + $0x508] sm:$0xff]
                %233 = vst [vmem:[%s149 + $0x148] sm:$0xff] %v232
                %v234 = vld [vmem:[%s148 + $0x510] sm:$0xff]
                %235 = vst [vmem:[%s149 + $0x150] sm:$0xff] %v234
                %v236 = vld [vmem:[%s148 + $0x518] sm:$0xff]
                %237 = vst [vmem:[%s149 + $0x158] sm:$0xff] %v236
                %v238 = vld [vmem:[%s148 + $0x580] sm:$0xff]
                %239 = vst [vmem:[%s149 + $0x160] sm:$0xff] %v238
                %v240 = vld [vmem:[%s148 + $0x588] sm:$0xff]
                %241 = vst [vmem:[%s149 + $0x168] sm:$0xff] %v240
                %v242 = vld [vmem:[%s148 + $0x590] sm:$0xff]
                %243 = vst [vmem:[%s149 + $0x170] sm:$0xff] %v242
                %v244 = vld [vmem:[%s148 + $0x598] sm:$0xff]
                %245 = vst [vmem:[%s149 + $0x178] sm:$0xff] %v244
                %v246 = vld [vmem:[%s148 + $0x600] sm:$0xff]
                %247 = vst [vmem:[%s149 + $0x180] sm:$0xff] %v246
                %v248 = vld [vmem:[%s148 + $0x608] sm:$0xff]
                %249 = vst [vmem:[%s149 + $0x188] sm:$0xff] %v248
                %v250 = vld [vmem:[%s148 + $0x610] sm:$0xff]
                %251 = vst [vmem:[%s149 + $0x190] sm:$0xff] %v250
                %v252 = vld [vmem:[%s148 + $0x618] sm:$0xff]
                %253 = vst [vmem:[%s149 + $0x198] sm:$0xff] %v252
                %v254 = vld [vmem:[%s148 + $0x680] sm:$0xff]
                %255 = vst [vmem:[%s149 + $0x1a0] sm:$0xff] %v254
                %v256 = vld [vmem:[%s148 + $0x688] sm:$0xff]
                %257 = vst [vmem:[%s149 + $0x1a8] sm:$0xff] %v256
                %v258 = vld [vmem:[%s148 + $0x690] sm:$0xff]
                %259 = vst [vmem:[%s149 + $0x1b0] sm:$0xff] %v258
                %v260 = vld [vmem:[%s148 + $0x698] sm:$0xff]
                %261 = vst [vmem:[%s149 + $0x1b8] sm:$0xff] %v260
                %v262 = vld [vmem:[%s148 + $0x700] sm:$0xff]
                %263 = vst [vmem:[%s149 + $0x1c0] sm:$0xff] %v262
                %v264 = vld [vmem:[%s148 + $0x708] sm:$0xff]
                %265 = vst [vmem:[%s149 + $0x1c8] sm:$0xff] %v264
                %v266 = vld [vmem:[%s148 + $0x710] sm:$0xff]
                %267 = vst [vmem:[%s149 + $0x1d0] sm:$0xff] %v266
                %v268 = vld [vmem:[%s148 + $0x718] sm:$0xff]
                %269 = vst [vmem:[%s149 + $0x1d8] sm:$0xff] %v268
                %v270 = vld [vmem:[%s148 + $0x780] sm:$0xff]
                %271 = vst [vmem:[%s149 + $0x1e0] sm:$0xff] %v270
                %v272 = vld [vmem:[%s148 + $0x788] sm:$0xff]
                %273 = vst [vmem:[%s149 + $0x1e8] sm:$0xff] %v272
                %v274 = vld [vmem:[%s148 + $0x790] sm:$0xff]
                %275 = vst [vmem:[%s149 + $0x1f0] sm:$0xff] %v274
                %v276 = vld [vmem:[%s148 + $0x798] sm:$0xff]
                %277 = vst [vmem:[%s149 + $0x1f8] sm:$0xff] %v276
              $region41: #{cnn_forward.3} parent=35 // loop_footer
                %s147 = sadd.s32 1, %s143
              $region42: #{cnn_forward.3} parent=35 // loop_footer_branch
                %142 = sbr.rel target = $region38
              $region43: #{cnn_forward.3} parent=35 // loop_exit
                _
            $region36: #{cnn_forward.3} parent=31 // pred_fallthru
              _
            // Predicated region
            $region44: #{cnn_forward.3} parent=31 // pred_check
              _
            $region45: #{cnn_forward.3} parent=31 // pred_check_branch
              %279 = sbr.rel target = $region47
            $region46: #{cnn_forward.3} parent=31 // pred_region
              _
            $region47: #{cnn_forward.3} parent=31 // pred_fallthru
              _
          $region32: #{cnn_forward.3} parent=27 // pred_fallthru
            _
          %280 = vnop
        $region28: #{cnn_forward.3} parent=23 // pred_fallthru
          _
      $region24: #{cnn_forward.3} parent=5 // pred_fallthru
        _
      %p281 = scmp.le.s32.totalorder 1, %s9
      %p282 = scmp.lt.s32.totalorder %s9, 5
      %p283 = pnand %p281, %p282
      %p284 = pneg %p283
      // Predicated region
      $region48: #{cnn_forward.3} parent=5 // pred_check
        _
      $region49: #{cnn_forward.3} parent=5 // pred_check_branch
        %286 = sbr.rel (%p283) target = $region51
      $region50: #{cnn_forward.3} parent=5 // pred_region
        %s287 = ssub.s32 %s9, 1
        %s288 = sand.u32 %s22, 1
        %s289 = sand.u32 %s22, 1
        %s290 = smul.addr %s289, 512
        %s291 = scalar_lea.vmem [#allocation2], %s290
        // Predicated region
        $region52: #{cnn_forward.3} parent=50 // pred_check
          %p292 = pneg %p35
        $region53: #{cnn_forward.3} parent=50 // pred_check_branch
          %294 = sbr.rel (%p292) target = $region55
        $region54: #{cnn_forward.3} parent=50 // pred_region
          _
        $region55: #{cnn_forward.3} parent=50 // pred_fallthru
          _
        %s295 = sand.u32 %s22, 1
        %s296 = sand.u32 %s22, 1
        %s297 = smul.addr %s296, 512
        %s298 = scalar_lea.vmem [#allocation2], %s297
        %p299 = pneg %p35
        %p300 = pneg %p32
        %p301 = pneg %p56
        %p302 = pneg %p53
        %p303 = pneg %p77
        %p304 = pneg %p74
        %p305 = pneg %p103
        %p306 = pneg %p100
        %s307 = smul.u32 4, %s14
        %p308 = scmp.lt.s32.totalorder %s307, 15
        %s309 = scalar_select %p308, %s307, 15
        %s310 = smul.addr %s309, 8
        %s311 = scalar_lea.vmem %s3, %s310
        %s312 = smul.u32 4, %s14
        %s313 = smul.u32 4, %s14
        %p314 = scmp.lt.s32.totalorder %s313, 15
        %s315 = scalar_select %p314, %s313, 15
        %s316 = smul.addr %s315, 8
        %s317 = scalar_lea.vmem %s3, %s316
        %s318 = smul.u32 4, %s14
        %v319 = vld [vmem:[%s1] sm:$0xff]
        %v320 = vld [vmem:[%s1 + $0x8] sm:$0xff]
        %v321 = vld [vmem:[%s1 + $0x10] sm:$0xff]
        %v322 = vld [vmem:[%s1 + $0x18] sm:$0xff]
        %v323 = vld [vmem:[%s291] sm:$0xff]
        %v324 = vld [vmem:[%s291 + $0x8] sm:$0xff]
        %v325 = vld [vmem:[%s291 + $0x10] sm:$0xff]
        %v326 = vld [vmem:[%s291 + $0x18] sm:$0xff]
        %v327 = vld [vmem:[%s291 + $0x20] sm:$0xff]
        %v328 = vld [vmem:[%s291 + $0x28] sm:$0xff]
        %v329 = vld [vmem:[%s291 + $0x30] sm:$0xff]
        %v330 = vld [vmem:[%s291 + $0x38] sm:$0xff]
        %v331 = vld [vmem:[%s291 + $0x40] sm:$0xff]
        %v332 = vld [vmem:[%s291 + $0x48] sm:$0xff]
        %v333 = vld [vmem:[%s291 + $0x50] sm:$0xff]
        %v334 = vld [vmem:[%s291 + $0x58] sm:$0xff]
        %v335 = vld [vmem:[%s291 + $0x60] sm:$0xff]
        %v336 = vld [vmem:[%s291 + $0x68] sm:$0xff]
        %v337 = vld [vmem:[%s291 + $0x70] sm:$0xff]
        %v338 = vld [vmem:[%s291 + $0x78] sm:$0xff]
        %v339 = vld [vmem:[%s291 + $0x80] sm:$0xff]
        %v340 = vld [vmem:[%s291 + $0x88] sm:$0xff]
        %v341 = vld [vmem:[%s291 + $0x90] sm:$0xff]
        %v342 = vld [vmem:[%s291 + $0x98] sm:$0xff]
        %v343 = vld [vmem:[%s291 + $0xa0] sm:$0xff]
        %v344 = vld [vmem:[%s291 + $0xa8] sm:$0xff]
        %v345 = vld [vmem:[%s291 + $0xb0] sm:$0xff]
        %v346 = vld [vmem:[%s291 + $0xb8] sm:$0xff]
        %v347 = vld [vmem:[%s291 + $0xc0] sm:$0xff]
        %v348 = vld [vmem:[%s291 + $0xc8] sm:$0xff]
        %v349 = vld [vmem:[%s291 + $0xd0] sm:$0xff]
        %v350 = vld [vmem:[%s291 + $0xd8] sm:$0xff]
        %v351 = vld [vmem:[%s291 + $0xe0] sm:$0xff]
        %v352 = vld [vmem:[%s291 + $0xe8] sm:$0xff]
        %v353 = vld [vmem:[%s291 + $0xf0] sm:$0xff]
        %v354 = vld [vmem:[%s291 + $0xf8] sm:$0xff]
        %v355 = vld [vmem:[%s291 + $0x100] sm:$0xff]
        %v356 = vld [vmem:[%s291 + $0x108] sm:$0xff]
        %v357 = vld [vmem:[%s291 + $0x110] sm:$0xff]
        %v358 = vld [vmem:[%s291 + $0x118] sm:$0xff]
        %v359 = vld [vmem:[%s291 + $0x120] sm:$0xff]
        %v360 = vld [vmem:[%s291 + $0x128] sm:$0xff]
        %v361 = vld [vmem:[%s291 + $0x130] sm:$0xff]
        %v362 = vld [vmem:[%s291 + $0x138] sm:$0xff]
        %v363 = vld [vmem:[%s291 + $0x140] sm:$0xff]
        %v364 = vld [vmem:[%s291 + $0x148] sm:$0xff]
        %v365 = vld [vmem:[%s291 + $0x150] sm:$0xff]
        %v366 = vld [vmem:[%s291 + $0x158] sm:$0xff]
        %v367 = vld [vmem:[%s291 + $0x160] sm:$0xff]
        %v368 = vld [vmem:[%s291 + $0x168] sm:$0xff]
        %v369 = vld [vmem:[%s291 + $0x170] sm:$0xff]
        %v370 = vld [vmem:[%s291 + $0x178] sm:$0xff]
        %v371 = vld [vmem:[%s291 + $0x180] sm:$0xff]
        %v372 = vld [vmem:[%s291 + $0x188] sm:$0xff]
        %v373 = vld [vmem:[%s291 + $0x190] sm:$0xff]
        %v374 = vld [vmem:[%s291 + $0x198] sm:$0xff]
        %v375 = vld [vmem:[%s291 + $0x1a0] sm:$0xff]
        %v376 = vld [vmem:[%s291 + $0x1a8] sm:$0xff]
        %v377 = vld [vmem:[%s291 + $0x1b0] sm:$0xff]
        %v378 = vld [vmem:[%s291 + $0x1b8] sm:$0xff]
        %v379 = vld [vmem:[%s291 + $0x1c0] sm:$0xff]
        %v380 = vld [vmem:[%s291 + $0x1c8] sm:$0xff]
        %v381 = vld [vmem:[%s291 + $0x1d0] sm:$0xff]
        %v382 = vld [vmem:[%s291 + $0x1d8] sm:$0xff]
        %v383 = vld [vmem:[%s291 + $0x1e0] sm:$0xff]
        %v384 = vld [vmem:[%s291 + $0x1e8] sm:$0xff]
        %v385 = vld [vmem:[%s291 + $0x1f0] sm:$0xff]
        %v386 = vld [vmem:[%s291 + $0x1f8] sm:$0xff]
        %387 = vmatprep.subr.mxu0 %v324
        %388 = vmatpush1.msra.mxu0 %v323
        %389 = vmatprep.subr.mxu0 %v328
        %390 = vmatpush1.msra.mxu0 %v327
        %391 = vmatprep.subr.mxu0 %v332
        %392 = vmatpush1.msra.mxu0 %v331
        %393 = vmatprep.subr.mxu0 %v336
        %394 = vmatpush1.msra.mxu0 %v335
        %395 = vmatprep.subr.mxu0 %v340
        %396 = vmatpush1.msra.mxu0 %v339
        %397 = vmatprep.subr.mxu0 %v344
        %398 = vmatpush1.msra.mxu0 %v343
        %399 = vmatprep.subr.mxu0 %v348
        %400 = vmatpush1.msra.mxu0 %v347
        %401 = vmatprep.subr.mxu0 %v352
        %402 = vmatpush1.msra.mxu0 %v351
        %403 = vmatprep.subr.mxu0 %v356
        %404 = vmatpush1.msra.mxu0 %v355
        %405 = vmatprep.subr.mxu0 %v360
        %406 = vmatpush1.msra.mxu0 %v359
        %407 = vmatprep.subr.mxu0 %v364
        %408 = vmatpush1.msra.mxu0 %v363
        %409 = vmatprep.subr.mxu0 %v368
        %410 = vmatpush1.msra.mxu0 %v367
        %411 = vmatprep.subr.mxu0 %v372
        %412 = vmatpush1.msra.mxu0 %v371
        %413 = vmatprep.subr.mxu0 %v376
        %414 = vmatpush1.msra.mxu0 %v375
        %415 = vmatprep.subr.mxu0 %v380
        %416 = vmatpush1.msra.mxu0 %v379
        %417 = vmatprep.subr.mxu0 %v384
        %418 = vmatpush1.msra.mxu0 %v383
        %419 = vmatprep.subr.mxu0 0.0
        %420 = vmatpush1.msra.mxu0 0.0
        %421 = vmatprep.subr.mxu0 0.0
        %422 = vmatpush1.msra.mxu0 0.0
        %423 = vmatprep.subr.mxu0 0.0
        %424 = vmatpush1.msra.mxu0 0.0
        %425 = vmatprep.subr.mxu0 0.0
        %426 = vmatpush1.msra.mxu0 0.0
        %427 = vmatprep.subr.mxu0 0.0
        %428 = vmatpush1.msra.mxu0 0.0
        %429 = vmatprep.subr.mxu0 0.0
        %430 = vmatpush1.msra.mxu0 0.0
        %431 = vmatprep.subr.mxu0 0.0
        %432 = vmatpush1.msra.mxu0 0.0
        %433 = vmatprep.subr.mxu0 0.0
        %434 = vmatpush1.msra.mxu0 0.0
        %435 = vmatprep.subr.mxu0 0.0
        %436 = vmatpush1.msra.mxu0 0.0
        %437 = vmatprep.subr.mxu0 0.0
        %438 = vmatpush1.msra.mxu0 0.0
        %439 = vmatprep.subr.mxu0 0.0
        %440 = vmatpush1.msra.mxu0 0.0
        %441 = vmatprep.subr.mxu0 0.0
        %442 = vmatpush1.msra.mxu0 0.0
        %443 = vmatprep.subr.mxu0 0.0
        %444 = vmatpush1.msra.mxu0 0.0
        %445 = vmatprep.subr.mxu0 0.0
        %446 = vmatpush1.msra.mxu0 0.0
        %447 = vmatprep.subr.mxu0 0.0
        %448 = vmatpush1.msra.mxu0 0.0
        %449 = vmatprep.subr.mxu0 0.0
        %450 = vmatpush1.msra.mxu0 0.0
        %451 = vmatprep.mubr.f32.mxu0 0.0
        %452 = vmatmul.mubr.f32.gmra.mrb[0].mxu0 %v319
        %v453 = vpop.f32.mrb[0].mxu0
        %v454 = vadd.f32 0.0, %v453
        %v455 = vpop.f32.mrb[0].mxu0
        %v456 = vadd.f32 0.0, %v455
        %457 = vmatprep.mubr.f32.mxu0 0.0
        %458 = vmatmul.mubr.f32.gmra.mrb[0].mxu0 %v320
        %v459 = vpop.f32.mrb[0].mxu0
        %v460 = vadd.f32 0.0, %v459
        %v461 = vpop.f32.mrb[0].mxu0
        %v462 = vadd.f32 0.0, %v461
        %463 = vmatprep.mubr.f32.mxu0 0.0
        %464 = vmatmul.mubr.f32.gmra.mrb[0].mxu0 %v321
        %v465 = vpop.f32.mrb[0].mxu0
        %v466 = vadd.f32 0.0, %v465
        %v467 = vpop.f32.mrb[0].mxu0
        %v468 = vadd.f32 0.0, %v467
        %469 = vmatprep.mubr.f32.mxu0 0.0
        %470 = vmatmul.mubr.f32.gmra.mrb[0].mxu0 %v322
        %v471 = vpop.f32.mrb[0].mxu0
        %v472 = vadd.f32 0.0, %v471
        %v473 = vpop.f32.mrb[0].mxu0
        %v474 = vadd.f32 0.0, %v473
        %475 = vdwg.mxu0
        %476 = vmatprep.subr.mxu0 %v326
        %477 = vmatpush1.msra.mxu0 %v325
        %478 = vmatprep.subr.mxu0 %v330
        %479 = vmatpush1.msra.mxu0 %v329
        %480 = vmatprep.subr.mxu0 %v334
        %481 = vmatpush1.msra.mxu0 %v333
        %482 = vmatprep.subr.mxu0 %v338
        %483 = vmatpush1.msra.mxu0 %v337
        %484 = vmatprep.subr.mxu0 %v342
        %485 = vmatpush1.msra.mxu0 %v341
        %486 = vmatprep.subr.mxu0 %v346
        %487 = vmatpush1.msra.mxu0 %v345
        %488 = vmatprep.subr.mxu0 %v350
        %489 = vmatpush1.msra.mxu0 %v349
        %490 = vmatprep.subr.mxu0 %v354
        %491 = vmatpush1.msra.mxu0 %v353
        %492 = vmatprep.subr.mxu0 %v358
        %493 = vmatpush1.msra.mxu0 %v357
        %494 = vmatprep.subr.mxu0 %v362
        %495 = vmatpush1.msra.mxu0 %v361
        %496 = vmatprep.subr.mxu0 %v366
        %497 = vmatpush1.msra.mxu0 %v365
        %498 = vmatprep.subr.mxu0 %v370
        %499 = vmatpush1.msra.mxu0 %v369
        %500 = vmatprep.subr.mxu0 %v374
        %501 = vmatpush1.msra.mxu0 %v373
        %502 = vmatprep.subr.mxu0 %v378
        %503 = vmatpush1.msra.mxu0 %v377
        %504 = vmatprep.subr.mxu0 %v382
        %505 = vmatpush1.msra.mxu0 %v381
        %506 = vmatprep.subr.mxu0 %v386
        %507 = vmatpush1.msra.mxu0 %v385
        %508 = vmatprep.subr.mxu0 0.0
        %509 = vmatpush1.msra.mxu0 0.0
        %510 = vmatprep.subr.mxu0 0.0
        %511 = vmatpush1.msra.mxu0 0.0
        %512 = vmatprep.subr.mxu0 0.0
        %513 = vmatpush1.msra.mxu0 0.0
        %514 = vmatprep.subr.mxu0 0.0
        %515 = vmatpush1.msra.mxu0 0.0
        %516 = vmatprep.subr.mxu0 0.0
        %517 = vmatpush1.msra.mxu0 0.0
        %518 = vmatprep.subr.mxu0 0.0
        %519 = vmatpush1.msra.mxu0 0.0
        %520 = vmatprep.subr.mxu0 0.0
        %521 = vmatpush1.msra.mxu0 0.0
        %522 = vmatprep.subr.mxu0 0.0
        %523 = vmatpush1.msra.mxu0 0.0
        %524 = vmatprep.subr.mxu0 0.0
        %525 = vmatpush1.msra.mxu0 0.0
        %526 = vmatprep.subr.mxu0 0.0
        %527 = vmatpush1.msra.mxu0 0.0
        %528 = vmatprep.subr.mxu0 0.0
        %529 = vmatpush1.msra.mxu0 0.0
        %530 = vmatprep.subr.mxu0 0.0
        %531 = vmatpush1.msra.mxu0 0.0
        %532 = vmatprep.subr.mxu0 0.0
        %533 = vmatpush1.msra.mxu0 0.0
        %534 = vmatprep.subr.mxu0 0.0
        %535 = vmatpush1.msra.mxu0 0.0
        %536 = vmatprep.subr.mxu0 0.0
        %537 = vmatpush1.msra.mxu0 0.0
        %538 = vmatprep.subr.mxu0 0.0
        %539 = vmatpush1.msra.mxu0 0.0
        %540 = vmatprep.mubr.f32.mxu0 0.0
        %541 = vmatmul.mubr.f32.gmra.mrb[0].mxu0 %v319
        %v542 = vpop.f32.mrb[0].mxu0
        %v543 = vadd.f32 0.0, %v542
        %v544 = vpop.f32.mrb[0].mxu0
        %v545 = vadd.f32 0.0, %v544
        %546 = vmatprep.mubr.f32.mxu0 0.0
        %547 = vmatmul.mubr.f32.gmra.mrb[0].mxu0 %v320
        %v548 = vpop.f32.mrb[0].mxu0
        %v549 = vadd.f32 0.0, %v548
        %v550 = vpop.f32.mrb[0].mxu0
        %v551 = vadd.f32 0.0, %v550
        %552 = vmatprep.mubr.f32.mxu0 0.0
        %553 = vmatmul.mubr.f32.gmra.mrb[0].mxu0 %v321
        %v554 = vpop.f32.mrb[0].mxu0
        %v555 = vadd.f32 0.0, %v554
        %v556 = vpop.f32.mrb[0].mxu0
        %v557 = vadd.f32 0.0, %v556
        %558 = vmatprep.mubr.f32.mxu0 0.0
        %559 = vmatmul.mubr.f32.gmra.mrb[0].mxu0 %v322
        %v560 = vpop.f32.mrb[0].mxu0
        %v561 = vadd.f32 0.0, %v560
        %v562 = vpop.f32.mrb[0].mxu0
        %v563 = vadd.f32 0.0, %v562
        %564 = vdwg.mxu0
        %v565 = vmax.f32 %v454, %v460
        %v566 = vmax.f32 %v456, %v462
        %v567 = vmax.f32 %v543, %v549
        %v568 = vmax.f32 %v545, %v551
        %v569 = vmax.f32 %v466, %v472
        %v570 = vmax.f32 %v468, %v474
        %v571 = vmax.f32 %v555, %v561
        %v572 = vmax.f32 %v557, %v563
        %v573 = vmax.f32 %v565, %v569
        %v574 = vmax.f32 %v566, %v570
        %v575 = vmax.f32 %v567, %v571
        %v576 = vmax.f32 %v568, %v572
        %v577 = vld [vmem:[%s2] sm:$0xff]
        %579 = vset.pattern.permute.xlu0 0
        %580 = vperm.xlu0 %579, %v577
        %v581 = vpop.permute.xlu0 %580
        %v583 = vadd.f32 %v573, %v581
        %v584 = vadd.f32 %v574, %v581
        %v585 = vadd.f32 %v575, %v581
        %v586 = vadd.f32 %v576, %v581
        %v587 = vmax.f32 %v583, 0.0
        %v588 = vmax.f32 %v584, 0.0
        %v589 = vmax.f32 %v585, 0.0
        %v590 = vmax.f32 %v586, 0.0
        %591 = vst [vmem:[%s317] sm:$0xff] %v587
        %592 = vst [vmem:[%s317 + $0x8] sm:$0xff] %v588
        %593 = vst [vmem:[%s317 + $0x10] sm:$0xff] %v589
        %594 = vst [vmem:[%s317 + $0x18] sm:$0xff] %v590
        %s595 = smul.u32 4, %s14
        %p596 = scmp.lt.s32.totalorder %s595, 15
        %s597 = scalar_select %p596, %s595, 15
        %s598 = smul.addr %s597, 8
        %s599 = scalar_lea.vmem %s3, %s598
        // Predicated region
        $region56: #{cnn_forward.3} parent=50 // pred_check
          %p600 = pneg %p100
        $region57: #{cnn_forward.3} parent=50 // pred_check_branch
          %602 = sbr.rel (%p600) target = $region59
        $region58: #{cnn_forward.3} parent=50 // pred_region
          %s603 = smul.u32 4, %s14
        $region59: #{cnn_forward.3} parent=50 // pred_fallthru
          _
      $region51: #{cnn_forward.3} parent=5 // pred_fallthru
        _
      %p604 = scmp.le.s32.totalorder 2, %s9
      // Predicated region
      $region60: #{cnn_forward.3} parent=5 // pred_check
        %p605 = pneg %p604
      $region61: #{cnn_forward.3} parent=5 // pred_check_branch
        %607 = sbr.rel (%p605) target = $region63
      $region62: #{cnn_forward.3} parent=5 // pred_region
        %s608 = ssub.s32 %s9, 2
        // Predicated region
        $region64: #{cnn_forward.3} parent=62 // pred_check
          %p609 = pneg %p106
        $region65: #{cnn_forward.3} parent=62 // pred_check_branch
          %611 = sbr.rel (%p609) target = $region67
        $region66: #{cnn_forward.3} parent=62 // pred_region
          %s612 = smul.u32 4, %s15
          %p613 = scmp.lt.s32.totalorder %s612, 15
          %s614 = scalar_select %p613, %s612, 15
          %s615 = smul.addr %s614, 8
          %s616 = scalar_lea.vmem %s3, %s615
        $region67: #{cnn_forward.3} parent=62 // pred_fallthru
          _
      $region63: #{cnn_forward.3} parent=5 // pred_fallthru
        _
    $region6: #{cnn_forward.3} parent=1 // loop_footer
      %s13 = sadd.s32 1, %s9
    $region7: #{cnn_forward.3} parent=1 // loop_footer_branch
      %8 = sbr.rel target = $region3
    $region8: #{cnn_forward.3} parent=1 // loop_exit
      _

// kernel: cnn_forward.4
$region0: #{cnn_forward.4}
  #allocation0 [shape = 'u32[]', space=smem, size = 0x4, offset = 0x4, fixed_abs, tag = 'smem constant byte address 0x4 - core index']
  #allocation1 [shape = 'u32[144,128]{1,0:T(1,128)}', space=vmem, size = 0x12000, scoped, tag = 'internal scratch']
  %s0 = inlined_call_operand.vmem [shape: f32[416,384], index: 0, kind: input, shape index: {}]
  %s1 = inlined_call_operand.vmem [shape: f32[32,416], index: 1, kind: input, shape index: {}]
  %s2 = inlined_call_operand.vmem [shape: f32[8,1], index: 2, kind: input, shape index: {}]
  %s3 = inlined_call_operand.vmem [shape: f32[8,384], index: 3, kind: output, shape index: {}]
  %s4 = sld [smem:[#allocation0]]
  $region22: #{cnn_forward.4} parent=0
    _
  %s6 = ssub.s32 1, %s4
  %s7 = scalar_select 0, %s6, %s4
  // Predicated region
  $region2: #{cnn_forward.4} parent=0 // pred_check
    _
  $region3: #{cnn_forward.4} parent=0 // pred_check_branch
    %9 = sbr.rel (0) target = $region5
  $region4: #{cnn_forward.4} parent=0 // pred_region
    _
  $region5: #{cnn_forward.4} parent=0 // pred_fallthru
    _
  // Predicated region
  $region6: #{cnn_forward.4} parent=0 // pred_check
    _
  $region7: #{cnn_forward.4} parent=0 // pred_check_branch
    %11 = sbr.rel (0) target = $region9
  $region8: #{cnn_forward.4} parent=0 // pred_region
    _
  $region9: #{cnn_forward.4} parent=0 // pred_fallthru
    _
  // Predicated region
  $region10: #{cnn_forward.4} parent=0 // pred_check
    _
  $region11: #{cnn_forward.4} parent=0 // pred_check_branch
    %13 = sbr.rel (0) target = $region13
  $region12: #{cnn_forward.4} parent=0 // pred_region
    _
  $region13: #{cnn_forward.4} parent=0 // pred_fallthru
    _
  %v14 = vld [vmem:[%s1] sm:$0xff]
  %v15 = vld [vmem:[%s1 + $0x8] sm:$0xff]
  %v16 = vld [vmem:[%s1 + $0x10] sm:$0xff]
  %v17 = vld [vmem:[%s1 + $0x18] sm:$0xff]
  %v18 = vld [vmem:[%s1 + $0x20] sm:$0xff]
  %v19 = vld [vmem:[%s1 + $0x28] sm:$0xff]
  %v20 = vld [vmem:[%s1 + $0x30] sm:$0xff]
  %v21 = vld [vmem:[%s1 + $0x38] sm:$0xff]
  %v22 = vld [vmem:[%s1 + $0x40] sm:$0xff]
  %v23 = vld [vmem:[%s1 + $0x48] sm:$0xff]
  %v24 = vld [vmem:[%s1 + $0x50] sm:$0xff]
  %v25 = vld [vmem:[%s1 + $0x58] sm:$0xff]
  %v26 = vld [vmem:[%s1 + $0x60] sm:$0xff]
  %v27 = vld [vmem:[%s1 + $0x68] sm:$0xff]
  %v28 = vld [vmem:[%s1 + $0x70] sm:$0xff]
  %v29 = vld [vmem:[%s1 + $0x78] sm:$0xff]
  %v30 = vld [vmem:[%s0] sm:$0xff]
  %v31 = vld [vmem:[%s0 + $0x8] sm:$0xff]
  %v32 = vld [vmem:[%s0 + $0x10] sm:$0xff]
  %v33 = vld [vmem:[%s0 + $0x18] sm:$0xff]
  %v34 = vld [vmem:[%s0 + $0x20] sm:$0xff]
  %v35 = vld [vmem:[%s0 + $0x28] sm:$0xff]
  %v36 = vld [vmem:[%s0 + $0x30] sm:$0xff]
  %v37 = vld [vmem:[%s0 + $0x38] sm:$0xff]
  %v38 = vld [vmem:[%s0 + $0x40] sm:$0xff]
  %v39 = vld [vmem:[%s0 + $0x48] sm:$0xff]
  %v40 = vld [vmem:[%s0 + $0x50] sm:$0xff]
  %v41 = vld [vmem:[%s0 + $0x58] sm:$0xff]
  %v42 = vld [vmem:[%s0 + $0x60] sm:$0xff]
  %v43 = vld [vmem:[%s0 + $0x68] sm:$0xff]
  %v44 = vld [vmem:[%s0 + $0x70] sm:$0xff]
  %v45 = vld [vmem:[%s0 + $0x78] sm:$0xff]
  %v46 = vld [vmem:[%s0 + $0x80] sm:$0xff]
  %v47 = vld [vmem:[%s0 + $0x88] sm:$0xff]
  %v48 = vld [vmem:[%s0 + $0x90] sm:$0xff]
  %v49 = vld [vmem:[%s0 + $0x98] sm:$0xff]
  %v50 = vld [vmem:[%s0 + $0xa0] sm:$0xff]
  %v51 = vld [vmem:[%s0 + $0xa8] sm:$0xff]
  %v52 = vld [vmem:[%s0 + $0xb0] sm:$0xff]
  %v53 = vld [vmem:[%s0 + $0xb8] sm:$0xff]
  %v54 = vld [vmem:[%s0 + $0xc0] sm:$0xff]
  %v55 = vld [vmem:[%s0 + $0xc8] sm:$0xff]
  %v56 = vld [vmem:[%s0 + $0xd0] sm:$0xff]
  %v57 = vld [vmem:[%s0 + $0xd8] sm:$0xff]
  %v58 = vld [vmem:[%s0 + $0xe0] sm:$0xff]
  %v59 = vld [vmem:[%s0 + $0xe8] sm:$0xff]
  %v60 = vld [vmem:[%s0 + $0xf0] sm:$0xff]
  %v61 = vld [vmem:[%s0 + $0xf8] sm:$0xff]
  %v62 = vld [vmem:[%s0 + $0x100] sm:$0xff]
  %v63 = vld [vmem:[%s0 + $0x108] sm:$0xff]
  %v64 = vld [vmem:[%s0 + $0x110] sm:$0xff]
  %v65 = vld [vmem:[%s0 + $0x118] sm:$0xff]
  %v66 = vld [vmem:[%s0 + $0x120] sm:$0xff]
  %v67 = vld [vmem:[%s0 + $0x128] sm:$0xff]
  %v68 = vld [vmem:[%s0 + $0x130] sm:$0xff]
  %v69 = vld [vmem:[%s0 + $0x138] sm:$0xff]
  %v70 = vld [vmem:[%s0 + $0x140] sm:$0xff]
  %v71 = vld [vmem:[%s0 + $0x148] sm:$0xff]
  %v72 = vld [vmem:[%s0 + $0x150] sm:$0xff]
  %v73 = vld [vmem:[%s0 + $0x158] sm:$0xff]
  %v74 = vld [vmem:[%s0 + $0x160] sm:$0xff]
  %v75 = vld [vmem:[%s0 + $0x168] sm:$0xff]
  %v76 = vld [vmem:[%s0 + $0x170] sm:$0xff]
  %v77 = vld [vmem:[%s0 + $0x178] sm:$0xff]
  %v78 = vld [vmem:[%s0 + $0x180] sm:$0xff]
  %v79 = vld [vmem:[%s0 + $0x188] sm:$0xff]
  %v80 = vld [vmem:[%s0 + $0x190] sm:$0xff]
  %v81 = vld [vmem:[%s0 + $0x198] sm:$0xff]
  %v82 = vld [vmem:[%s0 + $0x1a0] sm:$0xff]
  %v83 = vld [vmem:[%s0 + $0x1a8] sm:$0xff]
  %v84 = vld [vmem:[%s0 + $0x1b0] sm:$0xff]
  %v85 = vld [vmem:[%s0 + $0x1b8] sm:$0xff]
  %v86 = vld [vmem:[%s0 + $0x1c0] sm:$0xff]
  %v87 = vld [vmem:[%s0 + $0x1c8] sm:$0xff]
  %v88 = vld [vmem:[%s0 + $0x1d0] sm:$0xff]
  %v89 = vld [vmem:[%s0 + $0x1d8] sm:$0xff]
  %v90 = vld [vmem:[%s0 + $0x1e0] sm:$0xff]
  %v91 = vld [vmem:[%s0 + $0x1e8] sm:$0xff]
  %v92 = vld [vmem:[%s0 + $0x1f0] sm:$0xff]
  %v93 = vld [vmem:[%s0 + $0x1f8] sm:$0xff]
  %v94 = vld [vmem:[%s0 + $0x200] sm:$0xff]
  %v95 = vld [vmem:[%s0 + $0x208] sm:$0xff]
  %v96 = vld [vmem:[%s0 + $0x210] sm:$0xff]
  %v97 = vld [vmem:[%s0 + $0x218] sm:$0xff]
  %v98 = vld [vmem:[%s0 + $0x220] sm:$0xff]
  %v99 = vld [vmem:[%s0 + $0x228] sm:$0xff]
  %v100 = vld [vmem:[%s0 + $0x230] sm:$0xff]
  %v101 = vld [vmem:[%s0 + $0x238] sm:$0xff]
  %v102 = vld [vmem:[%s0 + $0x240] sm:$0xff]
  %v103 = vld [vmem:[%s0 + $0x248] sm:$0xff]
  %v104 = vld [vmem:[%s0 + $0x250] sm:$0xff]
  %v105 = vld [vmem:[%s0 + $0x258] sm:$0xff]
  %v106 = vld [vmem:[%s0 + $0x260] sm:$0xff]
  %v107 = vld [vmem:[%s0 + $0x268] sm:$0xff]
  %v108 = vld [vmem:[%s0 + $0x270] sm:$0xff]
  %v109 = vld [vmem:[%s0 + $0x278] sm:$0xff]
  %v110 = vld [vmem:[%s0 + $0x280] sm:$0xff]
  %v111 = vld [vmem:[%s0 + $0x288] sm:$0xff]
  %v112 = vld [vmem:[%s0 + $0x290] sm:$0xff]
  %v113 = vld [vmem:[%s0 + $0x298] sm:$0xff]
  %v114 = vld [vmem:[%s0 + $0x2a0] sm:$0xff]
  %v115 = vld [vmem:[%s0 + $0x2a8] sm:$0xff]
  %v116 = vld [vmem:[%s0 + $0x2b0] sm:$0xff]
  %v117 = vld [vmem:[%s0 + $0x2b8] sm:$0xff]
  %v118 = vld [vmem:[%s0 + $0x2c0] sm:$0xff]
  %v119 = vld [vmem:[%s0 + $0x2c8] sm:$0xff]
  %v120 = vld [vmem:[%s0 + $0x2d0] sm:$0xff]
  %v121 = vld [vmem:[%s0 + $0x2d8] sm:$0xff]
  %v122 = vld [vmem:[%s0 + $0x2e0] sm:$0xff]
  %v123 = vld [vmem:[%s0 + $0x2e8] sm:$0xff]
  %v124 = vld [vmem:[%s0 + $0x2f0] sm:$0xff]
  %v125 = vld [vmem:[%s0 + $0x2f8] sm:$0xff]
  %v126 = vld [vmem:[%s0 + $0x300] sm:$0xff]
  %v127 = vld [vmem:[%s0 + $0x308] sm:$0xff]
  %v128 = vld [vmem:[%s0 + $0x310] sm:$0xff]
  %v129 = vld [vmem:[%s0 + $0x318] sm:$0xff]
  %v130 = vld [vmem:[%s0 + $0x320] sm:$0xff]
  %v131 = vld [vmem:[%s0 + $0x328] sm:$0xff]
  %v132 = vld [vmem:[%s0 + $0x330] sm:$0xff]
  %v133 = vld [vmem:[%s0 + $0x338] sm:$0xff]
  %v134 = vld [vmem:[%s0 + $0x340] sm:$0xff]
  %v135 = vld [vmem:[%s0 + $0x348] sm:$0xff]
  %v136 = vld [vmem:[%s0 + $0x350] sm:$0xff]
  %v137 = vld [vmem:[%s0 + $0x358] sm:$0xff]
  %v138 = vld [vmem:[%s0 + $0x360] sm:$0xff]
  %v139 = vld [vmem:[%s0 + $0x368] sm:$0xff]
  %v140 = vld [vmem:[%s0 + $0x370] sm:$0xff]
  %v141 = vld [vmem:[%s0 + $0x378] sm:$0xff]
  %v142 = vld [vmem:[%s0 + $0x380] sm:$0xff]
  %v143 = vld [vmem:[%s0 + $0x388] sm:$0xff]
  %v144 = vld [vmem:[%s0 + $0x390] sm:$0xff]
  %v145 = vld [vmem:[%s0 + $0x398] sm:$0xff]
  %v146 = vld [vmem:[%s0 + $0x3a0] sm:$0xff]
  %v147 = vld [vmem:[%s0 + $0x3a8] sm:$0xff]
  %v148 = vld [vmem:[%s0 + $0x3b0] sm:$0xff]
  %v149 = vld [vmem:[%s0 + $0x3b8] sm:$0xff]
  %v150 = vld [vmem:[%s0 + $0x3c0] sm:$0xff]
  %v151 = vld [vmem:[%s0 + $0x3c8] sm:$0xff]
  %v152 = vld [vmem:[%s0 + $0x3d0] sm:$0xff]
  %v153 = vld [vmem:[%s0 + $0x3d8] sm:$0xff]
  %v154 = vld [vmem:[%s0 + $0x3e0] sm:$0xff]
  %v155 = vld [vmem:[%s0 + $0x3e8] sm:$0xff]
  %v156 = vld [vmem:[%s0 + $0x3f0] sm:$0xff]
  %v157 = vld [vmem:[%s0 + $0x3f8] sm:$0xff]
  %v158 = vld [vmem:[%s0 + $0x400] sm:$0xff]
  %v159 = vld [vmem:[%s0 + $0x408] sm:$0xff]
  %v160 = vld [vmem:[%s0 + $0x410] sm:$0xff]
  %v161 = vld [vmem:[%s0 + $0x418] sm:$0xff]
  %v162 = vld [vmem:[%s0 + $0x420] sm:$0xff]
  %v163 = vld [vmem:[%s0 + $0x428] sm:$0xff]
  %v164 = vld [vmem:[%s0 + $0x430] sm:$0xff]
  %v165 = vld [vmem:[%s0 + $0x438] sm:$0xff]
  %v166 = vld [vmem:[%s0 + $0x440] sm:$0xff]
  %v167 = vld [vmem:[%s0 + $0x448] sm:$0xff]
  %v168 = vld [vmem:[%s0 + $0x450] sm:$0xff]
  %v169 = vld [vmem:[%s0 + $0x458] sm:$0xff]
  %v170 = vld [vmem:[%s0 + $0x460] sm:$0xff]
  %v171 = vld [vmem:[%s0 + $0x468] sm:$0xff]
  %v172 = vld [vmem:[%s0 + $0x470] sm:$0xff]
  %v173 = vld [vmem:[%s0 + $0x478] sm:$0xff]
  %v174 = vld [vmem:[%s0 + $0x480] sm:$0xff]
  %v175 = vld [vmem:[%s0 + $0x488] sm:$0xff]
  %v176 = vld [vmem:[%s0 + $0x490] sm:$0xff]
  %v177 = vld [vmem:[%s0 + $0x498] sm:$0xff]
  %v178 = vld [vmem:[%s0 + $0x4a0] sm:$0xff]
  %v179 = vld [vmem:[%s0 + $0x4a8] sm:$0xff]
  %v180 = vld [vmem:[%s0 + $0x4b0] sm:$0xff]
  %v181 = vld [vmem:[%s0 + $0x4b8] sm:$0xff]
  %v182 = vld [vmem:[%s0 + $0x4c0] sm:$0xff]
  %v183 = vld [vmem:[%s0 + $0x4c8] sm:$0xff]
  %v184 = vld [vmem:[%s0 + $0x4d0] sm:$0xff]
  %v185 = vld [vmem:[%s0 + $0x4d8] sm:$0xff]
  %vm186 = vcmask 261120
  %v188 = vsel %vm186, %v17, 0
  %v191 = vsel %vm186, %v21, 0
  %v194 = vsel %vm186, %v25, 0
  %v197 = vsel %vm186, %v29, 0
  %199 = vmatprep.subr.mxu0 %v31
  %200 = vmatpush1.msra.mxu0 %v30
  %201 = vmatprep.subr.mxu0 %v34
  %202 = vmatpush1.msra.mxu0 %v33
  %203 = vmatprep.subr.mxu0 %v37
  %204 = vmatpush1.msra.mxu0 %v36
  %205 = vmatprep.subr.mxu0 %v40
  %206 = vmatpush1.msra.mxu0 %v39
  %207 = vmatprep.subr.mxu0 %v43
  %208 = vmatpush1.msra.mxu0 %v42
  %209 = vmatprep.subr.mxu0 %v46
  %210 = vmatpush1.msra.mxu0 %v45
  %211 = vmatprep.subr.mxu0 %v49
  %212 = vmatpush1.msra.mxu0 %v48
  %213 = vmatprep.subr.mxu0 %v52
  %214 = vmatpush1.msra.mxu0 %v51
  %215 = vmatprep.subr.mxu0 %v55
  %216 = vmatpush1.msra.mxu0 %v54
  %217 = vmatprep.subr.mxu0 %v58
  %218 = vmatpush1.msra.mxu0 %v57
  %219 = vmatprep.subr.mxu0 %v61
  %220 = vmatpush1.msra.mxu0 %v60
  %221 = vmatprep.subr.mxu0 %v64
  %222 = vmatpush1.msra.mxu0 %v63
  %223 = vmatprep.subr.mxu0 %v67
  %224 = vmatpush1.msra.mxu0 %v66
  %225 = vmatprep.subr.mxu0 %v70
  %226 = vmatpush1.msra.mxu0 %v69
  %227 = vmatprep.subr.mxu0 %v73
  %228 = vmatpush1.msra.mxu0 %v72
  %229 = vmatprep.subr.mxu0 %v76
  %230 = vmatpush1.msra.mxu0 %v75
  %231 = vmatprep.subr.mxu0 %v79
  %232 = vmatpush1.msra.mxu0 %v78
  %233 = vmatprep.subr.mxu0 %v82
  %234 = vmatpush1.msra.mxu0 %v81
  %235 = vmatprep.subr.mxu0 %v85
  %236 = vmatpush1.msra.mxu0 %v84
  %237 = vmatprep.subr.mxu0 %v88
  %238 = vmatpush1.msra.mxu0 %v87
  %239 = vmatprep.subr.mxu0 %v91
  %240 = vmatpush1.msra.mxu0 %v90
  %241 = vmatprep.subr.mxu0 %v94
  %242 = vmatpush1.msra.mxu0 %v93
  %243 = vmatprep.subr.mxu0 %v97
  %244 = vmatpush1.msra.mxu0 %v96
  %245 = vmatprep.subr.mxu0 %v100
  %246 = vmatpush1.msra.mxu0 %v99
  %247 = vmatprep.subr.mxu0 %v103
  %248 = vmatpush1.msra.mxu0 %v102
  %249 = vmatprep.subr.mxu0 %v106
  %250 = vmatpush1.msra.mxu0 %v105
  %251 = vmatprep.subr.mxu0 %v109
  %252 = vmatpush1.msra.mxu0 %v108
  %253 = vmatprep.subr.mxu0 %v112
  %254 = vmatpush1.msra.mxu0 %v111
  %255 = vmatprep.subr.mxu0 %v115
  %256 = vmatpush1.msra.mxu0 %v114
  %257 = vmatprep.subr.mxu0 %v118
  %258 = vmatpush1.msra.mxu0 %v117
  %259 = vmatprep.subr.mxu0 %v121
  %260 = vmatpush1.msra.mxu0 %v120
  %261 = vmatprep.subr.mxu0 %v124
  %262 = vmatpush1.msra.mxu0 %v123
  %263 = vmatprep.mubr.f32.mxu0 %v15
  %264 = vmatmul.mubr.f32.gmra.mrb[0].mxu0 %v14
  %v265 = vpop.f32.mrb[0].mxu0
  %v266 = vadd.f32 0.0, %v265
  %v267 = vpop.f32.mrb[0].mxu0
  %v268 = vadd.f32 0.0, %v267
  %269 = vmatprep.mubr.f32.mxu0 %v19
  %270 = vmatmul.mubr.f32.gmra.mrb[0].mxu0 %v18
  %v271 = vpop.f32.mrb[0].mxu0
  %v272 = vadd.f32 0.0, %v271
  %v273 = vpop.f32.mrb[0].mxu0
  %v274 = vadd.f32 0.0, %v273
  %275 = vmatprep.mubr.f32.mxu0 %v23
  %276 = vmatmul.mubr.f32.gmra.mrb[0].mxu0 %v22
  %v277 = vpop.f32.mrb[0].mxu0
  %v278 = vadd.f32 0.0, %v277
  %v279 = vpop.f32.mrb[0].mxu0
  %v280 = vadd.f32 0.0, %v279
  %281 = vmatprep.mubr.f32.mxu0 %v27
  %282 = vmatmul.mubr.f32.gmra.mrb[0].mxu0 %v26
  %v283 = vpop.f32.mrb[0].mxu0
  %v284 = vadd.f32 0.0, %v283
  %v285 = vpop.f32.mrb[0].mxu0
  %v286 = vadd.f32 0.0, %v285
  %287 = vdwg.mxu0
  %288 = vmatprep.subr.mxu0 %v127
  %289 = vmatpush1.msra.mxu0 %v126
  %290 = vmatprep.subr.mxu0 %v130
  %291 = vmatpush1.msra.mxu0 %v129
  %292 = vmatprep.subr.mxu0 %v133
  %293 = vmatpush1.msra.mxu0 %v132
  %294 = vmatprep.subr.mxu0 %v136
  %295 = vmatpush1.msra.mxu0 %v135
  %296 = vmatprep.subr.mxu0 %v139
  %297 = vmatpush1.msra.mxu0 %v138
  %298 = vmatprep.subr.mxu0 %v142
  %299 = vmatpush1.msra.mxu0 %v141
  %300 = vmatprep.subr.mxu0 %v145
  %301 = vmatpush1.msra.mxu0 %v144
  %302 = vmatprep.subr.mxu0 %v148
  %303 = vmatpush1.msra.mxu0 %v147
  %304 = vmatprep.subr.mxu0 %v151
  %305 = vmatpush1.msra.mxu0 %v150
  %306 = vmatprep.subr.mxu0 %v154
  %307 = vmatpush1.msra.mxu0 %v153
  %308 = vmatprep.subr.mxu0 %v157
  %309 = vmatpush1.msra.mxu0 %v156
  %310 = vmatprep.subr.mxu0 %v160
  %311 = vmatpush1.msra.mxu0 %v159
  %312 = vmatprep.subr.mxu0 %v163
  %313 = vmatpush1.msra.mxu0 %v162
  %314 = vmatprep.subr.mxu0 %v166
  %315 = vmatpush1.msra.mxu0 %v165
  %316 = vmatprep.subr.mxu0 %v169
  %317 = vmatpush1.msra.mxu0 %v168
  %318 = vmatprep.subr.mxu0 %v172
  %319 = vmatpush1.msra.mxu0 %v171
  %320 = vmatprep.subr.mxu0 %v175
  %321 = vmatpush1.msra.mxu0 %v174
  %322 = vmatprep.subr.mxu0 %v178
  %323 = vmatpush1.msra.mxu0 %v177
  %324 = vmatprep.subr.mxu0 %v181
  %325 = vmatpush1.msra.mxu0 %v180
  %326 = vmatprep.subr.mxu0 %v184
  %327 = vmatpush1.msra.mxu0 %v183
  %328 = vmatprep.subr.mxu0 0.0
  %329 = vmatpush1.msra.mxu0 0.0
  %330 = vmatprep.subr.mxu0 0.0
  %331 = vmatpush1.msra.mxu0 0.0
  %332 = vmatprep.subr.mxu0 0.0
  %333 = vmatpush1.msra.mxu0 0.0
  %334 = vmatprep.subr.mxu0 0.0
  %335 = vmatpush1.msra.mxu0 0.0
  %336 = vmatprep.subr.mxu0 0.0
  %337 = vmatpush1.msra.mxu0 0.0
  %338 = vmatprep.subr.mxu0 0.0
  %339 = vmatpush1.msra.mxu0 0.0
  %340 = vmatprep.subr.mxu0 0.0
  %341 = vmatpush1.msra.mxu0 0.0
  %342 = vmatprep.subr.mxu0 0.0
  %343 = vmatpush1.msra.mxu0 0.0
  %344 = vmatprep.subr.mxu0 0.0
  %345 = vmatpush1.msra.mxu0 0.0
  %346 = vmatprep.subr.mxu0 0.0
  %347 = vmatpush1.msra.mxu0 0.0
  %348 = vmatprep.subr.mxu0 0.0
  %349 = vmatpush1.msra.mxu0 0.0
  %350 = vmatprep.subr.mxu0 0.0
  %351 = vmatpush1.msra.mxu0 0.0
  %352 = vmatprep.mubr.f32.mxu0 %v188
  %353 = vmatmul.mubr.f32.gmra.mrb[0].mxu0 %v16
  %v354 = vpop.f32.mrb[0].mxu0
  %v355 = vadd.f32 %v266, %v354
  %v356 = vpop.f32.mrb[0].mxu0
  %v357 = vadd.f32 %v268, %v356
  %358 = vmatprep.mubr.f32.mxu0 %v191
  %359 = vmatmul.mubr.f32.gmra.mrb[0].mxu0 %v20
  %v360 = vpop.f32.mrb[0].mxu0
  %v361 = vadd.f32 %v272, %v360
  %v362 = vpop.f32.mrb[0].mxu0
  %v363 = vadd.f32 %v274, %v362
  %364 = vmatprep.mubr.f32.mxu0 %v194
  %365 = vmatmul.mubr.f32.gmra.mrb[0].mxu0 %v24
  %v366 = vpop.f32.mrb[0].mxu0
  %v367 = vadd.f32 %v278, %v366
  %v368 = vpop.f32.mrb[0].mxu0
  %v369 = vadd.f32 %v280, %v368
  %370 = vmatprep.mubr.f32.mxu0 %v197
  %371 = vmatmul.mubr.f32.gmra.mrb[0].mxu0 %v28
  %v372 = vpop.f32.mrb[0].mxu0
  %v373 = vadd.f32 %v284, %v372
  %v374 = vpop.f32.mrb[0].mxu0
  %v375 = vadd.f32 %v286, %v374
  %376 = vdwg.mxu0
  %377 = vmatprep.subr.mxu0 0.0
  %378 = vmatpush1.msra.mxu0 %v32
  %379 = vmatprep.subr.mxu0 0.0
  %380 = vmatpush1.msra.mxu0 %v35
  %381 = vmatprep.subr.mxu0 0.0
  %382 = vmatpush1.msra.mxu0 %v38
  %383 = vmatprep.subr.mxu0 0.0
  %384 = vmatpush1.msra.mxu0 %v41
  %385 = vmatprep.subr.mxu0 0.0
  %386 = vmatpush1.msra.mxu0 %v44
  %387 = vmatprep.subr.mxu0 0.0
  %388 = vmatpush1.msra.mxu0 %v47
  %389 = vmatprep.subr.mxu0 0.0
  %390 = vmatpush1.msra.mxu0 %v50
  %391 = vmatprep.subr.mxu0 0.0
  %392 = vmatpush1.msra.mxu0 %v53
  %393 = vmatprep.subr.mxu0 0.0
  %394 = vmatpush1.msra.mxu0 %v56
  %395 = vmatprep.subr.mxu0 0.0
  %396 = vmatpush1.msra.mxu0 %v59
  %397 = vmatprep.subr.mxu0 0.0
  %398 = vmatpush1.msra.mxu0 %v62
  %399 = vmatprep.subr.mxu0 0.0
  %400 = vmatpush1.msra.mxu0 %v65
  %401 = vmatprep.subr.mxu0 0.0
  %402 = vmatpush1.msra.mxu0 %v68
  %403 = vmatprep.subr.mxu0 0.0
  %404 = vmatpush1.msra.mxu0 %v71
  %405 = vmatprep.subr.mxu0 0.0
  %406 = vmatpush1.msra.mxu0 %v74
  %407 = vmatprep.subr.mxu0 0.0
  %408 = vmatpush1.msra.mxu0 %v77
  %409 = vmatprep.subr.mxu0 0.0
  %410 = vmatpush1.msra.mxu0 %v80
  %411 = vmatprep.subr.mxu0 0.0
  %412 = vmatpush1.msra.mxu0 %v83
  %413 = vmatprep.subr.mxu0 0.0
  %414 = vmatpush1.msra.mxu0 %v86
  %415 = vmatprep.subr.mxu0 0.0
  %416 = vmatpush1.msra.mxu0 %v89
  %417 = vmatprep.subr.mxu0 0.0
  %418 = vmatpush1.msra.mxu0 %v92
  %419 = vmatprep.subr.mxu0 0.0
  %420 = vmatpush1.msra.mxu0 %v95
  %421 = vmatprep.subr.mxu0 0.0
  %422 = vmatpush1.msra.mxu0 %v98
  %423 = vmatprep.subr.mxu0 0.0
  %424 = vmatpush1.msra.mxu0 %v101
  %425 = vmatprep.subr.mxu0 0.0
  %426 = vmatpush1.msra.mxu0 %v104
  %427 = vmatprep.subr.mxu0 0.0
  %428 = vmatpush1.msra.mxu0 %v107
  %429 = vmatprep.subr.mxu0 0.0
  %430 = vmatpush1.msra.mxu0 %v110
  %431 = vmatprep.subr.mxu0 0.0
  %432 = vmatpush1.msra.mxu0 %v113
  %433 = vmatprep.subr.mxu0 0.0
  %434 = vmatpush1.msra.mxu0 %v116
  %435 = vmatprep.subr.mxu0 0.0
  %436 = vmatpush1.msra.mxu0 %v119
  %437 = vmatprep.subr.mxu0 0.0
  %438 = vmatpush1.msra.mxu0 %v122
  %439 = vmatprep.subr.mxu0 0.0
  %440 = vmatpush1.msra.mxu0 %v125
  %441 = vmatprep.mubr.f32.mxu0 %v15
  %442 = vmatmul.mubr.f32.gmra.mrb[0].mxu0 %v14
  %v443 = vpop.f32.mrb[0].mxu0
  %v444 = vadd.f32 0.0, %v443
  %v445 = vpop.f32.mrb[0].mxu0
  %446 = vmatprep.mubr.f32.mxu0 %v19
  %447 = vmatmul.mubr.f32.gmra.mrb[0].mxu0 %v18
  %v448 = vpop.f32.mrb[0].mxu0
  %v449 = vadd.f32 0.0, %v448
  %v450 = vpop.f32.mrb[0].mxu0
  %451 = vmatprep.mubr.f32.mxu0 %v23
  %452 = vmatmul.mubr.f32.gmra.mrb[0].mxu0 %v22
  %v453 = vpop.f32.mrb[0].mxu0
  %v454 = vadd.f32 0.0, %v453
  %v455 = vpop.f32.mrb[0].mxu0
  %456 = vmatprep.mubr.f32.mxu0 %v27
  %457 = vmatmul.mubr.f32.gmra.mrb[0].mxu0 %v26
  %v458 = vpop.f32.mrb[0].mxu0
  %v459 = vadd.f32 0.0, %v458
  %v460 = vpop.f32.mrb[0].mxu0
  %461 = vdwg.mxu0
  %462 = vmatprep.subr.mxu0 0.0
  %463 = vmatpush1.msra.mxu0 %v128
  %464 = vmatprep.subr.mxu0 0.0
  %465 = vmatpush1.msra.mxu0 %v131
  %466 = vmatprep.subr.mxu0 0.0
  %467 = vmatpush1.msra.mxu0 %v134
  %468 = vmatprep.subr.mxu0 0.0
  %469 = vmatpush1.msra.mxu0 %v137
  %470 = vmatprep.subr.mxu0 0.0
  %471 = vmatpush1.msra.mxu0 %v140
  %472 = vmatprep.subr.mxu0 0.0
  %473 = vmatpush1.msra.mxu0 %v143
  %474 = vmatprep.subr.mxu0 0.0
  %475 = vmatpush1.msra.mxu0 %v146
  %476 = vmatprep.subr.mxu0 0.0
  %477 = vmatpush1.msra.mxu0 %v149
  %478 = vmatprep.subr.mxu0 0.0
  %479 = vmatpush1.msra.mxu0 %v152
  %480 = vmatprep.subr.mxu0 0.0
  %481 = vmatpush1.msra.mxu0 %v155
  %482 = vmatprep.subr.mxu0 0.0
  %483 = vmatpush1.msra.mxu0 %v158
  %484 = vmatprep.subr.mxu0 0.0
  %485 = vmatpush1.msra.mxu0 %v161
  %486 = vmatprep.subr.mxu0 0.0
  %487 = vmatpush1.msra.mxu0 %v164
  %488 = vmatprep.subr.mxu0 0.0
  %489 = vmatpush1.msra.mxu0 %v167
  %490 = vmatprep.subr.mxu0 0.0
  %491 = vmatpush1.msra.mxu0 %v170
  %492 = vmatprep.subr.mxu0 0.0
  %493 = vmatpush1.msra.mxu0 %v173
  %494 = vmatprep.subr.mxu0 0.0
  %495 = vmatpush1.msra.mxu0 %v176
  %496 = vmatprep.subr.mxu0 0.0
  %497 = vmatpush1.msra.mxu0 %v179
  %498 = vmatprep.subr.mxu0 0.0
  %499 = vmatpush1.msra.mxu0 %v182
  %500 = vmatprep.subr.mxu0 0.0
  %501 = vmatpush1.msra.mxu0 %v185
  %502 = vmatprep.subr.mxu0 0.0
  %503 = vmatpush1.msra.mxu0 0.0
  %504 = vmatprep.subr.mxu0 0.0
  %505 = vmatpush1.msra.mxu0 0.0
  %506 = vmatprep.subr.mxu0 0.0
  %507 = vmatpush1.msra.mxu0 0.0
  %508 = vmatprep.subr.mxu0 0.0
  %509 = vmatpush1.msra.mxu0 0.0
  %510 = vmatprep.subr.mxu0 0.0
  %511 = vmatpush1.msra.mxu0 0.0
  %512 = vmatprep.subr.mxu0 0.0
  %513 = vmatpush1.msra.mxu0 0.0
  %514 = vmatprep.subr.mxu0 0.0
  %515 = vmatpush1.msra.mxu0 0.0
  %516 = vmatprep.subr.mxu0 0.0
  %517 = vmatpush1.msra.mxu0 0.0
  %518 = vmatprep.subr.mxu0 0.0
  %519 = vmatpush1.msra.mxu0 0.0
  %520 = vmatprep.subr.mxu0 0.0
  %521 = vmatpush1.msra.mxu0 0.0
  %522 = vmatprep.subr.mxu0 0.0
  %523 = vmatpush1.msra.mxu0 0.0
  %524 = vmatprep.subr.mxu0 0.0
  %525 = vmatpush1.msra.mxu0 0.0
  %526 = vmatprep.mubr.f32.mxu0 %v188
  %527 = vmatmul.mubr.f32.gmra.mrb[0].mxu0 %v16
  %v528 = vpop.f32.mrb[0].mxu0
  %v529 = vadd.f32 %v444, %v528
  %v530 = vpop.f32.mrb[0].mxu0
  %531 = vmatprep.mubr.f32.mxu0 %v191
  %532 = vmatmul.mubr.f32.gmra.mrb[0].mxu0 %v20
  %v533 = vpop.f32.mrb[0].mxu0
  %v534 = vadd.f32 %v449, %v533
  %v535 = vpop.f32.mrb[0].mxu0
  %536 = vmatprep.mubr.f32.mxu0 %v194
  %537 = vmatmul.mubr.f32.gmra.mrb[0].mxu0 %v24
  %v538 = vpop.f32.mrb[0].mxu0
  %v539 = vadd.f32 %v454, %v538
  %v540 = vpop.f32.mrb[0].mxu0
  %541 = vmatprep.mubr.f32.mxu0 %v197
  %542 = vmatmul.mubr.f32.gmra.mrb[0].mxu0 %v28
  %v543 = vpop.f32.mrb[0].mxu0
  %v544 = vadd.f32 %v459, %v543
  %v545 = vpop.f32.mrb[0].mxu0
  %546 = vdwg.mxu0
  %v547 = vmax.f32 %v355, %v361
  %v548 = vmax.f32 %v357, %v363
  %v549 = vmax.f32 %v529, %v534
  %v550 = vmax.f32 %v367, %v373
  %v551 = vmax.f32 %v369, %v375
  %v552 = vmax.f32 %v539, %v544
  %v553 = vmax.f32 %v547, %v550
  %v554 = vmax.f32 %v548, %v551
  %v555 = vmax.f32 %v549, %v552
  %v556 = vld [vmem:[%s2] sm:$0xff]
  %558 = vset.pattern.permute.xlu0 0
  %559 = vperm.xlu0 %558, %v556
  %v560 = vpop.permute.xlu0 %559
  %v562 = vadd.f32 %v553, %v560
  %v563 = vadd.f32 %v554, %v560
  %v564 = vadd.f32 %v555, %v560
  %v565 = vmax.f32 %v562, 0.0
  %v566 = vmax.f32 %v563, 0.0
  %v567 = vmax.f32 %v564, 0.0
  %568 = vst [vmem:[%s3] sm:$0xff] %v565
  %569 = vst [vmem:[%s3 + $0x8] sm:$0xff] %v566
  %570 = vst [vmem:[%s3 + $0x10] sm:$0xff] %v567
  // Predicated region
  $region14: #{cnn_forward.4} parent=0 // pred_check
    _
  $region15: #{cnn_forward.4} parent=0 // pred_check_branch
    %572 = sbr.rel (0) target = $region17
  $region16: #{cnn_forward.4} parent=0 // pred_region
    _
  $region17: #{cnn_forward.4} parent=0 // pred_fallthru
    _
  // Predicated region
  $region18: #{cnn_forward.4} parent=0 // pred_check
    _
  $region19: #{cnn_forward.4} parent=0 // pred_check_branch
    %574 = sbr.rel (0) target = $region21
  $region20: #{cnn_forward.4} parent=0 // pred_region
    _
  $region21: #{cnn_forward.4} parent=0 // pred_fallthru
    _

// kernel: cnn_forward.5
$region0: #{cnn_forward.5}
  #allocation0 [shape = 'u32[]', space=smem, size = 0x4, offset = 0x4, fixed_abs, tag = 'smem constant byte address 0x4 - core index']
  #allocation1 [shape = 'u32[144,128]{1,0:T(1,128)}', space=vmem, size = 0x12000, scoped, tag = 'internal scratch']
  %s0 = inlined_call_operand.vmem [shape: f32[2,512,25], index: 0, kind: input, shape index: {}]
  %s1 = inlined_call_operand.vmem [shape: f32[64,512], index: 1, kind: input, shape index: {}]
  %s2 = inlined_call_operand.vmem [shape: f32[16,1], index: 2, kind: input, shape index: {}]
  %s3 = inlined_call_operand.vmem [shape: f32[16,25,10], index: 3, kind: input, shape index: {}]
  %s4 = inlined_call_operand.vmem [shape: f32[1,10], index: 4, kind: input, shape index: {}]
  %s5 = inlined_call_operand.hbm [shape: f32[2,1,10], index: 5, kind: output, shape index: {}]
  %s6 = sld [smem:[#allocation0]]
  $region53: #{cnn_forward.5} parent=0
    _
  %s8 = ssub.s32 1, %s6
  %s9 = scalar_select 0, %s8, %s6
  $region1: #{cnn_forward.5} parent=0
    #allocation2 [shape = 'u8[1024]{0}', space=vmem, size = 0x400, scoped, tag = 'output window, operand 0']
    #allocation3 [shape = 's32[2]{0}', space=sflag, size = 0x8, scoped, tag = 'scoped memory for cnn_forward.5']
    %10 = vsyncpa [#allocation3], 0
    %s11 = scalar_lea.sflag [#allocation3], 1
    %12 = vsyncpa %s11, 0
    loop: start=0, step=1, limit=4
    $region2: #{cnn_forward.5} parent=1 // loop_pre_header
      _
    $region3: #{cnn_forward.5} parent=1 // loop_header
      %s14 = sphi 0, %s18
      %p15 = scmp.ge.s32.totalorder %s14, 4
      %s24 = sphi 0, %s26
      %s27 = sphi 0, %s24
      %s28 = sphi 0, %s27
      %s44 = sphi 0, %s28
      %s48 = sphi 0, %s48
      %s50 = sphi 0, %s48
      %s51 = sphi 0, %s50
      %s65 = sphi 0, %s51
      %s69 = sphi 0, %s69
      %s71 = sphi 0, %s69
      %s72 = sphi 0, %s71
      %s86 = sphi 0, %s72
      %s90 = sphi 0, %s90
      %s92 = sphi 0, %s90
      %s93 = sphi 0, %s92
      %s107 = sphi 0, %s93
      %s111 = sphi 0, %s111
      %s113 = sphi 0, %s111
      %s114 = sphi 0, %s113
      %s128 = sphi 0, %s114
      %s134 = sphi 0, %s136
      %s137 = sphi 0, %s134
      %s138 = sphi 0, %s137
      %s154 = sphi 0, %s138
    $region4: #{cnn_forward.5} parent=1 // loop_header_branch
      %17 = sbr.rel (%p15) target = $region8
    $region5: #{cnn_forward.5} parent=1 // loop_body
      %s19 = ssub.s32 %s14, 1
      %s20 = ssub.s32 %s14, 2
      %s21 = sadd.s32 %s14, 1
      %s22 = ssub.s32 %s14, %s21
      %p23 = scmp.eq.s32.totalorder %s22, 0
      %s25 = sadd.s32 %s24, 1
      %s26 = scalar_select %p23, %s24, %s25
      %p29 = pneg %p23
      %p30 = scmp.eq.s32.totalorder %s14, 1
      %p31 = por %p29, %p30
      %p32 = scmp.ne.s32.totalorder %s24, %s27
      %p33 = scmp.eq.s32.totalorder %s14, 0
      %p34 = por %p32, %p33
      %p35 = scmp.ne.s32.totalorder %s24, %s27
      %p36 = scmp.eq.s32.totalorder %s19, 1
      %p37 = por %p35, %p36
      %p38 = scmp.ne.s32.totalorder %s27, %s28
      %p39 = scmp.eq.s32.totalorder %s19, 0
      %p40 = por %p38, %p39
      %p41 = scmp.ne.s32.totalorder %s27, %s28
      %p42 = scmp.eq.s32.totalorder %s20, 1
      %p43 = por %p41, %p42
      %p45 = scmp.ne.s32.totalorder %s28, %s44
      %p46 = scmp.eq.s32.totalorder %s20, 0
      %p47 = por %p45, %p46
      %s49 = sadd.s32 %s48, 1
      %p52 = scmp.eq.s32.totalorder %s14, 1
      %p53 = scmp.ne.s32.totalorder %s48, %s50
      %p54 = scmp.eq.s32.totalorder %s14, 0
      %p55 = por %p53, %p54
      %p56 = scmp.ne.s32.totalorder %s48, %s50
      %p57 = scmp.eq.s32.totalorder %s19, 1
      %p58 = por %p56, %p57
      %p59 = scmp.ne.s32.totalorder %s50, %s51
      %p60 = scmp.eq.s32.totalorder %s19, 0
      %p61 = por %p59, %p60
      %p62 = scmp.ne.s32.totalorder %s50, %s51
      %p63 = scmp.eq.s32.totalorder %s20, 1
      %p64 = por %p62, %p63
      %p66 = scmp.ne.s32.totalorder %s51, %s65
      %p67 = scmp.eq.s32.totalorder %s20, 0
      %p68 = por %p66, %p67
      %s70 = sadd.s32 %s69, 1
      %p73 = scmp.eq.s32.totalorder %s14, 1
      %p74 = scmp.ne.s32.totalorder %s69, %s71
      %p75 = scmp.eq.s32.totalorder %s14, 0
      %p76 = por %p74, %p75
      %p77 = scmp.ne.s32.totalorder %s69, %s71
      %p78 = scmp.eq.s32.totalorder %s19, 1
      %p79 = por %p77, %p78
      %p80 = scmp.ne.s32.totalorder %s71, %s72
      %p81 = scmp.eq.s32.totalorder %s19, 0
      %p82 = por %p80, %p81
      %p83 = scmp.ne.s32.totalorder %s71, %s72
      %p84 = scmp.eq.s32.totalorder %s20, 1
      %p85 = por %p83, %p84
      %p87 = scmp.ne.s32.totalorder %s72, %s86
      %p88 = scmp.eq.s32.totalorder %s20, 0
      %p89 = por %p87, %p88
      %s91 = sadd.s32 %s90, 1
      %p94 = scmp.eq.s32.totalorder %s14, 1
      %p95 = scmp.ne.s32.totalorder %s90, %s92
      %p96 = scmp.eq.s32.totalorder %s14, 0
      %p97 = por %p95, %p96
      %p98 = scmp.ne.s32.totalorder %s90, %s92
      %p99 = scmp.eq.s32.totalorder %s19, 1
      %p100 = por %p98, %p99
      %p101 = scmp.ne.s32.totalorder %s92, %s93
      %p102 = scmp.eq.s32.totalorder %s19, 0
      %p103 = por %p101, %p102
      %p104 = scmp.ne.s32.totalorder %s92, %s93
      %p105 = scmp.eq.s32.totalorder %s20, 1
      %p106 = por %p104, %p105
      %p108 = scmp.ne.s32.totalorder %s93, %s107
      %p109 = scmp.eq.s32.totalorder %s20, 0
      %p110 = por %p108, %p109
      %s112 = sadd.s32 %s111, 1
      %p115 = scmp.eq.s32.totalorder %s14, 1
      %p116 = scmp.ne.s32.totalorder %s111, %s113
      %p117 = scmp.eq.s32.totalorder %s14, 0
      %p118 = por %p116, %p117
      %p119 = scmp.ne.s32.totalorder %s111, %s113
      %p120 = scmp.eq.s32.totalorder %s19, 1
      %p121 = por %p119, %p120
      %p122 = scmp.ne.s32.totalorder %s113, %s114
      %p123 = scmp.eq.s32.totalorder %s19, 0
      %p124 = por %p122, %p123
      %p125 = scmp.ne.s32.totalorder %s113, %s114
      %p126 = scmp.eq.s32.totalorder %s20, 1
      %p127 = por %p125, %p126
      %p129 = scmp.ne.s32.totalorder %s114, %s128
      %p130 = scmp.eq.s32.totalorder %s20, 0
      %p131 = por %p129, %p130
      %s132 = ssub.s32 %s14, %s21
      %p133 = scmp.eq.s32.totalorder %s132, 0
      %s135 = sadd.s32 %s134, 1
      %s136 = scalar_select %p133, %s134, %s135
      %p139 = pneg %p133
      %p140 = scmp.eq.s32.totalorder %s14, 1
      %p141 = por %p139, %p140
      %p142 = scmp.ne.s32.totalorder %s134, %s137
      %p143 = scmp.eq.s32.totalorder %s14, 0
      %p144 = por %p142, %p143
      %p145 = scmp.ne.s32.totalorder %s134, %s137
      %p146 = scmp.eq.s32.totalorder %s19, 1
      %p147 = por %p145, %p146
      %p148 = scmp.ne.s32.totalorder %s137, %s138
      %p149 = scmp.eq.s32.totalorder %s19, 0
      %p150 = por %p148, %p149
      %p151 = scmp.ne.s32.totalorder %s137, %s138
      %p152 = scmp.eq.s32.totalorder %s20, 1
      %p153 = por %p151, %p152
      %p155 = scmp.ne.s32.totalorder %s138, %s154
      %p156 = scmp.eq.s32.totalorder %s20, 0
      %p157 = por %p155, %p156
      %p158 = scmp.le.s32.totalorder 1, %s14
      %p159 = scmp.lt.s32.totalorder %s14, 3
      %p160 = pnand %p158, %p159
      %p161 = pneg %p160
      // Predicated region
      $region9: #{cnn_forward.5} parent=5 // pred_check
        _
      $region10: #{cnn_forward.5} parent=5 // pred_check_branch
        %163 = sbr.rel (%p160) target = $region12
      $region11: #{cnn_forward.5} parent=5 // pred_region
        %s164 = ssub.s32 %s14, 1
        // Predicated region
        $region13: #{cnn_forward.5} parent=11 // pred_check
          %p165 = pneg %p61
        $region14: #{cnn_forward.5} parent=11 // pred_check_branch
          %167 = sbr.rel (%p165) target = $region16
        $region15: #{cnn_forward.5} parent=11 // pred_region
          _
        $region16: #{cnn_forward.5} parent=11 // pred_fallthru
          _
        // Predicated region
        $region17: #{cnn_forward.5} parent=11 // pred_check
          %p168 = pneg %p82
        $region18: #{cnn_forward.5} parent=11 // pred_check_branch
          %170 = sbr.rel (%p168) target = $region20
        $region19: #{cnn_forward.5} parent=11 // pred_region
          _
        $region20: #{cnn_forward.5} parent=11 // pred_fallthru
          _
        // Predicated region
        $region21: #{cnn_forward.5} parent=11 // pred_check
          %p171 = pneg %p103
        $region22: #{cnn_forward.5} parent=11 // pred_check_branch
          %173 = sbr.rel (%p171) target = $region24
        $region23: #{cnn_forward.5} parent=11 // pred_region
          _
        $region24: #{cnn_forward.5} parent=11 // pred_fallthru
          _
        // Predicated region
        $region25: #{cnn_forward.5} parent=11 // pred_check
          %p174 = pneg %p124
        $region26: #{cnn_forward.5} parent=11 // pred_check_branch
          %176 = sbr.rel (%p174) target = $region28
        $region27: #{cnn_forward.5} parent=11 // pred_region
          _
        $region28: #{cnn_forward.5} parent=11 // pred_fallthru
          _
      $region12: #{cnn_forward.5} parent=5 // pred_fallthru
        _
      %p177 = scmp.lt.s32.totalorder %s14, 2
      // Predicated region
      $region29: #{cnn_forward.5} parent=5 // pred_check
        %p178 = pneg %p177
      $region30: #{cnn_forward.5} parent=5 // pred_check_branch
        %180 = sbr.rel (%p178) target = $region32
      $region31: #{cnn_forward.5} parent=5 // pred_region
        // Predicated region
        $region33: #{cnn_forward.5} parent=31 // pred_check
          %p181 = pneg %p34
        $region34: #{cnn_forward.5} parent=31 // pred_check_branch
          %183 = sbr.rel (%p181) target = $region36
        $region35: #{cnn_forward.5} parent=31 // pred_region
          %p184 = scmp.lt.s32.totalorder %s14, 1
          %s185 = scalar_select %p184, %s14, 1
          %s186 = smul.addr %s185, 64
          %s187 = smul.addr %s186, 8
          %s188 = scalar_lea.vmem %s0, %s187
        $region36: #{cnn_forward.5} parent=31 // pred_fallthru
          _
      $region32: #{cnn_forward.5} parent=5 // pred_fallthru
        _
      %p189 = scmp.le.s32.totalorder 1, %s14
      %p190 = scmp.lt.s32.totalorder %s14, 3
      %p191 = pnand %p189, %p190
      %p192 = pneg %p191
      // Predicated region
      $region37: #{cnn_forward.5} parent=5 // pred_check
        _
      $region38: #{cnn_forward.5} parent=5 // pred_check_branch
        %194 = sbr.rel (%p191) target = $region40
      $region39: #{cnn_forward.5} parent=5 // pred_region
        %s195 = ssub.s32 %s14, 1
        %p196 = scmp.lt.s32.totalorder %s19, 1
        %s197 = scalar_select %p196, %s19, 1
        %s198 = smul.addr %s197, 64
        %s199 = smul.addr %s198, 8
        %s200 = scalar_lea.vmem %s0, %s199
        %p201 = pneg %p40
        %p202 = pneg %p37
        %p203 = pneg %p61
        %p204 = pneg %p58
        %p205 = pneg %p82
        %p206 = pneg %p79
        %p207 = pneg %p103
        %p208 = pneg %p100
        %p209 = pneg %p124
        %p210 = pneg %p121
        %p211 = pneg %p150
        %p212 = pneg %p147
        %s213 = sand.u32 %s137, 1
        %s214 = scalar_lea.sflag [#allocation3], %s213
        %s215 = sand.u32 %s137, 1
        %s216 = scalar_lea.vmem [#allocation2], %s215
        %p217 = scmp.lt.s32.totalorder %s19, 1
        %s218 = scalar_select %p217, %s19, 1
        %s219 = smul.addr %s218, 64
        %s220 = smul.addr %s219, 8
        %s221 = scalar_lea.vmem %s0, %s220
        %v222 = vld [vmem:[%s1] sm:$0xff]
        %v223 = vld [vmem:[%s1 + $0x8] sm:$0xff]
        %v224 = vld [vmem:[%s1 + $0x10] sm:$0xff]
        %v225 = vld [vmem:[%s1 + $0x18] sm:$0xff]
        %v226 = vld [vmem:[%s1 + $0x20] sm:$0xff]
        %v227 = vld [vmem:[%s1 + $0x28] sm:$0xff]
        %v228 = vld [vmem:[%s1 + $0x30] sm:$0xff]
        %v229 = vld [vmem:[%s1 + $0x38] sm:$0xff]
        %v230 = vld [vmem:[%s1 + $0x40] sm:$0xff]
        %v231 = vld [vmem:[%s1 + $0x48] sm:$0xff]
        %v232 = vld [vmem:[%s1 + $0x50] sm:$0xff]
        %v233 = vld [vmem:[%s1 + $0x58] sm:$0xff]
        %v234 = vld [vmem:[%s1 + $0x60] sm:$0xff]
        %v235 = vld [vmem:[%s1 + $0x68] sm:$0xff]
        %v236 = vld [vmem:[%s1 + $0x70] sm:$0xff]
        %v237 = vld [vmem:[%s1 + $0x78] sm:$0xff]
        %v238 = vld [vmem:[%s1 + $0x80] sm:$0xff]
        %v239 = vld [vmem:[%s1 + $0x88] sm:$0xff]
        %v240 = vld [vmem:[%s1 + $0x90] sm:$0xff]
        %v241 = vld [vmem:[%s1 + $0x98] sm:$0xff]
        %v242 = vld [vmem:[%s1 + $0xa0] sm:$0xff]
        %v243 = vld [vmem:[%s1 + $0xa8] sm:$0xff]
        %v244 = vld [vmem:[%s1 + $0xb0] sm:$0xff]
        %v245 = vld [vmem:[%s1 + $0xb8] sm:$0xff]
        %v246 = vld [vmem:[%s1 + $0xc0] sm:$0xff]
        %v247 = vld [vmem:[%s1 + $0xc8] sm:$0xff]
        %v248 = vld [vmem:[%s1 + $0xd0] sm:$0xff]
        %v249 = vld [vmem:[%s1 + $0xd8] sm:$0xff]
        %v250 = vld [vmem:[%s1 + $0xe0] sm:$0xff]
        %v251 = vld [vmem:[%s1 + $0xe8] sm:$0xff]
        %v252 = vld [vmem:[%s1 + $0xf0] sm:$0xff]
        %v253 = vld [vmem:[%s1 + $0xf8] sm:$0xff]
        %v254 = vld [vmem:[%s221] sm:$0xff]
        %v255 = vld [vmem:[%s221 + $0x8] sm:$0xff]
        %v256 = vld [vmem:[%s221 + $0x10] sm:$0xff]
        %v257 = vld [vmem:[%s221 + $0x18] sm:$0xff]
        %v258 = vld [vmem:[%s221 + $0x20] sm:$0xff]
        %v259 = vld [vmem:[%s221 + $0x28] sm:$0xff]
        %v260 = vld [vmem:[%s221 + $0x30] sm:$0xff]
        %v261 = vld [vmem:[%s221 + $0x38] sm:$0xff]
        %v262 = vld [vmem:[%s221 + $0x40] sm:$0xff]
        %v263 = vld [vmem:[%s221 + $0x48] sm:$0xff]
        %v264 = vld [vmem:[%s221 + $0x50] sm:$0xff]
        %v265 = vld [vmem:[%s221 + $0x58] sm:$0xff]
        %v266 = vld [vmem:[%s221 + $0x60] sm:$0xff]
        %v267 = vld [vmem:[%s221 + $0x68] sm:$0xff]
        %v268 = vld [vmem:[%s221 + $0x70] sm:$0xff]
        %v269 = vld [vmem:[%s221 + $0x78] sm:$0xff]
        %v270 = vld [vmem:[%s221 + $0x80] sm:$0xff]
        %v271 = vld [vmem:[%s221 + $0x88] sm:$0xff]
        %v272 = vld [vmem:[%s221 + $0x90] sm:$0xff]
        %v273 = vld [vmem:[%s221 + $0x98] sm:$0xff]
        %v274 = vld [vmem:[%s221 + $0xa0] sm:$0xff]
        %v275 = vld [vmem:[%s221 + $0xa8] sm:$0xff]
        %v276 = vld [vmem:[%s221 + $0xb0] sm:$0xff]
        %v277 = vld [vmem:[%s221 + $0xb8] sm:$0xff]
        %v278 = vld [vmem:[%s221 + $0xc0] sm:$0xff]
        %v279 = vld [vmem:[%s221 + $0xc8] sm:$0xff]
        %v280 = vld [vmem:[%s221 + $0xd0] sm:$0xff]
        %v281 = vld [vmem:[%s221 + $0xd8] sm:$0xff]
        %v282 = vld [vmem:[%s221 + $0xe0] sm:$0xff]
        %v283 = vld [vmem:[%s221 + $0xe8] sm:$0xff]
        %v284 = vld [vmem:[%s221 + $0xf0] sm:$0xff]
        %v285 = vld [vmem:[%s221 + $0xf8] sm:$0xff]
        %v286 = vld [vmem:[%s221 + $0x100] sm:$0xff]
        %v287 = vld [vmem:[%s221 + $0x108] sm:$0xff]
        %v288 = vld [vmem:[%s221 + $0x110] sm:$0xff]
        %v289 = vld [vmem:[%s221 + $0x118] sm:$0xff]
        %v290 = vld [vmem:[%s221 + $0x120] sm:$0xff]
        %v291 = vld [vmem:[%s221 + $0x128] sm:$0xff]
        %v292 = vld [vmem:[%s221 + $0x130] sm:$0xff]
        %v293 = vld [vmem:[%s221 + $0x138] sm:$0xff]
        %v294 = vld [vmem:[%s221 + $0x140] sm:$0xff]
        %v295 = vld [vmem:[%s221 + $0x148] sm:$0xff]
        %v296 = vld [vmem:[%s221 + $0x150] sm:$0xff]
        %v297 = vld [vmem:[%s221 + $0x158] sm:$0xff]
        %v298 = vld [vmem:[%s221 + $0x160] sm:$0xff]
        %v299 = vld [vmem:[%s221 + $0x168] sm:$0xff]
        %v300 = vld [vmem:[%s221 + $0x170] sm:$0xff]
        %v301 = vld [vmem:[%s221 + $0x178] sm:$0xff]
        %v302 = vld [vmem:[%s221 + $0x180] sm:$0xff]
        %v303 = vld [vmem:[%s221 + $0x188] sm:$0xff]
        %v304 = vld [vmem:[%s221 + $0x190] sm:$0xff]
        %v305 = vld [vmem:[%s221 + $0x198] sm:$0xff]
        %v306 = vld [vmem:[%s221 + $0x1a0] sm:$0xff]
        %v307 = vld [vmem:[%s221 + $0x1a8] sm:$0xff]
        %v308 = vld [vmem:[%s221 + $0x1b0] sm:$0xff]
        %v309 = vld [vmem:[%s221 + $0x1b8] sm:$0xff]
        %v310 = vld [vmem:[%s221 + $0x1c0] sm:$0xff]
        %v311 = vld [vmem:[%s221 + $0x1c8] sm:$0xff]
        %v312 = vld [vmem:[%s221 + $0x1d0] sm:$0xff]
        %v313 = vld [vmem:[%s221 + $0x1d8] sm:$0xff]
        %v314 = vld [vmem:[%s221 + $0x1e0] sm:$0xff]
        %v315 = vld [vmem:[%s221 + $0x1e8] sm:$0xff]
        %v316 = vld [vmem:[%s221 + $0x1f0] sm:$0xff]
        %v317 = vld [vmem:[%s221 + $0x1f8] sm:$0xff]
        %318 = vmatprep.subr.mxu0 0.0
        %319 = vmatpush1.msra.mxu0 %v254
        %320 = vmatprep.subr.mxu0 0.0
        %321 = vmatpush1.msra.mxu0 %v255
        %322 = vmatprep.subr.mxu0 0.0
        %323 = vmatpush1.msra.mxu0 %v256
        %324 = vmatprep.subr.mxu0 0.0
        %325 = vmatpush1.msra.mxu0 %v257
        %326 = vmatprep.subr.mxu0 0.0
        %327 = vmatpush1.msra.mxu0 %v258
        %328 = vmatprep.subr.mxu0 0.0
        %329 = vmatpush1.msra.mxu0 %v259
        %330 = vmatprep.subr.mxu0 0.0
        %331 = vmatpush1.msra.mxu0 %v260
        %332 = vmatprep.subr.mxu0 0.0
        %333 = vmatpush1.msra.mxu0 %v261
        %334 = vmatprep.subr.mxu0 0.0
        %335 = vmatpush1.msra.mxu0 %v262
        %336 = vmatprep.subr.mxu0 0.0
        %337 = vmatpush1.msra.mxu0 %v263
        %338 = vmatprep.subr.mxu0 0.0
        %339 = vmatpush1.msra.mxu0 %v264
        %340 = vmatprep.subr.mxu0 0.0
        %341 = vmatpush1.msra.mxu0 %v265
        %342 = vmatprep.subr.mxu0 0.0
        %343 = vmatpush1.msra.mxu0 %v266
        %344 = vmatprep.subr.mxu0 0.0
        %345 = vmatpush1.msra.mxu0 %v267
        %346 = vmatprep.subr.mxu0 0.0
        %347 = vmatpush1.msra.mxu0 %v268
        %348 = vmatprep.subr.mxu0 0.0
        %349 = vmatpush1.msra.mxu0 %v269
        %350 = vmatprep.subr.mxu0 0.0
        %351 = vmatpush1.msra.mxu0 %v270
        %352 = vmatprep.subr.mxu0 0.0
        %353 = vmatpush1.msra.mxu0 %v271
        %354 = vmatprep.subr.mxu0 0.0
        %355 = vmatpush1.msra.mxu0 %v272
        %356 = vmatprep.subr.mxu0 0.0
        %357 = vmatpush1.msra.mxu0 %v273
        %358 = vmatprep.subr.mxu0 0.0
        %359 = vmatpush1.msra.mxu0 %v274
        %360 = vmatprep.subr.mxu0 0.0
        %361 = vmatpush1.msra.mxu0 %v275
        %362 = vmatprep.subr.mxu0 0.0
        %363 = vmatpush1.msra.mxu0 %v276
        %364 = vmatprep.subr.mxu0 0.0
        %365 = vmatpush1.msra.mxu0 %v277
        %366 = vmatprep.subr.mxu0 0.0
        %367 = vmatpush1.msra.mxu0 %v278
        %368 = vmatprep.subr.mxu0 0.0
        %369 = vmatpush1.msra.mxu0 %v279
        %370 = vmatprep.subr.mxu0 0.0
        %371 = vmatpush1.msra.mxu0 %v280
        %372 = vmatprep.subr.mxu0 0.0
        %373 = vmatpush1.msra.mxu0 %v281
        %374 = vmatprep.subr.mxu0 0.0
        %375 = vmatpush1.msra.mxu0 %v282
        %376 = vmatprep.subr.mxu0 0.0
        %377 = vmatpush1.msra.mxu0 %v283
        %378 = vmatprep.subr.mxu0 0.0
        %379 = vmatpush1.msra.mxu0 %v284
        %380 = vmatprep.subr.mxu0 0.0
        %381 = vmatpush1.msra.mxu0 %v285
        %382 = vmatprep.mubr.f32.mxu0 %v223
        %383 = vmatmul.mubr.f32.gmra.mrb[0].mxu0 %v222
        %v384 = vpop.f32.mrb[0].mxu0
        %v385 = vadd.f32 0.0, %v384
        %v386 = vpop.f32.mrb[0].mxu0
        %387 = vmatprep.mubr.f32.mxu0 %v227
        %388 = vmatmul.mubr.f32.gmra.mrb[0].mxu0 %v226
        %v389 = vpop.f32.mrb[0].mxu0
        %v390 = vadd.f32 0.0, %v389
        %v391 = vpop.f32.mrb[0].mxu0
        %392 = vmatprep.mubr.f32.mxu0 %v231
        %393 = vmatmul.mubr.f32.gmra.mrb[0].mxu0 %v230
        %v394 = vpop.f32.mrb[0].mxu0
        %v395 = vadd.f32 0.0, %v394
        %v396 = vpop.f32.mrb[0].mxu0
        %397 = vmatprep.mubr.f32.mxu0 %v235
        %398 = vmatmul.mubr.f32.gmra.mrb[0].mxu0 %v234
        %v399 = vpop.f32.mrb[0].mxu0
        %v400 = vadd.f32 0.0, %v399
        %v401 = vpop.f32.mrb[0].mxu0
        %402 = vmatprep.mubr.f32.mxu0 %v239
        %403 = vmatmul.mubr.f32.gmra.mrb[0].mxu0 %v238
        %v404 = vpop.f32.mrb[0].mxu0
        %v405 = vadd.f32 0.0, %v404
        %v406 = vpop.f32.mrb[0].mxu0
        %407 = vmatprep.mubr.f32.mxu0 %v243
        %408 = vmatmul.mubr.f32.gmra.mrb[0].mxu0 %v242
        %v409 = vpop.f32.mrb[0].mxu0
        %v410 = vadd.f32 0.0, %v409
        %v411 = vpop.f32.mrb[0].mxu0
        %412 = vmatprep.mubr.f32.mxu0 %v247
        %413 = vmatmul.mubr.f32.gmra.mrb[0].mxu0 %v246
        %v414 = vpop.f32.mrb[0].mxu0
        %v415 = vadd.f32 0.0, %v414
        %v416 = vpop.f32.mrb[0].mxu0
        %417 = vmatprep.mubr.f32.mxu0 %v251
        %418 = vmatmul.mubr.f32.gmra.mrb[0].mxu0 %v250
        %v419 = vpop.f32.mrb[0].mxu0
        %v420 = vadd.f32 0.0, %v419
        %v421 = vpop.f32.mrb[0].mxu0
        %422 = vdwg.mxu0
        %423 = vmatprep.subr.mxu0 0.0
        %424 = vmatpush1.msra.mxu0 %v286
        %425 = vmatprep.subr.mxu0 0.0
        %426 = vmatpush1.msra.mxu0 %v287
        %427 = vmatprep.subr.mxu0 0.0
        %428 = vmatpush1.msra.mxu0 %v288
        %429 = vmatprep.subr.mxu0 0.0
        %430 = vmatpush1.msra.mxu0 %v289
        %431 = vmatprep.subr.mxu0 0.0
        %432 = vmatpush1.msra.mxu0 %v290
        %433 = vmatprep.subr.mxu0 0.0
        %434 = vmatpush1.msra.mxu0 %v291
        %435 = vmatprep.subr.mxu0 0.0
        %436 = vmatpush1.msra.mxu0 %v292
        %437 = vmatprep.subr.mxu0 0.0
        %438 = vmatpush1.msra.mxu0 %v293
        %439 = vmatprep.subr.mxu0 0.0
        %440 = vmatpush1.msra.mxu0 %v294
        %441 = vmatprep.subr.mxu0 0.0
        %442 = vmatpush1.msra.mxu0 %v295
        %443 = vmatprep.subr.mxu0 0.0
        %444 = vmatpush1.msra.mxu0 %v296
        %445 = vmatprep.subr.mxu0 0.0
        %446 = vmatpush1.msra.mxu0 %v297
        %447 = vmatprep.subr.mxu0 0.0
        %448 = vmatpush1.msra.mxu0 %v298
        %449 = vmatprep.subr.mxu0 0.0
        %450 = vmatpush1.msra.mxu0 %v299
        %451 = vmatprep.subr.mxu0 0.0
        %452 = vmatpush1.msra.mxu0 %v300
        %453 = vmatprep.subr.mxu0 0.0
        %454 = vmatpush1.msra.mxu0 %v301
        %455 = vmatprep.subr.mxu0 0.0
        %456 = vmatpush1.msra.mxu0 %v302
        %457 = vmatprep.subr.mxu0 0.0
        %458 = vmatpush1.msra.mxu0 %v303
        %459 = vmatprep.subr.mxu0 0.0
        %460 = vmatpush1.msra.mxu0 %v304
        %461 = vmatprep.subr.mxu0 0.0
        %462 = vmatpush1.msra.mxu0 %v305
        %463 = vmatprep.subr.mxu0 0.0
        %464 = vmatpush1.msra.mxu0 %v306
        %465 = vmatprep.subr.mxu0 0.0
        %466 = vmatpush1.msra.mxu0 %v307
        %467 = vmatprep.subr.mxu0 0.0
        %468 = vmatpush1.msra.mxu0 %v308
        %469 = vmatprep.subr.mxu0 0.0
        %470 = vmatpush1.msra.mxu0 %v309
        %471 = vmatprep.subr.mxu0 0.0
        %472 = vmatpush1.msra.mxu0 %v310
        %473 = vmatprep.subr.mxu0 0.0
        %474 = vmatpush1.msra.mxu0 %v311
        %475 = vmatprep.subr.mxu0 0.0
        %476 = vmatpush1.msra.mxu0 %v312
        %477 = vmatprep.subr.mxu0 0.0
        %478 = vmatpush1.msra.mxu0 %v313
        %479 = vmatprep.subr.mxu0 0.0
        %480 = vmatpush1.msra.mxu0 %v314
        %481 = vmatprep.subr.mxu0 0.0
        %482 = vmatpush1.msra.mxu0 %v315
        %483 = vmatprep.subr.mxu0 0.0
        %484 = vmatpush1.msra.mxu0 %v316
        %485 = vmatprep.subr.mxu0 0.0
        %486 = vmatpush1.msra.mxu0 %v317
        %487 = vmatprep.mubr.f32.mxu0 %v225
        %488 = vmatmul.mubr.f32.gmra.mrb[0].mxu0 %v224
        %v489 = vpop.f32.mrb[0].mxu0
        %v490 = vadd.f32 %v385, %v489
        %v491 = vpop.f32.mrb[0].mxu0
        %492 = vmatprep.mubr.f32.mxu0 %v229
        %493 = vmatmul.mubr.f32.gmra.mrb[0].mxu0 %v228
        %v494 = vpop.f32.mrb[0].mxu0
        %v495 = vadd.f32 %v390, %v494
        %v496 = vpop.f32.mrb[0].mxu0
        %497 = vmatprep.mubr.f32.mxu0 %v233
        %498 = vmatmul.mubr.f32.gmra.mrb[0].mxu0 %v232
        %v499 = vpop.f32.mrb[0].mxu0
        %v500 = vadd.f32 %v395, %v499
        %v501 = vpop.f32.mrb[0].mxu0
        %502 = vmatprep.mubr.f32.mxu0 %v237
        %503 = vmatmul.mubr.f32.gmra.mrb[0].mxu0 %v236
        %v504 = vpop.f32.mrb[0].mxu0
        %v505 = vadd.f32 %v400, %v504
        %v506 = vpop.f32.mrb[0].mxu0
        %507 = vmatprep.mubr.f32.mxu0 %v241
        %508 = vmatmul.mubr.f32.gmra.mrb[0].mxu0 %v240
        %v509 = vpop.f32.mrb[0].mxu0
        %v510 = vadd.f32 %v405, %v509
        %v511 = vpop.f32.mrb[0].mxu0
        %512 = vmatprep.mubr.f32.mxu0 %v245
        %513 = vmatmul.mubr.f32.gmra.mrb[0].mxu0 %v244
        %v514 = vpop.f32.mrb[0].mxu0
        %v515 = vadd.f32 %v410, %v514
        %v516 = vpop.f32.mrb[0].mxu0
        %517 = vmatprep.mubr.f32.mxu0 %v249
        %518 = vmatmul.mubr.f32.gmra.mrb[0].mxu0 %v248
        %v519 = vpop.f32.mrb[0].mxu0
        %v520 = vadd.f32 %v415, %v519
        %v521 = vpop.f32.mrb[0].mxu0
        %522 = vmatprep.mubr.f32.mxu0 %v253
        %523 = vmatmul.mubr.f32.gmra.mrb[0].mxu0 %v252
        %v524 = vpop.f32.mrb[0].mxu0
        %v525 = vadd.f32 %v420, %v524
        %v526 = vpop.f32.mrb[0].mxu0
        %527 = vdwg.mxu0
        %v528 = vmax.f32 %v490, %v500
        %v529 = vmax.f32 %v495, %v505
        %v530 = vmax.f32 %v510, %v520
        %v531 = vmax.f32 %v515, %v525
        %v532 = vmax.f32 %v528, %v530
        %v533 = vmax.f32 %v529, %v531
        %v534 = vld [vmem:[%s2] sm:$0xff]
        %v535 = vld [vmem:[%s2 + $0x8] sm:$0xff]
        %537 = vset.pattern.permute.xlu0 0
        %538 = vperm.xlu0 %537, %v534
        %v539 = vpop.permute.xlu0 %538
        %542 = vset.pattern.permute.xlu0 0
        %543 = vperm.xlu0 %542, %v535
        %v544 = vpop.permute.xlu0 %543
        %v546 = vadd.f32 %v532, %v539
        %v547 = vadd.f32 %v533, %v544
        %v548 = vmax.f32 %v546, 0.0
        %v549 = vmax.f32 %v547, 0.0
        %v550 = vld [vmem:[%s4] sm:$0x1]
        %v551 = vld [vmem:[%s3] sm:$0xff]
        %v552 = vld [vmem:[%s3 + $0x8] sm:$0xff]
        %v553 = vld [vmem:[%s3 + $0x10] sm:$0xff]
        %v554 = vld [vmem:[%s3 + $0x18] sm:$0x1]
        %vm555 = vcmask 203776
        %v557 = vsel %vm555, %v548, 0
        %vm559 = vcmask 1040384
        %v561 = vsel %vm559, %v554, 0
        %563 = vmatprep.subr.mxu0 0.0
        %564 = vmatpush1.msra.mxu0 %v551
        %565 = vmatprep.subr.mxu0 0.0
        %566 = vmatpush1.msra.mxu0 %v552
        %567 = vmatprep.subr.mxu0 0.0
        %568 = vmatpush1.msra.mxu0 %v553
        %569 = vmatprep.subr.mxu0 0.0
        %570 = vmatpush1.msra.mxu0 %v561
        %571 = vmatprep.subr.mxu0 0.0
        %572 = vmatpush1.msra.mxu0 0.0
        %573 = vmatprep.subr.mxu0 0.0
        %574 = vmatpush1.msra.mxu0 0.0
        %575 = vmatprep.subr.mxu0 0.0
        %576 = vmatpush1.msra.mxu0 0.0
        %577 = vmatprep.subr.mxu0 0.0
        %578 = vmatpush1.msra.mxu0 0.0
        %579 = vmatprep.subr.mxu0 0.0
        %580 = vmatpush1.msra.mxu0 0.0
        %581 = vmatprep.subr.mxu0 0.0
        %582 = vmatpush1.msra.mxu0 0.0
        %583 = vmatprep.subr.mxu0 0.0
        %584 = vmatpush1.msra.mxu0 0.0
        %585 = vmatprep.subr.mxu0 0.0
        %586 = vmatpush1.msra.mxu0 0.0
        %587 = vmatprep.subr.mxu0 0.0
        %588 = vmatpush1.msra.mxu0 0.0
        %589 = vmatprep.subr.mxu0 0.0
        %590 = vmatpush1.msra.mxu0 0.0
        %591 = vmatprep.subr.mxu0 0.0
        %592 = vmatpush1.msra.mxu0 0.0
        %593 = vmatprep.subr.mxu0 0.0
        %594 = vmatpush1.msra.mxu0 0.0
        %595 = vmatprep.subr.mxu0 0.0
        %596 = vmatpush1.msra.mxu0 0.0
        %597 = vmatprep.subr.mxu0 0.0
        %598 = vmatpush1.msra.mxu0 0.0
        %599 = vmatprep.subr.mxu0 0.0
        %600 = vmatpush1.msra.mxu0 0.0
        %601 = vmatprep.subr.mxu0 0.0
        %602 = vmatpush1.msra.mxu0 0.0
        %603 = vmatprep.subr.mxu0 0.0
        %604 = vmatpush1.msra.mxu0 0.0
        %605 = vmatprep.subr.mxu0 0.0
        %606 = vmatpush1.msra.mxu0 0.0
        %607 = vmatprep.subr.mxu0 0.0
        %608 = vmatpush1.msra.mxu0 0.0
        %609 = vmatprep.subr.mxu0 0.0
        %610 = vmatpush1.msra.mxu0 0.0
        %611 = vmatprep.subr.mxu0 0.0
        %612 = vmatpush1.msra.mxu0 0.0
        %613 = vmatprep.subr.mxu0 0.0
        %614 = vmatpush1.msra.mxu0 0.0
        %615 = vmatprep.subr.mxu0 0.0
        %616 = vmatpush1.msra.mxu0 0.0
        %617 = vmatprep.subr.mxu0 0.0
        %618 = vmatpush1.msra.mxu0 0.0
        %619 = vmatprep.subr.mxu0 0.0
        %620 = vmatpush1.msra.mxu0 0.0
        %621 = vmatprep.subr.mxu0 0.0
        %622 = vmatpush1.msra.mxu0 0.0
        %623 = vmatprep.subr.mxu0 0.0
        %624 = vmatpush1.msra.mxu0 0.0
        %625 = vmatprep.subr.mxu0 0.0
        %626 = vmatpush1.msra.mxu0 0.0
        %627 = vmatprep.mubr.f32.mxu0 0.0
        %628 = vmatmul.mubr.f32.gmra.mrb[0].mxu0 %v557
        %v629 = vpop.f32.mrb[0].mxu0
        %v630 = vadd.f32 0.0, %v629
        %v631 = vpop.f32.mrb[0].mxu0
        %632 = vdwg.mxu0
        %v633 = vadd.f32 %v550, %v630
        %s634 = scalar_lea.vmem %s3, 32
        %v635 = vld [vmem:[%s634] sm:$0xff]
        %v636 = vld [vmem:[%s634 + $0x8] sm:$0xff]
        %v637 = vld [vmem:[%s634 + $0x10] sm:$0xff]
        %v638 = vld [vmem:[%s634 + $0x18] sm:$0x1]
        %v639 = vrot.slane %v548, 1
        %v640 = vsel %vm555, %v639, 0
        %v643 = vsel %vm559, %v638, 0
        %645 = vmatprep.subr.mxu0 0.0
        %646 = vmatpush1.msra.mxu0 %v635
        %647 = vmatprep.subr.mxu0 0.0
        %648 = vmatpush1.msra.mxu0 %v636
        %649 = vmatprep.subr.mxu0 0.0
        %650 = vmatpush1.msra.mxu0 %v637
        %651 = vmatprep.subr.mxu0 0.0
        %652 = vmatpush1.msra.mxu0 %v643
        %653 = vmatprep.subr.mxu0 0.0
        %654 = vmatpush1.msra.mxu0 0.0
        %655 = vmatprep.subr.mxu0 0.0
        %656 = vmatpush1.msra.mxu0 0.0
        %657 = vmatprep.subr.mxu0 0.0
        %658 = vmatpush1.msra.mxu0 0.0
        %659 = vmatprep.subr.mxu0 0.0
        %660 = vmatpush1.msra.mxu0 0.0
        %661 = vmatprep.subr.mxu0 0.0
        %662 = vmatpush1.msra.mxu0 0.0
        %663 = vmatprep.subr.mxu0 0.0
        %664 = vmatpush1.msra.mxu0 0.0
        %665 = vmatprep.subr.mxu0 0.0
        %666 = vmatpush1.msra.mxu0 0.0
        %667 = vmatprep.subr.mxu0 0.0
        %668 = vmatpush1.msra.mxu0 0.0
        %669 = vmatprep.subr.mxu0 0.0
        %670 = vmatpush1.msra.mxu0 0.0
        %671 = vmatprep.subr.mxu0 0.0
        %672 = vmatpush1.msra.mxu0 0.0
        %673 = vmatprep.subr.mxu0 0.0
        %674 = vmatpush1.msra.mxu0 0.0
        %675 = vmatprep.subr.mxu0 0.0
        %676 = vmatpush1.msra.mxu0 0.0
        %677 = vmatprep.subr.mxu0 0.0
        %678 = vmatpush1.msra.mxu0 0.0
        %679 = vmatprep.subr.mxu0 0.0
        %680 = vmatpush1.msra.mxu0 0.0
        %681 = vmatprep.subr.mxu0 0.0
        %682 = vmatpush1.msra.mxu0 0.0
        %683 = vmatprep.subr.mxu0 0.0
        %684 = vmatpush1.msra.mxu0 0.0
        %685 = vmatprep.subr.mxu0 0.0
        %686 = vmatpush1.msra.mxu0 0.0
        %687 = vmatprep.subr.mxu0 0.0
        %688 = vmatpush1.msra.mxu0 0.0
        %689 = vmatprep.subr.mxu0 0.0
        %690 = vmatpush1.msra.mxu0 0.0
        %691 = vmatprep.subr.mxu0 0.0
        %692 = vmatpush1.msra.mxu0 0.0
        %693 = vmatprep.subr.mxu0 0.0
        %694 = vmatpush1.msra.mxu0 0.0
        %695 = vmatprep.subr.mxu0 0.0
        %696 = vmatpush1.msra.mxu0 0.0
        %697 = vmatprep.subr.mxu0 0.0
        %698 = vmatpush1.msra.mxu0 0.0
        %699 = vmatprep.subr.mxu0 0.0
        %700 = vmatpush1.msra.mxu0 0.0
        %701 = vmatprep.subr.mxu0 0.0
        %702 = vmatpush1.msra.mxu0 0.0
        %703 = vmatprep.subr.mxu0 0.0
        %704 = vmatpush1.msra.mxu0 0.0
        %705 = vmatprep.subr.mxu0 0.0
        %706 = vmatpush1.msra.mxu0 0.0
        %707 = vmatprep.subr.mxu0 0.0
        %708 = vmatpush1.msra.mxu0 0.0
        %709 = vmatprep.mubr.f32.mxu0 0.0
        %710 = vmatmul.mubr.f32.gmra.mrb[0].mxu0 %v640
        %v711 = vpop.f32.mrb[0].mxu0
        %v712 = vadd.f32 0.0, %v711
        %v713 = vpop.f32.mrb[0].mxu0
        %714 = vdwg.mxu0
        %v715 = vadd.f32 %v633, %v712
        %s716 = scalar_lea.vmem %s3, 64
        %v717 = vld [vmem:[%s716] sm:$0xff]
        %v718 = vld [vmem:[%s716 + $0x8] sm:$0xff]
        %v719 = vld [vmem:[%s716 + $0x10] sm:$0xff]
        %v720 = vld [vmem:[%s716 + $0x18] sm:$0x1]
        %v721 = vrot.slane %v548, 2
        %v722 = vsel %vm555, %v721, 0
        %v725 = vsel %vm559, %v720, 0
        %727 = vmatprep.subr.mxu0 0.0
        %728 = vmatpush1.msra.mxu0 %v717
        %729 = vmatprep.subr.mxu0 0.0
        %730 = vmatpush1.msra.mxu0 %v718
        %731 = vmatprep.subr.mxu0 0.0
        %732 = vmatpush1.msra.mxu0 %v719
        %733 = vmatprep.subr.mxu0 0.0
        %734 = vmatpush1.msra.mxu0 %v725
        %735 = vmatprep.subr.mxu0 0.0
        %736 = vmatpush1.msra.mxu0 0.0
        %737 = vmatprep.subr.mxu0 0.0
        %738 = vmatpush1.msra.mxu0 0.0
        %739 = vmatprep.subr.mxu0 0.0
        %740 = vmatpush1.msra.mxu0 0.0
        %741 = vmatprep.subr.mxu0 0.0
        %742 = vmatpush1.msra.mxu0 0.0
        %743 = vmatprep.subr.mxu0 0.0
        %744 = vmatpush1.msra.mxu0 0.0
        %745 = vmatprep.subr.mxu0 0.0
        %746 = vmatpush1.msra.mxu0 0.0
        %747 = vmatprep.subr.mxu0 0.0
        %748 = vmatpush1.msra.mxu0 0.0
        %749 = vmatprep.subr.mxu0 0.0
        %750 = vmatpush1.msra.mxu0 0.0
        %751 = vmatprep.subr.mxu0 0.0
        %752 = vmatpush1.msra.mxu0 0.0
        %753 = vmatprep.subr.mxu0 0.0
        %754 = vmatpush1.msra.mxu0 0.0
        %755 = vmatprep.subr.mxu0 0.0
        %756 = vmatpush1.msra.mxu0 0.0
        %757 = vmatprep.subr.mxu0 0.0
        %758 = vmatpush1.msra.mxu0 0.0
        %759 = vmatprep.subr.mxu0 0.0
        %760 = vmatpush1.msra.mxu0 0.0
        %761 = vmatprep.subr.mxu0 0.0
        %762 = vmatpush1.msra.mxu0 0.0
        %763 = vmatprep.subr.mxu0 0.0
        %764 = vmatpush1.msra.mxu0 0.0
        %765 = vmatprep.subr.mxu0 0.0
        %766 = vmatpush1.msra.mxu0 0.0
        %767 = vmatprep.subr.mxu0 0.0
        %768 = vmatpush1.msra.mxu0 0.0
        %769 = vmatprep.subr.mxu0 0.0
        %770 = vmatpush1.msra.mxu0 0.0
        %771 = vmatprep.subr.mxu0 0.0
        %772 = vmatpush1.msra.mxu0 0.0
        %773 = vmatprep.subr.mxu0 0.0
        %774 = vmatpush1.msra.mxu0 0.0
        %775 = vmatprep.subr.mxu0 0.0
        %776 = vmatpush1.msra.mxu0 0.0
        %777 = vmatprep.subr.mxu0 0.0
        %778 = vmatpush1.msra.mxu0 0.0
        %779 = vmatprep.subr.mxu0 0.0
        %780 = vmatpush1.msra.mxu0 0.0
        %781 = vmatprep.subr.mxu0 0.0
        %782 = vmatpush1.msra.mxu0 0.0
        %783 = vmatprep.subr.mxu0 0.0
        %784 = vmatpush1.msra.mxu0 0.0
        %785 = vmatprep.subr.mxu0 0.0
        %786 = vmatpush1.msra.mxu0 0.0
        %787 = vmatprep.subr.mxu0 0.0
        %788 = vmatpush1.msra.mxu0 0.0
        %789 = vmatprep.subr.mxu0 0.0
        %790 = vmatpush1.msra.mxu0 0.0
        %791 = vmatprep.mubr.f32.mxu0 0.0
        %792 = vmatmul.mubr.f32.gmra.mrb[0].mxu0 %v722
        %v793 = vpop.f32.mrb[0].mxu0
        %v794 = vadd.f32 0.0, %v793
        %v795 = vpop.f32.mrb[0].mxu0
        %796 = vdwg.mxu0
        %v797 = vadd.f32 %v715, %v794
        %s798 = scalar_lea.vmem %s3, 96
        %v799 = vld [vmem:[%s798] sm:$0xff]
        %v800 = vld [vmem:[%s798 + $0x8] sm:$0xff]
        %v801 = vld [vmem:[%s798 + $0x10] sm:$0xff]
        %v802 = vld [vmem:[%s798 + $0x18] sm:$0x1]
        %v803 = vrot.slane %v548, 3
        %v804 = vsel %vm555, %v803, 0
        %v807 = vsel %vm559, %v802, 0
        %809 = vmatprep.subr.mxu0 0.0
        %810 = vmatpush1.msra.mxu0 %v799
        %811 = vmatprep.subr.mxu0 0.0
        %812 = vmatpush1.msra.mxu0 %v800
        %813 = vmatprep.subr.mxu0 0.0
        %814 = vmatpush1.msra.mxu0 %v801
        %815 = vmatprep.subr.mxu0 0.0
        %816 = vmatpush1.msra.mxu0 %v807
        %817 = vmatprep.subr.mxu0 0.0
        %818 = vmatpush1.msra.mxu0 0.0
        %819 = vmatprep.subr.mxu0 0.0
        %820 = vmatpush1.msra.mxu0 0.0
        %821 = vmatprep.subr.mxu0 0.0
        %822 = vmatpush1.msra.mxu0 0.0
        %823 = vmatprep.subr.mxu0 0.0
        %824 = vmatpush1.msra.mxu0 0.0
        %825 = vmatprep.subr.mxu0 0.0
        %826 = vmatpush1.msra.mxu0 0.0
        %827 = vmatprep.subr.mxu0 0.0
        %828 = vmatpush1.msra.mxu0 0.0
        %829 = vmatprep.subr.mxu0 0.0
        %830 = vmatpush1.msra.mxu0 0.0
        %831 = vmatprep.subr.mxu0 0.0
        %832 = vmatpush1.msra.mxu0 0.0
        %833 = vmatprep.subr.mxu0 0.0
        %834 = vmatpush1.msra.mxu0 0.0
        %835 = vmatprep.subr.mxu0 0.0
        %836 = vmatpush1.msra.mxu0 0.0
        %837 = vmatprep.subr.mxu0 0.0
        %838 = vmatpush1.msra.mxu0 0.0
        %839 = vmatprep.subr.mxu0 0.0
        %840 = vmatpush1.msra.mxu0 0.0
        %841 = vmatprep.subr.mxu0 0.0
        %842 = vmatpush1.msra.mxu0 0.0
        %843 = vmatprep.subr.mxu0 0.0
        %844 = vmatpush1.msra.mxu0 0.0
        %845 = vmatprep.subr.mxu0 0.0
        %846 = vmatpush1.msra.mxu0 0.0
        %847 = vmatprep.subr.mxu0 0.0
        %848 = vmatpush1.msra.mxu0 0.0
        %849 = vmatprep.subr.mxu0 0.0
        %850 = vmatpush1.msra.mxu0 0.0
        %851 = vmatprep.subr.mxu0 0.0
        %852 = vmatpush1.msra.mxu0 0.0
        %853 = vmatprep.subr.mxu0 0.0
        %854 = vmatpush1.msra.mxu0 0.0
        %855 = vmatprep.subr.mxu0 0.0
        %856 = vmatpush1.msra.mxu0 0.0
        %857 = vmatprep.subr.mxu0 0.0
        %858 = vmatpush1.msra.mxu0 0.0
        %859 = vmatprep.subr.mxu0 0.0
        %860 = vmatpush1.msra.mxu0 0.0
        %861 = vmatprep.subr.mxu0 0.0
        %862 = vmatpush1.msra.mxu0 0.0
        %863 = vmatprep.subr.mxu0 0.0
        %864 = vmatpush1.msra.mxu0 0.0
        %865 = vmatprep.subr.mxu0 0.0
        %866 = vmatpush1.msra.mxu0 0.0
        %867 = vmatprep.subr.mxu0 0.0
        %868 = vmatpush1.msra.mxu0 0.0
        %869 = vmatprep.subr.mxu0 0.0
        %870 = vmatpush1.msra.mxu0 0.0
        %871 = vmatprep.subr.mxu0 0.0
        %872 = vmatpush1.msra.mxu0 0.0
        %873 = vmatprep.mubr.f32.mxu0 0.0
        %874 = vmatmul.mubr.f32.gmra.mrb[0].mxu0 %v804
        %v875 = vpop.f32.mrb[0].mxu0
        %v876 = vadd.f32 0.0, %v875
        %v877 = vpop.f32.mrb[0].mxu0
        %878 = vdwg.mxu0
        %v879 = vadd.f32 %v797, %v876
        %s880 = scalar_lea.vmem %s3, 128
        %v881 = vld [vmem:[%s880] sm:$0xff]
        %v882 = vld [vmem:[%s880 + $0x8] sm:$0xff]
        %v883 = vld [vmem:[%s880 + $0x10] sm:$0xff]
        %v884 = vld [vmem:[%s880 + $0x18] sm:$0x1]
        %v885 = vrot.slane %v548, 4
        %v886 = vsel %vm555, %v885, 0
        %v889 = vsel %vm559, %v884, 0
        %891 = vmatprep.subr.mxu0 0.0
        %892 = vmatpush1.msra.mxu0 %v881
        %893 = vmatprep.subr.mxu0 0.0
        %894 = vmatpush1.msra.mxu0 %v882
        %895 = vmatprep.subr.mxu0 0.0
        %896 = vmatpush1.msra.mxu0 %v883
        %897 = vmatprep.subr.mxu0 0.0
        %898 = vmatpush1.msra.mxu0 %v889
        %899 = vmatprep.subr.mxu0 0.0
        %900 = vmatpush1.msra.mxu0 0.0
        %901 = vmatprep.subr.mxu0 0.0
        %902 = vmatpush1.msra.mxu0 0.0
        %903 = vmatprep.subr.mxu0 0.0
        %904 = vmatpush1.msra.mxu0 0.0
        %905 = vmatprep.subr.mxu0 0.0
        %906 = vmatpush1.msra.mxu0 0.0
        %907 = vmatprep.subr.mxu0 0.0
        %908 = vmatpush1.msra.mxu0 0.0
        %909 = vmatprep.subr.mxu0 0.0
        %910 = vmatpush1.msra.mxu0 0.0
        %911 = vmatprep.subr.mxu0 0.0
        %912 = vmatpush1.msra.mxu0 0.0
        %913 = vmatprep.subr.mxu0 0.0
        %914 = vmatpush1.msra.mxu0 0.0
        %915 = vmatprep.subr.mxu0 0.0
        %916 = vmatpush1.msra.mxu0 0.0
        %917 = vmatprep.subr.mxu0 0.0
        %918 = vmatpush1.msra.mxu0 0.0
        %919 = vmatprep.subr.mxu0 0.0
        %920 = vmatpush1.msra.mxu0 0.0
        %921 = vmatprep.subr.mxu0 0.0
        %922 = vmatpush1.msra.mxu0 0.0
        %923 = vmatprep.subr.mxu0 0.0
        %924 = vmatpush1.msra.mxu0 0.0
        %925 = vmatprep.subr.mxu0 0.0
        %926 = vmatpush1.msra.mxu0 0.0
        %927 = vmatprep.subr.mxu0 0.0
        %928 = vmatpush1.msra.mxu0 0.0
        %929 = vmatprep.subr.mxu0 0.0
        %930 = vmatpush1.msra.mxu0 0.0
        %931 = vmatprep.subr.mxu0 0.0
        %932 = vmatpush1.msra.mxu0 0.0
        %933 = vmatprep.subr.mxu0 0.0
        %934 = vmatpush1.msra.mxu0 0.0
        %935 = vmatprep.subr.mxu0 0.0
        %936 = vmatpush1.msra.mxu0 0.0
        %937 = vmatprep.subr.mxu0 0.0
        %938 = vmatpush1.msra.mxu0 0.0
        %939 = vmatprep.subr.mxu0 0.0
        %940 = vmatpush1.msra.mxu0 0.0
        %941 = vmatprep.subr.mxu0 0.0
        %942 = vmatpush1.msra.mxu0 0.0
        %943 = vmatprep.subr.mxu0 0.0
        %944 = vmatpush1.msra.mxu0 0.0
        %945 = vmatprep.subr.mxu0 0.0
        %946 = vmatpush1.msra.mxu0 0.0
        %947 = vmatprep.subr.mxu0 0.0
        %948 = vmatpush1.msra.mxu0 0.0
        %949 = vmatprep.subr.mxu0 0.0
        %950 = vmatpush1.msra.mxu0 0.0
        %951 = vmatprep.subr.mxu0 0.0
        %952 = vmatpush1.msra.mxu0 0.0
        %953 = vmatprep.subr.mxu0 0.0
        %954 = vmatpush1.msra.mxu0 0.0
        %955 = vmatprep.mubr.f32.mxu0 0.0
        %956 = vmatmul.mubr.f32.gmra.mrb[0].mxu0 %v886
        %v957 = vpop.f32.mrb[0].mxu0
        %v958 = vadd.f32 0.0, %v957
        %v959 = vpop.f32.mrb[0].mxu0
        %960 = vdwg.mxu0
        %v961 = vadd.f32 %v879, %v958
        %s962 = scalar_lea.vmem %s3, 160
        %v963 = vld [vmem:[%s962] sm:$0xff]
        %v964 = vld [vmem:[%s962 + $0x8] sm:$0xff]
        %v965 = vld [vmem:[%s962 + $0x10] sm:$0xff]
        %v966 = vld [vmem:[%s962 + $0x18] sm:$0x1]
        %v967 = vrot.slane %v548, 5
        %v968 = vsel %vm555, %v967, 0
        %v971 = vsel %vm559, %v966, 0
        %973 = vmatprep.subr.mxu0 0.0
        %974 = vmatpush1.msra.mxu0 %v963
        %975 = vmatprep.subr.mxu0 0.0
        %976 = vmatpush1.msra.mxu0 %v964
        %977 = vmatprep.subr.mxu0 0.0
        %978 = vmatpush1.msra.mxu0 %v965
        %979 = vmatprep.subr.mxu0 0.0
        %980 = vmatpush1.msra.mxu0 %v971
        %981 = vmatprep.subr.mxu0 0.0
        %982 = vmatpush1.msra.mxu0 0.0
        %983 = vmatprep.subr.mxu0 0.0
        %984 = vmatpush1.msra.mxu0 0.0
        %985 = vmatprep.subr.mxu0 0.0
        %986 = vmatpush1.msra.mxu0 0.0
        %987 = vmatprep.subr.mxu0 0.0
        %988 = vmatpush1.msra.mxu0 0.0
        %989 = vmatprep.subr.mxu0 0.0
        %990 = vmatpush1.msra.mxu0 0.0
        %991 = vmatprep.subr.mxu0 0.0
        %992 = vmatpush1.msra.mxu0 0.0
        %993 = vmatprep.subr.mxu0 0.0
        %994 = vmatpush1.msra.mxu0 0.0
        %995 = vmatprep.subr.mxu0 0.0
        %996 = vmatpush1.msra.mxu0 0.0
        %997 = vmatprep.subr.mxu0 0.0
        %998 = vmatpush1.msra.mxu0 0.0
        %999 = vmatprep.subr.mxu0 0.0
        %1000 = vmatpush1.msra.mxu0 0.0
        %1001 = vmatprep.subr.mxu0 0.0
        %1002 = vmatpush1.msra.mxu0 0.0
        %1003 = vmatprep.subr.mxu0 0.0
        %1004 = vmatpush1.msra.mxu0 0.0
        %1005 = vmatprep.subr.mxu0 0.0
        %1006 = vmatpush1.msra.mxu0 0.0
        %1007 = vmatprep.subr.mxu0 0.0
        %1008 = vmatpush1.msra.mxu0 0.0
        %1009 = vmatprep.subr.mxu0 0.0
        %1010 = vmatpush1.msra.mxu0 0.0
        %1011 = vmatprep.subr.mxu0 0.0
        %1012 = vmatpush1.msra.mxu0 0.0
        %1013 = vmatprep.subr.mxu0 0.0
        %1014 = vmatpush1.msra.mxu0 0.0
        %1015 = vmatprep.subr.mxu0 0.0
        %1016 = vmatpush1.msra.mxu0 0.0
        %1017 = vmatprep.subr.mxu0 0.0
        %1018 = vmatpush1.msra.mxu0 0.0
        %1019 = vmatprep.subr.mxu0 0.0
        %1020 = vmatpush1.msra.mxu0 0.0
        %1021 = vmatprep.subr.mxu0 0.0
        %1022 = vmatpush1.msra.mxu0 0.0
        %1023 = vmatprep.subr.mxu0 0.0
        %1024 = vmatpush1.msra.mxu0 0.0
        %1025 = vmatprep.subr.mxu0 0.0
        %1026 = vmatpush1.msra.mxu0 0.0
        %1027 = vmatprep.subr.mxu0 0.0
        %1028 = vmatpush1.msra.mxu0 0.0
        %1029 = vmatprep.subr.mxu0 0.0
        %1030 = vmatpush1.msra.mxu0 0.0
        %1031 = vmatprep.subr.mxu0 0.0
        %1032 = vmatpush1.msra.mxu0 0.0
        %1033 = vmatprep.subr.mxu0 0.0
        %1034 = vmatpush1.msra.mxu0 0.0
        %1035 = vmatprep.subr.mxu0 0.0
        %1036 = vmatpush1.msra.mxu0 0.0
        %1037 = vmatprep.mubr.f32.mxu0 0.0
        %1038 = vmatmul.mubr.f32.gmra.mrb[0].mxu0 %v968
        %v1039 = vpop.f32.mrb[0].mxu0
        %v1040 = vadd.f32 0.0, %v1039
        %v1041 = vpop.f32.mrb[0].mxu0
        %1042 = vdwg.mxu0
        %v1043 = vadd.f32 %v961, %v1040
        %s1044 = scalar_lea.vmem %s3, 192
        %v1045 = vld [vmem:[%s1044] sm:$0xff]
        %v1046 = vld [vmem:[%s1044 + $0x8] sm:$0xff]
        %v1047 = vld [vmem:[%s1044 + $0x10] sm:$0xff]
        %v1048 = vld [vmem:[%s1044 + $0x18] sm:$0x1]
        %v1049 = vrot.slane %v548, 6
        %v1050 = vsel %vm555, %v1049, 0
        %v1053 = vsel %vm559, %v1048, 0
        %1055 = vmatprep.subr.mxu0 0.0
        %1056 = vmatpush1.msra.mxu0 %v1045
        %1057 = vmatprep.subr.mxu0 0.0
        %1058 = vmatpush1.msra.mxu0 %v1046
        %1059 = vmatprep.subr.mxu0 0.0
        %1060 = vmatpush1.msra.mxu0 %v1047
        %1061 = vmatprep.subr.mxu0 0.0
        %1062 = vmatpush1.msra.mxu0 %v1053
        %1063 = vmatprep.subr.mxu0 0.0
        %1064 = vmatpush1.msra.mxu0 0.0
        %1065 = vmatprep.subr.mxu0 0.0
        %1066 = vmatpush1.msra.mxu0 0.0
        %1067 = vmatprep.subr.mxu0 0.0
        %1068 = vmatpush1.msra.mxu0 0.0
        %1069 = vmatprep.subr.mxu0 0.0
        %1070 = vmatpush1.msra.mxu0 0.0
        %1071 = vmatprep.subr.mxu0 0.0
        %1072 = vmatpush1.msra.mxu0 0.0
        %1073 = vmatprep.subr.mxu0 0.0
        %1074 = vmatpush1.msra.mxu0 0.0
        %1075 = vmatprep.subr.mxu0 0.0
        %1076 = vmatpush1.msra.mxu0 0.0
        %1077 = vmatprep.subr.mxu0 0.0
        %1078 = vmatpush1.msra.mxu0 0.0
        %1079 = vmatprep.subr.mxu0 0.0
        %1080 = vmatpush1.msra.mxu0 0.0
        %1081 = vmatprep.subr.mxu0 0.0
        %1082 = vmatpush1.msra.mxu0 0.0
        %1083 = vmatprep.subr.mxu0 0.0
        %1084 = vmatpush1.msra.mxu0 0.0
        %1085 = vmatprep.subr.mxu0 0.0
        %1086 = vmatpush1.msra.mxu0 0.0
        %1087 = vmatprep.subr.mxu0 0.0
        %1088 = vmatpush1.msra.mxu0 0.0
        %1089 = vmatprep.subr.mxu0 0.0
        %1090 = vmatpush1.msra.mxu0 0.0
        %1091 = vmatprep.subr.mxu0 0.0
        %1092 = vmatpush1.msra.mxu0 0.0
        %1093 = vmatprep.subr.mxu0 0.0
        %1094 = vmatpush1.msra.mxu0 0.0
        %1095 = vmatprep.subr.mxu0 0.0
        %1096 = vmatpush1.msra.mxu0 0.0
        %1097 = vmatprep.subr.mxu0 0.0
        %1098 = vmatpush1.msra.mxu0 0.0
        %1099 = vmatprep.subr.mxu0 0.0
        %1100 = vmatpush1.msra.mxu0 0.0
        %1101 = vmatprep.subr.mxu0 0.0
        %1102 = vmatpush1.msra.mxu0 0.0
        %1103 = vmatprep.subr.mxu0 0.0
        %1104 = vmatpush1.msra.mxu0 0.0
        %1105 = vmatprep.subr.mxu0 0.0
        %1106 = vmatpush1.msra.mxu0 0.0
        %1107 = vmatprep.subr.mxu0 0.0
        %1108 = vmatpush1.msra.mxu0 0.0
        %1109 = vmatprep.subr.mxu0 0.0
        %1110 = vmatpush1.msra.mxu0 0.0
        %1111 = vmatprep.subr.mxu0 0.0
        %1112 = vmatpush1.msra.mxu0 0.0
        %1113 = vmatprep.subr.mxu0 0.0
        %1114 = vmatpush1.msra.mxu0 0.0
        %1115 = vmatprep.subr.mxu0 0.0
        %1116 = vmatpush1.msra.mxu0 0.0
        %1117 = vmatprep.subr.mxu0 0.0
        %1118 = vmatpush1.msra.mxu0 0.0
        %1119 = vmatprep.mubr.f32.mxu0 0.0
        %1120 = vmatmul.mubr.f32.gmra.mrb[0].mxu0 %v1050
        %v1121 = vpop.f32.mrb[0].mxu0
        %v1122 = vadd.f32 0.0, %v1121
        %v1123 = vpop.f32.mrb[0].mxu0
        %1124 = vdwg.mxu0
        %v1125 = vadd.f32 %v1043, %v1122
        %s1126 = scalar_lea.vmem %s3, 224
        %v1127 = vld [vmem:[%s1126] sm:$0xff]
        %v1128 = vld [vmem:[%s1126 + $0x8] sm:$0xff]
        %v1129 = vld [vmem:[%s1126 + $0x10] sm:$0xff]
        %v1130 = vld [vmem:[%s1126 + $0x18] sm:$0x1]
        %v1131 = vrot.slane %v548, 7
        %v1132 = vsel %vm555, %v1131, 0
        %v1135 = vsel %vm559, %v1130, 0
        %1137 = vmatprep.subr.mxu0 0.0
        %1138 = vmatpush1.msra.mxu0 %v1127
        %1139 = vmatprep.subr.mxu0 0.0
        %1140 = vmatpush1.msra.mxu0 %v1128
        %1141 = vmatprep.subr.mxu0 0.0
        %1142 = vmatpush1.msra.mxu0 %v1129
        %1143 = vmatprep.subr.mxu0 0.0
        %1144 = vmatpush1.msra.mxu0 %v1135
        %1145 = vmatprep.subr.mxu0 0.0
        %1146 = vmatpush1.msra.mxu0 0.0
        %1147 = vmatprep.subr.mxu0 0.0
        %1148 = vmatpush1.msra.mxu0 0.0
        %1149 = vmatprep.subr.mxu0 0.0
        %1150 = vmatpush1.msra.mxu0 0.0
        %1151 = vmatprep.subr.mxu0 0.0
        %1152 = vmatpush1.msra.mxu0 0.0
        %1153 = vmatprep.subr.mxu0 0.0
        %1154 = vmatpush1.msra.mxu0 0.0
        %1155 = vmatprep.subr.mxu0 0.0
        %1156 = vmatpush1.msra.mxu0 0.0
        %1157 = vmatprep.subr.mxu0 0.0
        %1158 = vmatpush1.msra.mxu0 0.0
        %1159 = vmatprep.subr.mxu0 0.0
        %1160 = vmatpush1.msra.mxu0 0.0
        %1161 = vmatprep.subr.mxu0 0.0
        %1162 = vmatpush1.msra.mxu0 0.0
        %1163 = vmatprep.subr.mxu0 0.0
        %1164 = vmatpush1.msra.mxu0 0.0
        %1165 = vmatprep.subr.mxu0 0.0
        %1166 = vmatpush1.msra.mxu0 0.0
        %1167 = vmatprep.subr.mxu0 0.0
        %1168 = vmatpush1.msra.mxu0 0.0
        %1169 = vmatprep.subr.mxu0 0.0
        %1170 = vmatpush1.msra.mxu0 0.0
        %1171 = vmatprep.subr.mxu0 0.0
        %1172 = vmatpush1.msra.mxu0 0.0
        %1173 = vmatprep.subr.mxu0 0.0
        %1174 = vmatpush1.msra.mxu0 0.0
        %1175 = vmatprep.subr.mxu0 0.0
        %1176 = vmatpush1.msra.mxu0 0.0
        %1177 = vmatprep.subr.mxu0 0.0
        %1178 = vmatpush1.msra.mxu0 0.0
        %1179 = vmatprep.subr.mxu0 0.0
        %1180 = vmatpush1.msra.mxu0 0.0
        %1181 = vmatprep.subr.mxu0 0.0
        %1182 = vmatpush1.msra.mxu0 0.0
        %1183 = vmatprep.subr.mxu0 0.0
        %1184 = vmatpush1.msra.mxu0 0.0
        %1185 = vmatprep.subr.mxu0 0.0
        %1186 = vmatpush1.msra.mxu0 0.0
        %1187 = vmatprep.subr.mxu0 0.0
        %1188 = vmatpush1.msra.mxu0 0.0
        %1189 = vmatprep.subr.mxu0 0.0
        %1190 = vmatpush1.msra.mxu0 0.0
        %1191 = vmatprep.subr.mxu0 0.0
        %1192 = vmatpush1.msra.mxu0 0.0
        %1193 = vmatprep.subr.mxu0 0.0
        %1194 = vmatpush1.msra.mxu0 0.0
        %1195 = vmatprep.subr.mxu0 0.0
        %1196 = vmatpush1.msra.mxu0 0.0
        %1197 = vmatprep.subr.mxu0 0.0
        %1198 = vmatpush1.msra.mxu0 0.0
        %1199 = vmatprep.subr.mxu0 0.0
        %1200 = vmatpush1.msra.mxu0 0.0
        %1201 = vmatprep.mubr.f32.mxu0 0.0
        %1202 = vmatmul.mubr.f32.gmra.mrb[0].mxu0 %v1132
        %v1203 = vpop.f32.mrb[0].mxu0
        %v1204 = vadd.f32 0.0, %v1203
        %v1205 = vpop.f32.mrb[0].mxu0
        %1206 = vdwg.mxu0
        %v1207 = vadd.f32 %v1125, %v1204
        %s1208 = scalar_lea.vmem %s3, 256
        %v1209 = vld [vmem:[%s1208] sm:$0xff]
        %v1210 = vld [vmem:[%s1208 + $0x8] sm:$0xff]
        %v1211 = vld [vmem:[%s1208 + $0x10] sm:$0xff]
        %v1212 = vld [vmem:[%s1208 + $0x18] sm:$0x1]
        %v1214 = vsel %vm555, %v549, 0
        %v1217 = vsel %vm559, %v1212, 0
        %1219 = vmatprep.subr.mxu0 0.0
        %1220 = vmatpush1.msra.mxu0 %v1209
        %1221 = vmatprep.subr.mxu0 0.0
        %1222 = vmatpush1.msra.mxu0 %v1210
        %1223 = vmatprep.subr.mxu0 0.0
        %1224 = vmatpush1.msra.mxu0 %v1211
        %1225 = vmatprep.subr.mxu0 0.0
        %1226 = vmatpush1.msra.mxu0 %v1217
        %1227 = vmatprep.subr.mxu0 0.0
        %1228 = vmatpush1.msra.mxu0 0.0
        %1229 = vmatprep.subr.mxu0 0.0
        %1230 = vmatpush1.msra.mxu0 0.0
        %1231 = vmatprep.subr.mxu0 0.0
        %1232 = vmatpush1.msra.mxu0 0.0
        %1233 = vmatprep.subr.mxu0 0.0
        %1234 = vmatpush1.msra.mxu0 0.0
        %1235 = vmatprep.subr.mxu0 0.0
        %1236 = vmatpush1.msra.mxu0 0.0
        %1237 = vmatprep.subr.mxu0 0.0
        %1238 = vmatpush1.msra.mxu0 0.0
        %1239 = vmatprep.subr.mxu0 0.0
        %1240 = vmatpush1.msra.mxu0 0.0
        %1241 = vmatprep.subr.mxu0 0.0
        %1242 = vmatpush1.msra.mxu0 0.0
        %1243 = vmatprep.subr.mxu0 0.0
        %1244 = vmatpush1.msra.mxu0 0.0
        %1245 = vmatprep.subr.mxu0 0.0
        %1246 = vmatpush1.msra.mxu0 0.0
        %1247 = vmatprep.subr.mxu0 0.0
        %1248 = vmatpush1.msra.mxu0 0.0
        %1249 = vmatprep.subr.mxu0 0.0
        %1250 = vmatpush1.msra.mxu0 0.0
        %1251 = vmatprep.subr.mxu0 0.0
        %1252 = vmatpush1.msra.mxu0 0.0
        %1253 = vmatprep.subr.mxu0 0.0
        %1254 = vmatpush1.msra.mxu0 0.0
        %1255 = vmatprep.subr.mxu0 0.0
        %1256 = vmatpush1.msra.mxu0 0.0
        %1257 = vmatprep.subr.mxu0 0.0
        %1258 = vmatpush1.msra.mxu0 0.0
        %1259 = vmatprep.subr.mxu0 0.0
        %1260 = vmatpush1.msra.mxu0 0.0
        %1261 = vmatprep.subr.mxu0 0.0
        %1262 = vmatpush1.msra.mxu0 0.0
        %1263 = vmatprep.subr.mxu0 0.0
        %1264 = vmatpush1.msra.mxu0 0.0
        %1265 = vmatprep.subr.mxu0 0.0
        %1266 = vmatpush1.msra.mxu0 0.0
        %1267 = vmatprep.subr.mxu0 0.0
        %1268 = vmatpush1.msra.mxu0 0.0
        %1269 = vmatprep.subr.mxu0 0.0
        %1270 = vmatpush1.msra.mxu0 0.0
        %1271 = vmatprep.subr.mxu0 0.0
        %1272 = vmatpush1.msra.mxu0 0.0
        %1273 = vmatprep.subr.mxu0 0.0
        %1274 = vmatpush1.msra.mxu0 0.0
        %1275 = vmatprep.subr.mxu0 0.0
        %1276 = vmatpush1.msra.mxu0 0.0
        %1277 = vmatprep.subr.mxu0 0.0
        %1278 = vmatpush1.msra.mxu0 0.0
        %1279 = vmatprep.subr.mxu0 0.0
        %1280 = vmatpush1.msra.mxu0 0.0
        %1281 = vmatprep.subr.mxu0 0.0
        %1282 = vmatpush1.msra.mxu0 0.0
        %1283 = vmatprep.mubr.f32.mxu0 0.0
        %1284 = vmatmul.mubr.f32.gmra.mrb[0].mxu0 %v1214
        %v1285 = vpop.f32.mrb[0].mxu0
        %v1286 = vadd.f32 0.0, %v1285
        %v1287 = vpop.f32.mrb[0].mxu0
        %1288 = vdwg.mxu0
        %v1289 = vadd.f32 %v1207, %v1286
        %s1290 = scalar_lea.vmem %s3, 288
        %v1291 = vld [vmem:[%s1290] sm:$0xff]
        %v1292 = vld [vmem:[%s1290 + $0x8] sm:$0xff]
        %v1293 = vld [vmem:[%s1290 + $0x10] sm:$0xff]
        %v1294 = vld [vmem:[%s1290 + $0x18] sm:$0x1]
        %v1295 = vrot.slane %v549, 1
        %v1296 = vsel %vm555, %v1295, 0
        %v1299 = vsel %vm559, %v1294, 0
        %1301 = vmatprep.subr.mxu0 0.0
        %1302 = vmatpush1.msra.mxu0 %v1291
        %1303 = vmatprep.subr.mxu0 0.0
        %1304 = vmatpush1.msra.mxu0 %v1292
        %1305 = vmatprep.subr.mxu0 0.0
        %1306 = vmatpush1.msra.mxu0 %v1293
        %1307 = vmatprep.subr.mxu0 0.0
        %1308 = vmatpush1.msra.mxu0 %v1299
        %1309 = vmatprep.subr.mxu0 0.0
        %1310 = vmatpush1.msra.mxu0 0.0
        %1311 = vmatprep.subr.mxu0 0.0
        %1312 = vmatpush1.msra.mxu0 0.0
        %1313 = vmatprep.subr.mxu0 0.0
        %1314 = vmatpush1.msra.mxu0 0.0
        %1315 = vmatprep.subr.mxu0 0.0
        %1316 = vmatpush1.msra.mxu0 0.0
        %1317 = vmatprep.subr.mxu0 0.0
        %1318 = vmatpush1.msra.mxu0 0.0
        %1319 = vmatprep.subr.mxu0 0.0
        %1320 = vmatpush1.msra.mxu0 0.0
        %1321 = vmatprep.subr.mxu0 0.0
        %1322 = vmatpush1.msra.mxu0 0.0
        %1323 = vmatprep.subr.mxu0 0.0
        %1324 = vmatpush1.msra.mxu0 0.0
        %1325 = vmatprep.subr.mxu0 0.0
        %1326 = vmatpush1.msra.mxu0 0.0
        %1327 = vmatprep.subr.mxu0 0.0
        %1328 = vmatpush1.msra.mxu0 0.0
        %1329 = vmatprep.subr.mxu0 0.0
        %1330 = vmatpush1.msra.mxu0 0.0
        %1331 = vmatprep.subr.mxu0 0.0
        %1332 = vmatpush1.msra.mxu0 0.0
        %1333 = vmatprep.subr.mxu0 0.0
        %1334 = vmatpush1.msra.mxu0 0.0
        %1335 = vmatprep.subr.mxu0 0.0
        %1336 = vmatpush1.msra.mxu0 0.0
        %1337 = vmatprep.subr.mxu0 0.0
        %1338 = vmatpush1.msra.mxu0 0.0
        %1339 = vmatprep.subr.mxu0 0.0
        %1340 = vmatpush1.msra.mxu0 0.0
        %1341 = vmatprep.subr.mxu0 0.0
        %1342 = vmatpush1.msra.mxu0 0.0
        %1343 = vmatprep.subr.mxu0 0.0
        %1344 = vmatpush1.msra.mxu0 0.0
        %1345 = vmatprep.subr.mxu0 0.0
        %1346 = vmatpush1.msra.mxu0 0.0
        %1347 = vmatprep.subr.mxu0 0.0
        %1348 = vmatpush1.msra.mxu0 0.0
        %1349 = vmatprep.subr.mxu0 0.0
        %1350 = vmatpush1.msra.mxu0 0.0
        %1351 = vmatprep.subr.mxu0 0.0
        %1352 = vmatpush1.msra.mxu0 0.0
        %1353 = vmatprep.subr.mxu0 0.0
        %1354 = vmatpush1.msra.mxu0 0.0
        %1355 = vmatprep.subr.mxu0 0.0
        %1356 = vmatpush1.msra.mxu0 0.0
        %1357 = vmatprep.subr.mxu0 0.0
        %1358 = vmatpush1.msra.mxu0 0.0
        %1359 = vmatprep.subr.mxu0 0.0
        %1360 = vmatpush1.msra.mxu0 0.0
        %1361 = vmatprep.subr.mxu0 0.0
        %1362 = vmatpush1.msra.mxu0 0.0
        %1363 = vmatprep.subr.mxu0 0.0
        %1364 = vmatpush1.msra.mxu0 0.0
        %1365 = vmatprep.mubr.f32.mxu0 0.0
        %1366 = vmatmul.mubr.f32.gmra.mrb[0].mxu0 %v1296
        %v1367 = vpop.f32.mrb[0].mxu0
        %v1368 = vadd.f32 0.0, %v1367
        %v1369 = vpop.f32.mrb[0].mxu0
        %1370 = vdwg.mxu0
        %v1371 = vadd.f32 %v1289, %v1368
        %s1372 = scalar_lea.vmem %s3, 320
        %v1373 = vld [vmem:[%s1372] sm:$0xff]
        %v1374 = vld [vmem:[%s1372 + $0x8] sm:$0xff]
        %v1375 = vld [vmem:[%s1372 + $0x10] sm:$0xff]
        %v1376 = vld [vmem:[%s1372 + $0x18] sm:$0x1]
        %v1377 = vrot.slane %v549, 2
        %v1378 = vsel %vm555, %v1377, 0
        %v1381 = vsel %vm559, %v1376, 0
        %1383 = vmatprep.subr.mxu0 0.0
        %1384 = vmatpush1.msra.mxu0 %v1373
        %1385 = vmatprep.subr.mxu0 0.0
        %1386 = vmatpush1.msra.mxu0 %v1374
        %1387 = vmatprep.subr.mxu0 0.0
        %1388 = vmatpush1.msra.mxu0 %v1375
        %1389 = vmatprep.subr.mxu0 0.0
        %1390 = vmatpush1.msra.mxu0 %v1381
        %1391 = vmatprep.subr.mxu0 0.0
        %1392 = vmatpush1.msra.mxu0 0.0
        %1393 = vmatprep.subr.mxu0 0.0
        %1394 = vmatpush1.msra.mxu0 0.0
        %1395 = vmatprep.subr.mxu0 0.0
        %1396 = vmatpush1.msra.mxu0 0.0
        %1397 = vmatprep.subr.mxu0 0.0
        %1398 = vmatpush1.msra.mxu0 0.0
        %1399 = vmatprep.subr.mxu0 0.0
        %1400 = vmatpush1.msra.mxu0 0.0
        %1401 = vmatprep.subr.mxu0 0.0
        %1402 = vmatpush1.msra.mxu0 0.0
        %1403 = vmatprep.subr.mxu0 0.0
        %1404 = vmatpush1.msra.mxu0 0.0
        %1405 = vmatprep.subr.mxu0 0.0
        %1406 = vmatpush1.msra.mxu0 0.0
        %1407 = vmatprep.subr.mxu0 0.0
        %1408 = vmatpush1.msra.mxu0 0.0
        %1409 = vmatprep.subr.mxu0 0.0
        %1410 = vmatpush1.msra.mxu0 0.0
        %1411 = vmatprep.subr.mxu0 0.0
        %1412 = vmatpush1.msra.mxu0 0.0
        %1413 = vmatprep.subr.mxu0 0.0
        %1414 = vmatpush1.msra.mxu0 0.0
        %1415 = vmatprep.subr.mxu0 0.0
        %1416 = vmatpush1.msra.mxu0 0.0
        %1417 = vmatprep.subr.mxu0 0.0
        %1418 = vmatpush1.msra.mxu0 0.0
        %1419 = vmatprep.subr.mxu0 0.0
        %1420 = vmatpush1.msra.mxu0 0.0
        %1421 = vmatprep.subr.mxu0 0.0
        %1422 = vmatpush1.msra.mxu0 0.0
        %1423 = vmatprep.subr.mxu0 0.0
        %1424 = vmatpush1.msra.mxu0 0.0
        %1425 = vmatprep.subr.mxu0 0.0
        %1426 = vmatpush1.msra.mxu0 0.0
        %1427 = vmatprep.subr.mxu0 0.0
        %1428 = vmatpush1.msra.mxu0 0.0
        %1429 = vmatprep.subr.mxu0 0.0
        %1430 = vmatpush1.msra.mxu0 0.0
        %1431 = vmatprep.subr.mxu0 0.0
        %1432 = vmatpush1.msra.mxu0 0.0
        %1433 = vmatprep.subr.mxu0 0.0
        %1434 = vmatpush1.msra.mxu0 0.0
        %1435 = vmatprep.subr.mxu0 0.0
        %1436 = vmatpush1.msra.mxu0 0.0
        %1437 = vmatprep.subr.mxu0 0.0
        %1438 = vmatpush1.msra.mxu0 0.0
        %1439 = vmatprep.subr.mxu0 0.0
        %1440 = vmatpush1.msra.mxu0 0.0
        %1441 = vmatprep.subr.mxu0 0.0
        %1442 = vmatpush1.msra.mxu0 0.0
        %1443 = vmatprep.subr.mxu0 0.0
        %1444 = vmatpush1.msra.mxu0 0.0
        %1445 = vmatprep.subr.mxu0 0.0
        %1446 = vmatpush1.msra.mxu0 0.0
        %1447 = vmatprep.mubr.f32.mxu0 0.0
        %1448 = vmatmul.mubr.f32.gmra.mrb[0].mxu0 %v1378
        %v1449 = vpop.f32.mrb[0].mxu0
        %v1450 = vadd.f32 0.0, %v1449
        %v1451 = vpop.f32.mrb[0].mxu0
        %1452 = vdwg.mxu0
        %v1453 = vadd.f32 %v1371, %v1450
        %s1454 = scalar_lea.vmem %s3, 352
        %v1455 = vld [vmem:[%s1454] sm:$0xff]
        %v1456 = vld [vmem:[%s1454 + $0x8] sm:$0xff]
        %v1457 = vld [vmem:[%s1454 + $0x10] sm:$0xff]
        %v1458 = vld [vmem:[%s1454 + $0x18] sm:$0x1]
        %v1459 = vrot.slane %v549, 3
        %v1460 = vsel %vm555, %v1459, 0
        %v1463 = vsel %vm559, %v1458, 0
        %1465 = vmatprep.subr.mxu0 0.0
        %1466 = vmatpush1.msra.mxu0 %v1455
        %1467 = vmatprep.subr.mxu0 0.0
        %1468 = vmatpush1.msra.mxu0 %v1456
        %1469 = vmatprep.subr.mxu0 0.0
        %1470 = vmatpush1.msra.mxu0 %v1457
        %1471 = vmatprep.subr.mxu0 0.0
        %1472 = vmatpush1.msra.mxu0 %v1463
        %1473 = vmatprep.subr.mxu0 0.0
        %1474 = vmatpush1.msra.mxu0 0.0
        %1475 = vmatprep.subr.mxu0 0.0
        %1476 = vmatpush1.msra.mxu0 0.0
        %1477 = vmatprep.subr.mxu0 0.0
        %1478 = vmatpush1.msra.mxu0 0.0
        %1479 = vmatprep.subr.mxu0 0.0
        %1480 = vmatpush1.msra.mxu0 0.0
        %1481 = vmatprep.subr.mxu0 0.0
        %1482 = vmatpush1.msra.mxu0 0.0
        %1483 = vmatprep.subr.mxu0 0.0
        %1484 = vmatpush1.msra.mxu0 0.0
        %1485 = vmatprep.subr.mxu0 0.0
        %1486 = vmatpush1.msra.mxu0 0.0
        %1487 = vmatprep.subr.mxu0 0.0
        %1488 = vmatpush1.msra.mxu0 0.0
        %1489 = vmatprep.subr.mxu0 0.0
        %1490 = vmatpush1.msra.mxu0 0.0
        %1491 = vmatprep.subr.mxu0 0.0
        %1492 = vmatpush1.msra.mxu0 0.0
        %1493 = vmatprep.subr.mxu0 0.0
        %1494 = vmatpush1.msra.mxu0 0.0
        %1495 = vmatprep.subr.mxu0 0.0
        %1496 = vmatpush1.msra.mxu0 0.0
        %1497 = vmatprep.subr.mxu0 0.0
        %1498 = vmatpush1.msra.mxu0 0.0
        %1499 = vmatprep.subr.mxu0 0.0
        %1500 = vmatpush1.msra.mxu0 0.0
        %1501 = vmatprep.subr.mxu0 0.0
        %1502 = vmatpush1.msra.mxu0 0.0
        %1503 = vmatprep.subr.mxu0 0.0
        %1504 = vmatpush1.msra.mxu0 0.0
        %1505 = vmatprep.subr.mxu0 0.0
        %1506 = vmatpush1.msra.mxu0 0.0
        %1507 = vmatprep.subr.mxu0 0.0
        %1508 = vmatpush1.msra.mxu0 0.0
        %1509 = vmatprep.subr.mxu0 0.0
        %1510 = vmatpush1.msra.mxu0 0.0
        %1511 = vmatprep.subr.mxu0 0.0
        %1512 = vmatpush1.msra.mxu0 0.0
        %1513 = vmatprep.subr.mxu0 0.0
        %1514 = vmatpush1.msra.mxu0 0.0
        %1515 = vmatprep.subr.mxu0 0.0
        %1516 = vmatpush1.msra.mxu0 0.0
        %1517 = vmatprep.subr.mxu0 0.0
        %1518 = vmatpush1.msra.mxu0 0.0
        %1519 = vmatprep.subr.mxu0 0.0
        %1520 = vmatpush1.msra.mxu0 0.0
        %1521 = vmatprep.subr.mxu0 0.0
        %1522 = vmatpush1.msra.mxu0 0.0
        %1523 = vmatprep.subr.mxu0 0.0
        %1524 = vmatpush1.msra.mxu0 0.0
        %1525 = vmatprep.subr.mxu0 0.0
        %1526 = vmatpush1.msra.mxu0 0.0
        %1527 = vmatprep.subr.mxu0 0.0
        %1528 = vmatpush1.msra.mxu0 0.0
        %1529 = vmatprep.mubr.f32.mxu0 0.0
        %1530 = vmatmul.mubr.f32.gmra.mrb[0].mxu0 %v1460
        %v1531 = vpop.f32.mrb[0].mxu0
        %v1532 = vadd.f32 0.0, %v1531
        %v1533 = vpop.f32.mrb[0].mxu0
        %1534 = vdwg.mxu0
        %v1535 = vadd.f32 %v1453, %v1532
        %s1536 = scalar_lea.vmem %s3, 384
        %v1537 = vld [vmem:[%s1536] sm:$0xff]
        %v1538 = vld [vmem:[%s1536 + $0x8] sm:$0xff]
        %v1539 = vld [vmem:[%s1536 + $0x10] sm:$0xff]
        %v1540 = vld [vmem:[%s1536 + $0x18] sm:$0x1]
        %v1541 = vrot.slane %v549, 4
        %v1542 = vsel %vm555, %v1541, 0
        %v1545 = vsel %vm559, %v1540, 0
        %1547 = vmatprep.subr.mxu0 0.0
        %1548 = vmatpush1.msra.mxu0 %v1537
        %1549 = vmatprep.subr.mxu0 0.0
        %1550 = vmatpush1.msra.mxu0 %v1538
        %1551 = vmatprep.subr.mxu0 0.0
        %1552 = vmatpush1.msra.mxu0 %v1539
        %1553 = vmatprep.subr.mxu0 0.0
        %1554 = vmatpush1.msra.mxu0 %v1545
        %1555 = vmatprep.subr.mxu0 0.0
        %1556 = vmatpush1.msra.mxu0 0.0
        %1557 = vmatprep.subr.mxu0 0.0
        %1558 = vmatpush1.msra.mxu0 0.0
        %1559 = vmatprep.subr.mxu0 0.0
        %1560 = vmatpush1.msra.mxu0 0.0
        %1561 = vmatprep.subr.mxu0 0.0
        %1562 = vmatpush1.msra.mxu0 0.0
        %1563 = vmatprep.subr.mxu0 0.0
        %1564 = vmatpush1.msra.mxu0 0.0
        %1565 = vmatprep.subr.mxu0 0.0
        %1566 = vmatpush1.msra.mxu0 0.0
        %1567 = vmatprep.subr.mxu0 0.0
        %1568 = vmatpush1.msra.mxu0 0.0
        %1569 = vmatprep.subr.mxu0 0.0
        %1570 = vmatpush1.msra.mxu0 0.0
        %1571 = vmatprep.subr.mxu0 0.0
        %1572 = vmatpush1.msra.mxu0 0.0
        %1573 = vmatprep.subr.mxu0 0.0
        %1574 = vmatpush1.msra.mxu0 0.0
        %1575 = vmatprep.subr.mxu0 0.0
        %1576 = vmatpush1.msra.mxu0 0.0
        %1577 = vmatprep.subr.mxu0 0.0
        %1578 = vmatpush1.msra.mxu0 0.0
        %1579 = vmatprep.subr.mxu0 0.0
        %1580 = vmatpush1.msra.mxu0 0.0
        %1581 = vmatprep.subr.mxu0 0.0
        %1582 = vmatpush1.msra.mxu0 0.0
        %1583 = vmatprep.subr.mxu0 0.0
        %1584 = vmatpush1.msra.mxu0 0.0
        %1585 = vmatprep.subr.mxu0 0.0
        %1586 = vmatpush1.msra.mxu0 0.0
        %1587 = vmatprep.subr.mxu0 0.0
        %1588 = vmatpush1.msra.mxu0 0.0
        %1589 = vmatprep.subr.mxu0 0.0
        %1590 = vmatpush1.msra.mxu0 0.0
        %1591 = vmatprep.subr.mxu0 0.0
        %1592 = vmatpush1.msra.mxu0 0.0
        %1593 = vmatprep.subr.mxu0 0.0
        %1594 = vmatpush1.msra.mxu0 0.0
        %1595 = vmatprep.subr.mxu0 0.0
        %1596 = vmatpush1.msra.mxu0 0.0
        %1597 = vmatprep.subr.mxu0 0.0
        %1598 = vmatpush1.msra.mxu0 0.0
        %1599 = vmatprep.subr.mxu0 0.0
        %1600 = vmatpush1.msra.mxu0 0.0
        %1601 = vmatprep.subr.mxu0 0.0
        %1602 = vmatpush1.msra.mxu0 0.0
        %1603 = vmatprep.subr.mxu0 0.0
        %1604 = vmatpush1.msra.mxu0 0.0
        %1605 = vmatprep.subr.mxu0 0.0
        %1606 = vmatpush1.msra.mxu0 0.0
        %1607 = vmatprep.subr.mxu0 0.0
        %1608 = vmatpush1.msra.mxu0 0.0
        %1609 = vmatprep.subr.mxu0 0.0
        %1610 = vmatpush1.msra.mxu0 0.0
        %1611 = vmatprep.mubr.f32.mxu0 0.0
        %1612 = vmatmul.mubr.f32.gmra.mrb[0].mxu0 %v1542
        %v1613 = vpop.f32.mrb[0].mxu0
        %v1614 = vadd.f32 0.0, %v1613
        %v1615 = vpop.f32.mrb[0].mxu0
        %1616 = vdwg.mxu0
        %v1617 = vadd.f32 %v1535, %v1614
        %s1618 = scalar_lea.vmem %s3, 416
        %v1619 = vld [vmem:[%s1618] sm:$0xff]
        %v1620 = vld [vmem:[%s1618 + $0x8] sm:$0xff]
        %v1621 = vld [vmem:[%s1618 + $0x10] sm:$0xff]
        %v1622 = vld [vmem:[%s1618 + $0x18] sm:$0x1]
        %v1623 = vrot.slane %v549, 5
        %v1624 = vsel %vm555, %v1623, 0
        %v1627 = vsel %vm559, %v1622, 0
        %1629 = vmatprep.subr.mxu0 0.0
        %1630 = vmatpush1.msra.mxu0 %v1619
        %1631 = vmatprep.subr.mxu0 0.0
        %1632 = vmatpush1.msra.mxu0 %v1620
        %1633 = vmatprep.subr.mxu0 0.0
        %1634 = vmatpush1.msra.mxu0 %v1621
        %1635 = vmatprep.subr.mxu0 0.0
        %1636 = vmatpush1.msra.mxu0 %v1627
        %1637 = vmatprep.subr.mxu0 0.0
        %1638 = vmatpush1.msra.mxu0 0.0
        %1639 = vmatprep.subr.mxu0 0.0
        %1640 = vmatpush1.msra.mxu0 0.0
        %1641 = vmatprep.subr.mxu0 0.0
        %1642 = vmatpush1.msra.mxu0 0.0
        %1643 = vmatprep.subr.mxu0 0.0
        %1644 = vmatpush1.msra.mxu0 0.0
        %1645 = vmatprep.subr.mxu0 0.0
        %1646 = vmatpush1.msra.mxu0 0.0
        %1647 = vmatprep.subr.mxu0 0.0
        %1648 = vmatpush1.msra.mxu0 0.0
        %1649 = vmatprep.subr.mxu0 0.0
        %1650 = vmatpush1.msra.mxu0 0.0
        %1651 = vmatprep.subr.mxu0 0.0
        %1652 = vmatpush1.msra.mxu0 0.0
        %1653 = vmatprep.subr.mxu0 0.0
        %1654 = vmatpush1.msra.mxu0 0.0
        %1655 = vmatprep.subr.mxu0 0.0
        %1656 = vmatpush1.msra.mxu0 0.0
        %1657 = vmatprep.subr.mxu0 0.0
        %1658 = vmatpush1.msra.mxu0 0.0
        %1659 = vmatprep.subr.mxu0 0.0
        %1660 = vmatpush1.msra.mxu0 0.0
        %1661 = vmatprep.subr.mxu0 0.0
        %1662 = vmatpush1.msra.mxu0 0.0
        %1663 = vmatprep.subr.mxu0 0.0
        %1664 = vmatpush1.msra.mxu0 0.0
        %1665 = vmatprep.subr.mxu0 0.0
        %1666 = vmatpush1.msra.mxu0 0.0
        %1667 = vmatprep.subr.mxu0 0.0
        %1668 = vmatpush1.msra.mxu0 0.0
        %1669 = vmatprep.subr.mxu0 0.0
        %1670 = vmatpush1.msra.mxu0 0.0
        %1671 = vmatprep.subr.mxu0 0.0
        %1672 = vmatpush1.msra.mxu0 0.0
        %1673 = vmatprep.subr.mxu0 0.0
        %1674 = vmatpush1.msra.mxu0 0.0
        %1675 = vmatprep.subr.mxu0 0.0
        %1676 = vmatpush1.msra.mxu0 0.0
        %1677 = vmatprep.subr.mxu0 0.0
        %1678 = vmatpush1.msra.mxu0 0.0
        %1679 = vmatprep.subr.mxu0 0.0
        %1680 = vmatpush1.msra.mxu0 0.0
        %1681 = vmatprep.subr.mxu0 0.0
        %1682 = vmatpush1.msra.mxu0 0.0
        %1683 = vmatprep.subr.mxu0 0.0
        %1684 = vmatpush1.msra.mxu0 0.0
        %1685 = vmatprep.subr.mxu0 0.0
        %1686 = vmatpush1.msra.mxu0 0.0
        %1687 = vmatprep.subr.mxu0 0.0
        %1688 = vmatpush1.msra.mxu0 0.0
        %1689 = vmatprep.subr.mxu0 0.0
        %1690 = vmatpush1.msra.mxu0 0.0
        %1691 = vmatprep.subr.mxu0 0.0
        %1692 = vmatpush1.msra.mxu0 0.0
        %1693 = vmatprep.mubr.f32.mxu0 0.0
        %1694 = vmatmul.mubr.f32.gmra.mrb[0].mxu0 %v1624
        %v1695 = vpop.f32.mrb[0].mxu0
        %v1696 = vadd.f32 0.0, %v1695
        %v1697 = vpop.f32.mrb[0].mxu0
        %1698 = vdwg.mxu0
        %v1699 = vadd.f32 %v1617, %v1696
        %s1700 = scalar_lea.vmem %s3, 448
        %v1701 = vld [vmem:[%s1700] sm:$0xff]
        %v1702 = vld [vmem:[%s1700 + $0x8] sm:$0xff]
        %v1703 = vld [vmem:[%s1700 + $0x10] sm:$0xff]
        %v1704 = vld [vmem:[%s1700 + $0x18] sm:$0x1]
        %v1705 = vrot.slane %v549, 6
        %v1706 = vsel %vm555, %v1705, 0
        %v1709 = vsel %vm559, %v1704, 0
        %1711 = vmatprep.subr.mxu0 0.0
        %1712 = vmatpush1.msra.mxu0 %v1701
        %1713 = vmatprep.subr.mxu0 0.0
        %1714 = vmatpush1.msra.mxu0 %v1702
        %1715 = vmatprep.subr.mxu0 0.0
        %1716 = vmatpush1.msra.mxu0 %v1703
        %1717 = vmatprep.subr.mxu0 0.0
        %1718 = vmatpush1.msra.mxu0 %v1709
        %1719 = vmatprep.subr.mxu0 0.0
        %1720 = vmatpush1.msra.mxu0 0.0
        %1721 = vmatprep.subr.mxu0 0.0
        %1722 = vmatpush1.msra.mxu0 0.0
        %1723 = vmatprep.subr.mxu0 0.0
        %1724 = vmatpush1.msra.mxu0 0.0
        %1725 = vmatprep.subr.mxu0 0.0
        %1726 = vmatpush1.msra.mxu0 0.0
        %1727 = vmatprep.subr.mxu0 0.0
        %1728 = vmatpush1.msra.mxu0 0.0
        %1729 = vmatprep.subr.mxu0 0.0
        %1730 = vmatpush1.msra.mxu0 0.0
        %1731 = vmatprep.subr.mxu0 0.0
        %1732 = vmatpush1.msra.mxu0 0.0
        %1733 = vmatprep.subr.mxu0 0.0
        %1734 = vmatpush1.msra.mxu0 0.0
        %1735 = vmatprep.subr.mxu0 0.0
        %1736 = vmatpush1.msra.mxu0 0.0
        %1737 = vmatprep.subr.mxu0 0.0
        %1738 = vmatpush1.msra.mxu0 0.0
        %1739 = vmatprep.subr.mxu0 0.0
        %1740 = vmatpush1.msra.mxu0 0.0
        %1741 = vmatprep.subr.mxu0 0.0
        %1742 = vmatpush1.msra.mxu0 0.0
        %1743 = vmatprep.subr.mxu0 0.0
        %1744 = vmatpush1.msra.mxu0 0.0
        %1745 = vmatprep.subr.mxu0 0.0
        %1746 = vmatpush1.msra.mxu0 0.0
        %1747 = vmatprep.subr.mxu0 0.0
        %1748 = vmatpush1.msra.mxu0 0.0
        %1749 = vmatprep.subr.mxu0 0.0
        %1750 = vmatpush1.msra.mxu0 0.0
        %1751 = vmatprep.subr.mxu0 0.0
        %1752 = vmatpush1.msra.mxu0 0.0
        %1753 = vmatprep.subr.mxu0 0.0
        %1754 = vmatpush1.msra.mxu0 0.0
        %1755 = vmatprep.subr.mxu0 0.0
        %1756 = vmatpush1.msra.mxu0 0.0
        %1757 = vmatprep.subr.mxu0 0.0
        %1758 = vmatpush1.msra.mxu0 0.0
        %1759 = vmatprep.subr.mxu0 0.0
        %1760 = vmatpush1.msra.mxu0 0.0
        %1761 = vmatprep.subr.mxu0 0.0
        %1762 = vmatpush1.msra.mxu0 0.0
        %1763 = vmatprep.subr.mxu0 0.0
        %1764 = vmatpush1.msra.mxu0 0.0
        %1765 = vmatprep.subr.mxu0 0.0
        %1766 = vmatpush1.msra.mxu0 0.0
        %1767 = vmatprep.subr.mxu0 0.0
        %1768 = vmatpush1.msra.mxu0 0.0
        %1769 = vmatprep.subr.mxu0 0.0
        %1770 = vmatpush1.msra.mxu0 0.0
        %1771 = vmatprep.subr.mxu0 0.0
        %1772 = vmatpush1.msra.mxu0 0.0
        %1773 = vmatprep.subr.mxu0 0.0
        %1774 = vmatpush1.msra.mxu0 0.0
        %1775 = vmatprep.mubr.f32.mxu0 0.0
        %1776 = vmatmul.mubr.f32.gmra.mrb[0].mxu0 %v1706
        %v1777 = vpop.f32.mrb[0].mxu0
        %v1778 = vadd.f32 0.0, %v1777
        %v1779 = vpop.f32.mrb[0].mxu0
        %1780 = vdwg.mxu0
        %v1781 = vadd.f32 %v1699, %v1778
        %s1782 = scalar_lea.vmem %s3, 480
        %v1783 = vld [vmem:[%s1782] sm:$0xff]
        %v1784 = vld [vmem:[%s1782 + $0x8] sm:$0xff]
        %v1785 = vld [vmem:[%s1782 + $0x10] sm:$0xff]
        %v1786 = vld [vmem:[%s1782 + $0x18] sm:$0x1]
        %v1787 = vrot.slane %v549, 7
        %v1788 = vsel %vm555, %v1787, 0
        %v1791 = vsel %vm559, %v1786, 0
        %1793 = vmatprep.subr.mxu0 0.0
        %1794 = vmatpush1.msra.mxu0 %v1783
        %1795 = vmatprep.subr.mxu0 0.0
        %1796 = vmatpush1.msra.mxu0 %v1784
        %1797 = vmatprep.subr.mxu0 0.0
        %1798 = vmatpush1.msra.mxu0 %v1785
        %1799 = vmatprep.subr.mxu0 0.0
        %1800 = vmatpush1.msra.mxu0 %v1791
        %1801 = vmatprep.subr.mxu0 0.0
        %1802 = vmatpush1.msra.mxu0 0.0
        %1803 = vmatprep.subr.mxu0 0.0
        %1804 = vmatpush1.msra.mxu0 0.0
        %1805 = vmatprep.subr.mxu0 0.0
        %1806 = vmatpush1.msra.mxu0 0.0
        %1807 = vmatprep.subr.mxu0 0.0
        %1808 = vmatpush1.msra.mxu0 0.0
        %1809 = vmatprep.subr.mxu0 0.0
        %1810 = vmatpush1.msra.mxu0 0.0
        %1811 = vmatprep.subr.mxu0 0.0
        %1812 = vmatpush1.msra.mxu0 0.0
        %1813 = vmatprep.subr.mxu0 0.0
        %1814 = vmatpush1.msra.mxu0 0.0
        %1815 = vmatprep.subr.mxu0 0.0
        %1816 = vmatpush1.msra.mxu0 0.0
        %1817 = vmatprep.subr.mxu0 0.0
        %1818 = vmatpush1.msra.mxu0 0.0
        %1819 = vmatprep.subr.mxu0 0.0
        %1820 = vmatpush1.msra.mxu0 0.0
        %1821 = vmatprep.subr.mxu0 0.0
        %1822 = vmatpush1.msra.mxu0 0.0
        %1823 = vmatprep.subr.mxu0 0.0
        %1824 = vmatpush1.msra.mxu0 0.0
        %1825 = vmatprep.subr.mxu0 0.0
        %1826 = vmatpush1.msra.mxu0 0.0
        %1827 = vmatprep.subr.mxu0 0.0
        %1828 = vmatpush1.msra.mxu0 0.0
        %1829 = vmatprep.subr.mxu0 0.0
        %1830 = vmatpush1.msra.mxu0 0.0
        %1831 = vmatprep.subr.mxu0 0.0
        %1832 = vmatpush1.msra.mxu0 0.0
        %1833 = vmatprep.subr.mxu0 0.0
        %1834 = vmatpush1.msra.mxu0 0.0
        %1835 = vmatprep.subr.mxu0 0.0
        %1836 = vmatpush1.msra.mxu0 0.0
        %1837 = vmatprep.subr.mxu0 0.0
        %1838 = vmatpush1.msra.mxu0 0.0
        %1839 = vmatprep.subr.mxu0 0.0
        %1840 = vmatpush1.msra.mxu0 0.0
        %1841 = vmatprep.subr.mxu0 0.0
        %1842 = vmatpush1.msra.mxu0 0.0
        %1843 = vmatprep.subr.mxu0 0.0
        %1844 = vmatpush1.msra.mxu0 0.0
        %1845 = vmatprep.subr.mxu0 0.0
        %1846 = vmatpush1.msra.mxu0 0.0
        %1847 = vmatprep.subr.mxu0 0.0
        %1848 = vmatpush1.msra.mxu0 0.0
        %1849 = vmatprep.subr.mxu0 0.0
        %1850 = vmatpush1.msra.mxu0 0.0
        %1851 = vmatprep.subr.mxu0 0.0
        %1852 = vmatpush1.msra.mxu0 0.0
        %1853 = vmatprep.subr.mxu0 0.0
        %1854 = vmatpush1.msra.mxu0 0.0
        %1855 = vmatprep.subr.mxu0 0.0
        %1856 = vmatpush1.msra.mxu0 0.0
        %1857 = vmatprep.mubr.f32.mxu0 0.0
        %1858 = vmatmul.mubr.f32.gmra.mrb[0].mxu0 %v1788
        %v1859 = vpop.f32.mrb[0].mxu0
        %v1860 = vadd.f32 0.0, %v1859
        %v1861 = vpop.f32.mrb[0].mxu0
        %1862 = vdwg.mxu0
        %v1863 = vadd.f32 %v1781, %v1860
        %vm1864 = vcmask 73728
        %1865 = vst.msk [vmem:[%s216] sm:$0x1] %vm1864, %v1863
        %s1866 = sand.u32 %s137, 1
        %s1867 = scalar_lea.sflag [#allocation3], %s1866
        %s1868 = sand.u32 %s137, 1
        %s1869 = scalar_lea.vmem [#allocation2], %s1868
        // Predicated region
        $region41: #{cnn_forward.5} parent=39 // pred_check
          %p1870 = pneg %p147
        $region42: #{cnn_forward.5} parent=39 // pred_check_branch
          %1872 = sbr.rel (%p1870) target = $region44
        $region43: #{cnn_forward.5} parent=39 // pred_region
          %s1874 = ssub.s32 16, 16
          %1875 = vsyncadd %s1867, %s1874
          %s1876 = smul.addr %s19, 16
          %s1877 = scalar_lea.hbm %s5, %s1876
          %s1879 = sshll.u32 %s1869, 4
          %s1880 = int_to_ptr.vmem [resolvable:$true] %s1879
          %1882 = dma.vmem_to_hbm [thread:$0]  %s1880, 16, %s1877, %s1867
        $region44: #{cnn_forward.5} parent=39 // pred_fallthru
          _
      $region40: #{cnn_forward.5} parent=5 // pred_fallthru
        _
      %p1883 = scmp.le.s32.totalorder 2, %s14
      // Predicated region
      $region45: #{cnn_forward.5} parent=5 // pred_check
        %p1884 = pneg %p1883
      $region46: #{cnn_forward.5} parent=5 // pred_check_branch
        %1886 = sbr.rel (%p1884) target = $region48
      $region47: #{cnn_forward.5} parent=5 // pred_region
        %s1887 = ssub.s32 %s14, 2
        // Predicated region
        $region49: #{cnn_forward.5} parent=47 // pred_check
          %p1888 = pneg %p153
        $region50: #{cnn_forward.5} parent=47 // pred_check_branch
          %1890 = sbr.rel (%p1888) target = $region52
        $region51: #{cnn_forward.5} parent=47 // pred_region
          %s1891 = sand.u32 %s138, 1
          %s1892 = scalar_lea.sflag [#allocation3], %s1891
          %s1893 = sand.u32 %s138, 1
          %s1894 = scalar_lea.vmem [#allocation2], %s1893
          %1895 = dma.done %s1892, 16
        $region52: #{cnn_forward.5} parent=47 // pred_fallthru
          _
      $region48: #{cnn_forward.5} parent=5 // pred_fallthru
        _
    $region6: #{cnn_forward.5} parent=1 // loop_footer
      %s18 = sadd.s32 1, %s14
    $region7: #{cnn_forward.5} parent=1 // loop_footer_branch
      %13 = sbr.rel target = $region3
    $region8: #{cnn_forward.5} parent=1 // loop_exit
      _
    %1896 = vsyncpa [#allocation3], 1
    %s1897 = scalar_lea.sflag [#allocation3], 1
    %1898 = vsyncpa %s1897, 1

</llo_original>
